<compile_context>
chip_gen: v5e
topology: v5e:2x2
jax: 0.10.0
libtpu: 0.0.40
codegen_flags: <defaults>
</compile_context>

<pallas_src>
import functools

import jax
import jax.numpy as jnp
from jax.experimental import pallas as pl
from jax.experimental.pallas import tpu as pltpu


# ----------------------------------------------------------------------------
# helpers
# ----------------------------------------------------------------------------
def _layernorm(v, eps=1e-6):
    # nn.LayerNorm(elementwise_affine=False): biased variance over last dim.
    mu = jnp.mean(v, axis=-1, keepdims=True)
    var = jnp.mean((v - mu) ** 2, axis=-1, keepdims=True)
    return (v - mu) * jax.lax.rsqrt(var + eps)


def _vmem_capacity_bytes():
    try:
        return int(pltpu.get_tpu_info().vmem_capacity_bytes)
    except Exception:
        return 128 * 2 ** 20        # v5e/v6e default if query unavailable


def _mxu_width():
    try:
        kind = jax.devices()[0].device_kind.lower()
        if "v5 lite" in kind or "v5e" in kind or "v5lite" in kind:
            return 128              # v5e MXU is 128 wide
    except Exception:
        pass
    return 256                      # v6e / v7x


def _largest_chunk(dh, target):
    """Largest divisor of dh that is <= target."""
    if dh <= target:
        return dh
    for cand in range(target, 0, -1):
        if dh % cand == 0:
            return cand
    return dh


def _heads_per_group(num_heads, head_dim, width):
    """Largest divisor g of num_heads with g*head_dim <= MXU width."""
    best = 1
    for g in range(1, num_heads + 1):
        if num_heads % g == 0 and g * head_dim <= width:
            best = g
    return best


# ----------------------------------------------------------------------------
# kernel
# ----------------------------------------------------------------------------
def dit_block_kernel(x_ref, mod_ref,
                     wq_ref, wk_ref, wv_ref, bq_ref, bk_ref, bv_ref,
                     wp_ref, bp_ref,
                     w1_ref, b1_ref, w2_ref, b2_ref,
                     out_ref, acc_ref,
                     *, heads_per_group):
    f32, bf16 = jnp.float32, jnp.bfloat16

    x = x_ref[0].astype(f32)                       # (N, D)
    m = mod_ref[0].astype(f32)                     # (6, D)
    shift_msa, scale_msa, gate_msa = m[0:1], m[1:2], m[2:3]
    shift_mlp, scale_mlp, gate_mlp = m[3:4], m[4:5], m[5:6]

    G, _, gw = wq_ref.shape                        # groups, D, group width
    hd = gw // heads_per_group
    nC = w1_ref.shape[0]

    # ---- attention branch ----
    h_bf = (_layernorm(x) * (1.0 + scale_msa) + shift_msa).astype(bf16)

    acc_ref[...] = jnp.zeros_like(acc_ref)
    for gi in range(G):                            # static, fully unrolled
        # Group-wide projections: full-width MXU matmuls, f32 accumulation.
        # (1/sqrt(hd) is already folded into wq/bq at pack time.)
        qg = jnp.dot(h_bf, wq_ref[gi], preferred_element_type=f32) + bq_ref[gi]
        kg = jnp.dot(h_bf, wk_ref[gi], preferred_element_type=f32) + bk_ref[gi]
        vg = jnp.dot(h_bf, wv_ref[gi], preferred_element_type=f32) + bv_ref[gi]

        heads = []
        for hi in range(heads_per_group):          # static lane slices
            lo = hi * hd
            qh = qg[:, lo:lo + hd].astype(bf16)
            kh = kg[:, lo:lo + hd].astype(bf16)
            vh = vg[:, lo:lo + hd].astype(bf16)
            # Contract last dims of both (no kh.T materialized).
            logits = jax.lax.dot_general(
                qh, kh, (((1,), (1,)), ((), ())),
                preferred_element_type=f32)        # (N, N)
            logits = logits - jnp.max(logits, axis=-1, keepdims=True)
            p = jnp.exp(logits)
            p = p * pl.reciprocal(jnp.sum(p, axis=-1, keepdims=True),
                                  approx=True)
            heads.append(jnp.dot(p.astype(bf16), vh,
                                 preferred_element_type=f32).astype(bf16))
        og = heads[0] if len(heads) == 1 else jnp.concatenate(heads, axis=-1)
        # Folded output projection: one (N, gw) @ (gw, D) per group.
        acc_ref[...] += jnp.dot(og, wp_ref[gi], preferred_element_type=f32)

    x = x + gate_msa * (acc_ref[...] + bp_ref[...])

    # ---- MLP branch (hidden dim processed in chunks) ----
    h2_bf = (_layernorm(x) * (1.0 + scale_mlp) + shift_mlp).astype(bf16)

    acc_ref[...] = jnp.zeros_like(acc_ref)
    for ci in range(nC):                           # static, fully unrolled
        hc = jnp.dot(h2_bf, w1_ref[ci], preferred_element_type=f32) + b1_ref[ci]
        hc = jax.nn.gelu(hc, approximate=True)     # GELU(approximate='tanh')
        acc_ref[...] += jnp.dot(hc.astype(bf16), w2_ref[ci],
                                preferred_element_type=f32)

    x = x + gate_mlp * (acc_ref[...] + b2_ref[...])
    out_ref[0] = x.astype(out_ref.dtype)


# ----------------------------------------------------------------------------
# one-time weight packing (hoisted out of the per-forward path)
# ----------------------------------------------------------------------------
def pack_dit_block_params(params, num_heads, *, mxu_width=None,
                          mlp_chunk_target=None):
    (w_ada, b_ada, w_qkv, b_qkv, w_proj, b_proj,
     w_fc1, b_fc1, w_fc2, b_fc2) = params
    f32, bf16 = jnp.float32, jnp.bfloat16

    D = w_qkv.shape[0]
    H = num_heads
    assert D % H == 0
    hd = D // H

    if mxu_width is None:
        mxu_width = _mxu_width()
    g = _heads_per_group(H, hd, mxu_width)
    G = H // g
    gw = g * hd

    Dh = w_fc1.shape[1]
    if mlp_chunk_target is None:
        mlp_chunk_target = 1024 if _vmem_capacity_bytes() >= 96 * 2 ** 20 else 512
    C = _largest_chunk(Dh, mlp_chunk_target)
    nC = Dh // C

    scale = 1.0 / float(hd) ** 0.5

    def group_w(w, s=1.0):                 # (D, D) -> (G, D, gw)
        return (w * s).reshape(D, G, gw).transpose(1, 0, 2).astype(bf16)

    def group_b(b, s=1.0):                 # (1, D) -> (G, 1, gw)
        return (b * s).reshape(1, G, gw).transpose(1, 0, 2).astype(f32)

    # softmax scale folded into Q weights/bias
    w_q = group_w(w_qkv[:, 0 * D:1 * D], scale)
    w_k = group_w(w_qkv[:, 1 * D:2 * D])
    w_v = group_w(w_qkv[:, 2 * D:3 * D])
    b_q = group_b(b_qkv[:, 0 * D:1 * D], scale)
    b_k = group_b(b_qkv[:, 1 * D:2 * D])
    b_v = group_b(b_qkv[:, 2 * D:3 * D])
    w_p = w_proj.reshape(G, gw, D).astype(bf16)          # per-group row blocks
    b_p = b_proj.astype(f32)

    w1 = w_fc1.reshape(D, nC, C).transpose(1, 0, 2).astype(bf16)   # (nC, D, C)
    b1 = b_fc1.reshape(1, nC, C).transpose(1, 0, 2).astype(f32)    # (nC, 1, C)
    w2 = w_fc2.reshape(nC, C, D).astype(bf16)                      # (nC, C, D)
    b2 = b_fc2.astype(f32)

    ada = (w_ada.astype(f32), b_ada.astype(f32))
    packed = (w_q, w_k, w_v, b_q, b_k, b_v, w_p, b_p, w1, b1, w2, b2)
    meta = dict(num_heads=H, heads_per_group=g, head_dim=hd,
                group_width=gw, mlp_chunk=C)
    return ada, packed, meta


# ----------------------------------------------------------------------------
# wrapper
# ----------------------------------------------------------------------------
def _pallas_apply(x, mod, weights, meta, *, single_buffer_weights):
    B, N, D = x.shape
    g = meta["heads_per_group"]
    gw = meta["group_width"]
    C = meta["mlp_chunk"]

    def const_spec(arr):
        nd = arr.ndim
        if single_buffer_weights:
            # Grid-invariant: single-buffer to halve weight VMEM.
            return pl.BlockSpec(arr.shape, lambda b, _nd=nd: (0,) * _nd,
                                pipeline_mode=pl.Buffered(1))
        return pl.BlockSpec(arr.shape, lambda b, _nd=nd: (0,) * _nd)

    in_specs = [
        pl.BlockSpec((1, N, D), lambda b: (b, 0, 0)),      # x (per batch)
        pl.BlockSpec((1, 6, D), lambda b: (b, 0, 0)),      # mod (per batch)
    ] + [const_spec(a) for a in weights]

    # Generation-aware VMEM budget.
    weight_bytes = sum(int(a.size) * a.dtype.itemsize for a in weights)
    if not single_buffer_weights:
        weight_bytes *= 2
    io_bytes = 2 * (2 * N * D * x.dtype.itemsize + 6 * D * 4)   # x, out, mod (dbl-buf)
    # f32 temporaries: x/h/acc slabs, group Q/K/V, one MLP chunk, logits + p.
    act_bytes = 4 * (N * (5 * D + 3 * gw + C) + 2 * N * N)
    cap = max(16 * 2 ** 20, _vmem_capacity_bytes() - (8 << 20))
    vmem_limit = int(max(16 * 2 ** 20,
                         min(cap, max(32 * 2 ** 20,
                                      weight_bytes + io_bytes + act_bytes
                                      + (4 << 20)))))

    kernel = functools.partial(dit_block_kernel, heads_per_group=g)

    return pl.pallas_call(
        kernel,
        out_shape=jax.ShapeDtypeStruct((B, N, D), x.dtype),
        grid=(B,),
        in_specs=in_specs,
        out_specs=pl.BlockSpec((1, N, D), lambda b: (b, 0, 0)),
        scratch_shapes=[pltpu.VMEM((N, D), jnp.float32)],   # shared accumulator
        input_output_aliases={0: 0},       # output aliases x (in-place residual)
        compiler_params=pltpu.CompilerParams(
            dimension_semantics=("parallel",),
            vmem_limit_bytes=vmem_limit),
    )(x, mod, *weights)


def dit_block(x, c, ada, packed, meta):
    B, N, D = x.shape
    w_ada, b_ada = ada
    # adaLN-Zero modulation: tiny M=1 matmul, keep in plain XLA (float32).
    mod = (jax.nn.silu(c.astype(jnp.float32)) @ w_ada + b_ada).reshape(B, 6, D)
    try:
        return _pallas_apply(x, mod, packed, meta, single_buffer_weights=True)
    except Exception:
        # TODO(synk): drop once pl.Buffered(1) single-buffering is supported everywhere.
        return _pallas_apply(x, mod, packed, meta, single_buffer_weights=False)


# ----------------------------------------------------------------------------
# pure-JAX reference (PyTorch forward semantics)
# ----------------------------------------------------------------------------
def dit_block_reference(x, c, params, num_heads):
    (w_ada, b_ada, w_qkv, b_qkv, w_proj, b_proj,
     w_fc1, b_fc1, w_fc2, b_fc2) = params
    B, N, D = x.shape
    H = num_heads
    hd = D // H

    mod = jax.nn.silu(c) @ w_ada + b_ada                                  # (B, 6D)
    shift_msa, scale_msa, gate_msa, shift_mlp, scale_mlp, gate_mlp = \
        jnp.split(mod, 6, axis=1)

    def ln(v):
        mu = v.mean(-1, keepdims=True)
        var = ((v - mu) ** 2).mean(-1, keepdims=True)
        return (v - mu) / jnp.sqrt(var + 1e-6)

    h = ln(x) * (1 + scale_msa[:, None, :]) + shift_msa[:, None, :]
    qkv = h @ w_qkv + b_qkv
    q, k, v = qkv[..., :D], qkv[..., D:2 * D], qkv[..., 2 * D:]
    q = q.reshape(B, N, H, hd).transpose(0, 2, 1, 3)
    k = k.reshape(B, N, H, hd).transpose(0, 2, 1, 3)
    v = v.reshape(B, N, H, hd).transpose(0, 2, 1, 3)
    att = jax.nn.softmax((q @ k.transpose(0, 1, 3, 2)) / jnp.sqrt(float(hd)), -1)
    o = (att @ v).transpose(0, 2, 1, 3).reshape(B, N, D)
    o = o @ w_proj + b_proj
    x = x + gate_msa[:, None, :] * o

    h = ln(x) * (1 + scale_mlp[:, None, :]) + shift_mlp[:, None, :]
    h = jax.nn.gelu(h @ w_fc1 + b_fc1, approximate=True)
    h = h @ w_fc2 + b_fc2
    x = x + gate_mlp[:, None, :] * h
    return x


def make_params(key, hidden_dim, mlp_ratio=4.0):
    D = hidden_dim
    Dh = int(D * mlp_ratio)
    ks = jax.random.split(key, 10)
    s = 0.02

    def w(k, shape):
        return (s * jax.random.normal(k, shape)).astype(jnp.float32)

    # Weights stored as (in, out); biases as (1, out).
    return (w(ks[0], (D, 6 * D)), w(ks[1], (1, 6 * D)),     # adaLN
            w(ks[2], (D, 3 * D)), w(ks[3], (1, 3 * D)),     # qkv
            w(ks[4], (D, D)), w(ks[5], (1, D)),             # proj
            w(ks[6], (D, Dh)), w(ks[7], (1, Dh)),           # fc1
            w(ks[8], (Dh, D)), w(ks[9], (1, D)))            # fc2


if __name__ == "__main__":
    B, N, D = 2, 8, 32
    num_heads = 4

    key = jax.random.PRNGKey(0)
    kx, kc, kp = jax.random.split(key, 3)
    x = jax.random.normal(kx, (B, N, D), dtype=jnp.float32)
    c = jax.random.normal(kc, (B, D), dtype=jnp.float32)
    params = make_params(kp, D, mlp_ratio=4.0)

    # Reference first (the kernel output aliases x's buffer).
    ref = jax.block_until_ready(dit_block_reference(x, c, params, num_heads))

    # Pack / cast weights once (hoisted out of the per-forward path).
    ada, packed, meta = pack_dit_block_params(params, num_heads)

    out = jax.block_until_ready(dit_block(x, c, ada, packed, meta))

    assert out.shape == (B, N, D)
    assert jnp.allclose(out, ref, atol=5e-3, rtol=5e-3), \
        f"max abs err {float(jnp.max(jnp.abs(out - ref)))}"

    print("KERNEL_OK")
</pallas_src>

<mosaic_0001>
module attributes {stable_mosaic.version = 11 : i64} {
  func.func @dit_block_kernel(%arg0: i32, %arg1: memref<1x8x32xf32, #tpu.memory_space<vmem>>, %arg2: memref<1x6x32xf32, #tpu.memory_space<vmem>>, %arg3: memref<1x32x32xbf16, #tpu.memory_space<vmem>>, %arg4: memref<1x32x32xbf16, #tpu.memory_space<vmem>>, %arg5: memref<1x32x32xbf16, #tpu.memory_space<vmem>>, %arg6: memref<1x1x32xf32, #tpu.memory_space<vmem>>, %arg7: memref<1x1x32xf32, #tpu.memory_space<vmem>>, %arg8: memref<1x1x32xf32, #tpu.memory_space<vmem>>, %arg9: memref<1x32x32xbf16, #tpu.memory_space<vmem>>, %arg10: memref<1x32xf32, #tpu.memory_space<vmem>>, %arg11: memref<1x32x128xbf16, #tpu.memory_space<vmem>>, %arg12: memref<1x1x128xf32, #tpu.memory_space<vmem>>, %arg13: memref<1x128x32xbf16, #tpu.memory_space<vmem>>, %arg14: memref<1x32xf32, #tpu.memory_space<vmem>>, %arg15: memref<1x8x32xf32, #tpu.memory_space<vmem>>, %arg16: memref<8x32xf32, #tpu.memory_space<vmem>>) attributes {dimension_semantics = [#tpu.dimension_semantics<parallel>], iteration_bounds = array<i64: 2>, scalar_prefetch = 0 : i64, scratch_operands = 1 : i64, tpu.core_type = #tpu.core_type<tc>, window_params = [{transform_indices = @transform_0, window_bounds = array<i64: 1, 8, 32>}, {transform_indices = @transform_1, window_bounds = array<i64: 1, 6, 32>}, {pipeline_mode = #tpu.pipeline_mode<synchronous>, transform_indices = @transform_2, window_bounds = array<i64: 1, 32, 32>}, {pipeline_mode = #tpu.pipeline_mode<synchronous>, transform_indices = @transform_3, window_bounds = array<i64: 1, 32, 32>}, {pipeline_mode = #tpu.pipeline_mode<synchronous>, transform_indices = @transform_4, window_bounds = array<i64: 1, 32, 32>}, {pipeline_mode = #tpu.pipeline_mode<synchronous>, transform_indices = @transform_5, window_bounds = array<i64: 1, 1, 32>}, {pipeline_mode = #tpu.pipeline_mode<synchronous>, transform_indices = @transform_6, window_bounds = array<i64: 1, 1, 32>}, {pipeline_mode = #tpu.pipeline_mode<synchronous>, transform_indices = @transform_7, window_bounds = array<i64: 1, 1, 32>}, {pipeline_mode = #tpu.pipeline_mode<synchronous>, transform_indices = @transform_8, window_bounds = array<i64: 1, 32, 32>}, {pipeline_mode = #tpu.pipeline_mode<synchronous>, transform_indices = @transform_9, window_bounds = array<i64: 1, 32>}, {pipeline_mode = #tpu.pipeline_mode<synchronous>, transform_indices = @transform_10, window_bounds = array<i64: 1, 32, 128>}, {pipeline_mode = #tpu.pipeline_mode<synchronous>, transform_indices = @transform_11, window_bounds = array<i64: 1, 1, 128>}, {pipeline_mode = #tpu.pipeline_mode<synchronous>, transform_indices = @transform_12, window_bounds = array<i64: 1, 128, 32>}, {pipeline_mode = #tpu.pipeline_mode<synchronous>, transform_indices = @transform_13, window_bounds = array<i64: 1, 32>}, {transform_indices = @transform_14, window_bounds = array<i64: 1, 8, 32>}]} {
    %c0 = arith.constant 0 : index
    %c0_0 = arith.constant 0 : index
    %c0_1 = arith.constant 0 : index
    %0 = vector.load %arg1[%c0, %c0_0, %c0_1] : memref<1x8x32xf32, #tpu.memory_space<vmem>>, vector<1x8x32xf32>
    %1 = vector.shape_cast %0 : vector<1x8x32xf32> to vector<8x32xf32>
    %c0_2 = arith.constant 0 : index
    %c0_3 = arith.constant 0 : index
    %c0_4 = arith.constant 0 : index
    %2 = vector.load %arg2[%c0_2, %c0_3, %c0_4] : memref<1x6x32xf32, #tpu.memory_space<vmem>>, vector<1x6x32xf32>
    %3 = vector.shape_cast %2 : vector<1x6x32xf32> to vector<6x32xf32>
    %4 = vector.extract_strided_slice %3 {offsets = [0, 0], sizes = [1, 32], strides = [1, 1]} : vector<6x32xf32> to vector<1x32xf32>
    %5 = vector.extract_strided_slice %3 {offsets = [1, 0], sizes = [1, 32], strides = [1, 1]} : vector<6x32xf32> to vector<1x32xf32>
    %6 = vector.extract_strided_slice %3 {offsets = [2, 0], sizes = [1, 32], strides = [1, 1]} : vector<6x32xf32> to vector<1x32xf32>
    %7 = vector.extract_strided_slice %3 {offsets = [3, 0], sizes = [1, 32], strides = [1, 1]} : vector<6x32xf32> to vector<1x32xf32>
    %8 = vector.extract_strided_slice %3 {offsets = [4, 0], sizes = [1, 32], strides = [1, 1]} : vector<6x32xf32> to vector<1x32xf32>
    %9 = vector.extract_strided_slice %3 {offsets = [5, 0], sizes = [1, 32], strides = [1, 1]} : vector<6x32xf32> to vector<1x32xf32>
    %cst = arith.constant dense<0.000000e+00> : vector<8xf32>
    %10 = vector.multi_reduction <add>, %1, %cst [1] : vector<8x32xf32> to vector<8xf32>
    %11 = vector.shape_cast %10 : vector<8xf32> to vector<8x1xf32>
    %cst_5 = arith.constant 3.200000e+01 : f32
    %12 = vector.broadcast %cst_5 : f32 to vector<8x1xf32>
    %13 = arith.divf %11, %12 : vector<8x1xf32>
    %14 = vector.broadcast %13 : vector<8x1xf32> to vector<8x32xf32>
    %15 = arith.subf %1, %14 : vector<8x32xf32>
    %16 = arith.mulf %15, %15 : vector<8x32xf32>
    %cst_6 = arith.constant dense<0.000000e+00> : vector<8xf32>
    %17 = vector.multi_reduction <add>, %16, %cst_6 [1] : vector<8x32xf32> to vector<8xf32>
    %18 = vector.shape_cast %17 : vector<8xf32> to vector<8x1xf32>
    %cst_7 = arith.constant 3.200000e+01 : f32
    %19 = vector.broadcast %cst_7 : f32 to vector<8x1xf32>
    %20 = arith.divf %18, %19 : vector<8x1xf32>
    %21 = vector.broadcast %13 : vector<8x1xf32> to vector<8x32xf32>
    %22 = arith.subf %1, %21 : vector<8x32xf32>
    %cst_8 = arith.constant 9.99999997E-7 : f32
    %23 = vector.broadcast %cst_8 : f32 to vector<8x1xf32>
    %24 = arith.addf %20, %23 : vector<8x1xf32>
    %25 = math.rsqrt %24 : vector<8x1xf32>
    %26 = vector.broadcast %25 : vector<8x1xf32> to vector<8x32xf32>
    %27 = arith.mulf %22, %26 : vector<8x32xf32>
    %cst_9 = arith.constant 1.000000e+00 : f32
    %28 = vector.broadcast %cst_9 : f32 to vector<1x32xf32>
    %29 = arith.addf %28, %5 : vector<1x32xf32>
    %30 = vector.broadcast %29 : vector<1x32xf32> to vector<8x32xf32>
    %31 = arith.mulf %27, %30 : vector<8x32xf32>
    %32 = vector.broadcast %4 : vector<1x32xf32> to vector<8x32xf32>
    %33 = arith.addf %31, %32 : vector<8x32xf32>
    %34 = arith.truncf %33 : vector<8x32xf32> to vector<8x32xbf16>
    %cst_10 = arith.constant 0.000000e+00 : f32
    %35 = vector.broadcast %cst_10 : f32 to vector<8x32xf32>
    %c0_11 = arith.constant 0 : index
    %c0_12 = arith.constant 0 : index
    %36 = vector.load %arg16[%c0_11, %c0_12] : memref<8x32xf32, #tpu.memory_space<vmem>>, vector<8x32xf32>
    tpu.vector_store %arg16[%c0_11, %c0_12], %35 {strides = array<i32>} : memref<8x32xf32, #tpu.memory_space<vmem>>, vector<8x32xf32>,
    %c0_13 = arith.constant 0 : index
    %c0_14 = arith.constant 0 : index
    %c0_15 = arith.constant 0 : index
    %37 = vector.load %arg3[%c0_13, %c0_14, %c0_15] : memref<1x32x32xbf16, #tpu.memory_space<vmem>>, vector<1x32x32xbf16>
    %38 = vector.shape_cast %37 : vector<1x32x32xbf16> to vector<32x32xbf16>
    %cst_16 = arith.constant dense<0.000000e+00> : vector<8x32xf32>
    %39 = tpu.matmul %34, %38, %cst_16 {dimension_numbers = #tpu.dot_dimension_numbers<[1], [0], [0], [1], [0, 0, 1, 1], [], []>} : vector<8x32xbf16>, vector<32x32xbf16>, vector<8x32xf32> -> vector<8x32xf32>
    %c0_17 = arith.constant 0 : index
    %c0_18 = arith.constant 0 : index
    %c0_19 = arith.constant 0 : index
    %40 = vector.load %arg6[%c0_17, %c0_18, %c0_19] : memref<1x1x32xf32, #tpu.memory_space<vmem>>, vector<1x1x32xf32>
    %41 = vector.shape_cast %40 : vector<1x1x32xf32> to vector<1x32xf32>
    %42 = vector.broadcast %41 : vector<1x32xf32> to vector<8x32xf32>
    %43 = arith.addf %39, %42 : vector<8x32xf32>
    %c0_20 = arith.constant 0 : index
    %c0_21 = arith.constant 0 : index
    %c0_22 = arith.constant 0 : index
    %44 = vector.load %arg4[%c0_20, %c0_21, %c0_22] : memref<1x32x32xbf16, #tpu.memory_space<vmem>>, vector<1x32x32xbf16>
    %45 = vector.shape_cast %44 : vector<1x32x32xbf16> to vector<32x32xbf16>
    %cst_23 = arith.constant dense<0.000000e+00> : vector<8x32xf32>
    %46 = tpu.matmul %34, %45, %cst_23 {dimension_numbers = #tpu.dot_dimension_numbers<[1], [0], [0], [1], [0, 0, 1, 1], [], []>} : vector<8x32xbf16>, vector<32x32xbf16>, vector<8x32xf32> -> vector<8x32xf32>
    %c0_24 = arith.constant 0 : index
    %c0_25 = arith.constant 0 : index
    %c0_26 = arith.constant 0 : index
    %47 = vector.load %arg7[%c0_24, %c0_25, %c0_26] : memref<1x1x32xf32, #tpu.memory_space<vmem>>, vector<1x1x32xf32>
    %48 = vector.shape_cast %47 : vector<1x1x32xf32> to vector<1x32xf32>
    %49 = vector.broadcast %48 : vector<1x32xf32> to vector<8x32xf32>
    %50 = arith.addf %46, %49 : vector<8x32xf32>
    %c0_27 = arith.constant 0 : index
    %c0_28 = arith.constant 0 : index
    %c0_29 = arith.constant 0 : index
    %51 = vector.load %arg5[%c0_27, %c0_28, %c0_29] : memref<1x32x32xbf16, #tpu.memory_space<vmem>>, vector<1x32x32xbf16>
    %52 = vector.shape_cast %51 : vector<1x32x32xbf16> to vector<32x32xbf16>
    %cst_30 = arith.constant dense<0.000000e+00> : vector<8x32xf32>
    %53 = tpu.matmul %34, %52, %cst_30 {dimension_numbers = #tpu.dot_dimension_numbers<[1], [0], [0], [1], [0, 0, 1, 1], [], []>} : vector<8x32xbf16>, vector<32x32xbf16>, vector<8x32xf32> -> vector<8x32xf32>
    %c0_31 = arith.constant 0 : index
    %c0_32 = arith.constant 0 : index
    %c0_33 = arith.constant 0 : index
    %54 = vector.load %arg8[%c0_31, %c0_32, %c0_33] : memref<1x1x32xf32, #tpu.memory_space<vmem>>, vector<1x1x32xf32>
    %55 = vector.shape_cast %54 : vector<1x1x32xf32> to vector<1x32xf32>
    %56 = vector.broadcast %55 : vector<1x32xf32> to vector<8x32xf32>
    %57 = arith.addf %53, %56 : vector<8x32xf32>
    %58 = vector.extract_strided_slice %43 {offsets = [0, 0], sizes = [8, 8], strides = [1, 1]} : vector<8x32xf32> to vector<8x8xf32>
    %59 = arith.truncf %58 : vector<8x8xf32> to vector<8x8xbf16>
    %60 = vector.extract_strided_slice %50 {offsets = [0, 0], sizes = [8, 8], strides = [1, 1]} : vector<8x32xf32> to vector<8x8xf32>
    %61 = arith.truncf %60 : vector<8x8xf32> to vector<8x8xbf16>
    %62 = vector.extract_strided_slice %57 {offsets = [0, 0], sizes = [8, 8], strides = [1, 1]} : vector<8x32xf32> to vector<8x8xf32>
    %63 = arith.truncf %62 : vector<8x8xf32> to vector<8x8xbf16>
    %cst_34 = arith.constant dense<0.000000e+00> : vector<8x8xf32>
    %64 = tpu.matmul %59, %61, %cst_34 {dimension_numbers = #tpu.dot_dimension_numbers<[1], [1], [0], [0], [0, 0, 1, 0], [], []>} : vector<8x8xbf16>, vector<8x8xbf16>, vector<8x8xf32> -> vector<8x8xf32>
    %cst_35 = arith.constant dense<0xFF800000> : vector<8xf32>
    %65 = vector.multi_reduction <maximumf>, %64, %cst_35 [1] : vector<8x8xf32> to vector<8xf32>
    %66 = vector.shape_cast %65 : vector<8xf32> to vector<8x1xf32>
    %67 = vector.broadcast %66 : vector<8x1xf32> to vector<8x8xf32>
    %68 = arith.subf %64, %67 : vector<8x8xf32>
    %69 = math.exp %68 : vector<8x8xf32>
    %cst_36 = arith.constant dense<0.000000e+00> : vector<8xf32>
    %70 = vector.multi_reduction <add>, %69, %cst_36 [1] : vector<8x8xf32> to vector<8xf32>
    %71 = vector.shape_cast %70 : vector<8xf32> to vector<8x1xf32>
    %72 = tpu.reciprocal %71 {approx = true} : vector<8x1xf32> -> vector<8x1xf32>
    %73 = vector.broadcast %72 : vector<8x1xf32> to vector<8x8xf32>
    %74 = arith.mulf %69, %73 : vector<8x8xf32>
    %75 = arith.truncf %74 : vector<8x8xf32> to vector<8x8xbf16>
    %cst_37 = arith.constant dense<0.000000e+00> : vector<8x8xf32>
    %76 = tpu.matmul %75, %63, %cst_37 {dimension_numbers = #tpu.dot_dimension_numbers<[1], [0], [0], [1], [0, 0, 1, 1], [], []>} : vector<8x8xbf16>, vector<8x8xbf16>, vector<8x8xf32> -> vector<8x8xf32>
    %77 = arith.truncf %76 : vector<8x8xf32> to vector<8x8xbf16>
    %78 = vector.extract_strided_slice %43 {offsets = [0, 8], sizes = [8, 8], strides = [1, 1]} : vector<8x32xf32> to vector<8x8xf32>
    %79 = arith.truncf %78 : vector<8x8xf32> to vector<8x8xbf16>
    %80 = vector.extract_strided_slice %50 {offsets = [0, 8], sizes = [8, 8], strides = [1, 1]} : vector<8x32xf32> to vector<8x8xf32>
    %81 = arith.truncf %80 : vector<8x8xf32> to vector<8x8xbf16>
    %82 = vector.extract_strided_slice %57 {offsets = [0, 8], sizes = [8, 8], strides = [1, 1]} : vector<8x32xf32> to vector<8x8xf32>
    %83 = arith.truncf %82 : vector<8x8xf32> to vector<8x8xbf16>
    %cst_38 = arith.constant dense<0.000000e+00> : vector<8x8xf32>
    %84 = tpu.matmul %79, %81, %cst_38 {dimension_numbers = #tpu.dot_dimension_numbers<[1], [1], [0], [0], [0, 0, 1, 0], [], []>} : vector<8x8xbf16>, vector<8x8xbf16>, vector<8x8xf32> -> vector<8x8xf32>
    %cst_39 = arith.constant dense<0xFF800000> : vector<8xf32>
    %85 = vector.multi_reduction <maximumf>, %84, %cst_39 [1] : vector<8x8xf32> to vector<8xf32>
    %86 = vector.shape_cast %85 : vector<8xf32> to vector<8x1xf32>
    %87 = vector.broadcast %86 : vector<8x1xf32> to vector<8x8xf32>
    %88 = arith.subf %84, %87 : vector<8x8xf32>
    %89 = math.exp %88 : vector<8x8xf32>
    %cst_40 = arith.constant dense<0.000000e+00> : vector<8xf32>
    %90 = vector.multi_reduction <add>, %89, %cst_40 [1] : vector<8x8xf32> to vector<8xf32>
    %91 = vector.shape_cast %90 : vector<8xf32> to vector<8x1xf32>
    %92 = tpu.reciprocal %91 {approx = true} : vector<8x1xf32> -> vector<8x1xf32>
    %93 = vector.broadcast %92 : vector<8x1xf32> to vector<8x8xf32>
    %94 = arith.mulf %89, %93 : vector<8x8xf32>
    %95 = arith.truncf %94 : vector<8x8xf32> to vector<8x8xbf16>
    %cst_41 = arith.constant dense<0.000000e+00> : vector<8x8xf32>
    %96 = tpu.matmul %95, %83, %cst_41 {dimension_numbers = #tpu.dot_dimension_numbers<[1], [0], [0], [1], [0, 0, 1, 1], [], []>} : vector<8x8xbf16>, vector<8x8xbf16>, vector<8x8xf32> -> vector<8x8xf32>
    %97 = arith.truncf %96 : vector<8x8xf32> to vector<8x8xbf16>
    %98 = vector.extract_strided_slice %43 {offsets = [0, 16], sizes = [8, 8], strides = [1, 1]} : vector<8x32xf32> to vector<8x8xf32>
    %99 = arith.truncf %98 : vector<8x8xf32> to vector<8x8xbf16>
    %100 = vector.extract_strided_slice %50 {offsets = [0, 16], sizes = [8, 8], strides = [1, 1]} : vector<8x32xf32> to vector<8x8xf32>
    %101 = arith.truncf %100 : vector<8x8xf32> to vector<8x8xbf16>
    %102 = vector.extract_strided_slice %57 {offsets = [0, 16], sizes = [8, 8], strides = [1, 1]} : vector<8x32xf32> to vector<8x8xf32>
    %103 = arith.truncf %102 : vector<8x8xf32> to vector<8x8xbf16>
    %cst_42 = arith.constant dense<0.000000e+00> : vector<8x8xf32>
    %104 = tpu.matmul %99, %101, %cst_42 {dimension_numbers = #tpu.dot_dimension_numbers<[1], [1], [0], [0], [0, 0, 1, 0], [], []>} : vector<8x8xbf16>, vector<8x8xbf16>, vector<8x8xf32> -> vector<8x8xf32>
    %cst_43 = arith.constant dense<0xFF800000> : vector<8xf32>
    %105 = vector.multi_reduction <maximumf>, %104, %cst_43 [1] : vector<8x8xf32> to vector<8xf32>
    %106 = vector.shape_cast %105 : vector<8xf32> to vector<8x1xf32>
    %107 = vector.broadcast %106 : vector<8x1xf32> to vector<8x8xf32>
    %108 = arith.subf %104, %107 : vector<8x8xf32>
    %109 = math.exp %108 : vector<8x8xf32>
    %cst_44 = arith.constant dense<0.000000e+00> : vector<8xf32>
    %110 = vector.multi_reduction <add>, %109, %cst_44 [1] : vector<8x8xf32> to vector<8xf32>
    %111 = vector.shape_cast %110 : vector<8xf32> to vector<8x1xf32>
    %112 = tpu.reciprocal %111 {approx = true} : vector<8x1xf32> -> vector<8x1xf32>
    %113 = vector.broadcast %112 : vector<8x1xf32> to vector<8x8xf32>
    %114 = arith.mulf %109, %113 : vector<8x8xf32>
    %115 = arith.truncf %114 : vector<8x8xf32> to vector<8x8xbf16>
    %cst_45 = arith.constant dense<0.000000e+00> : vector<8x8xf32>
    %116 = tpu.matmul %115, %103, %cst_45 {dimension_numbers = #tpu.dot_dimension_numbers<[1], [0], [0], [1], [0, 0, 1, 1], [], []>} : vector<8x8xbf16>, vector<8x8xbf16>, vector<8x8xf32> -> vector<8x8xf32>
    %117 = arith.truncf %116 : vector<8x8xf32> to vector<8x8xbf16>
    %118 = vector.extract_strided_slice %43 {offsets = [0, 24], sizes = [8, 8], strides = [1, 1]} : vector<8x32xf32> to vector<8x8xf32>
    %119 = arith.truncf %118 : vector<8x8xf32> to vector<8x8xbf16>
    %120 = vector.extract_strided_slice %50 {offsets = [0, 24], sizes = [8, 8], strides = [1, 1]} : vector<8x32xf32> to vector<8x8xf32>
    %121 = arith.truncf %120 : vector<8x8xf32> to vector<8x8xbf16>
    %122 = vector.extract_strided_slice %57 {offsets = [0, 24], sizes = [8, 8], strides = [1, 1]} : vector<8x32xf32> to vector<8x8xf32>
    %123 = arith.truncf %122 : vector<8x8xf32> to vector<8x8xbf16>
    %cst_46 = arith.constant dense<0.000000e+00> : vector<8x8xf32>
    %124 = tpu.matmul %119, %121, %cst_46 {dimension_numbers = #tpu.dot_dimension_numbers<[1], [1], [0], [0], [0, 0, 1, 0], [], []>} : vector<8x8xbf16>, vector<8x8xbf16>, vector<8x8xf32> -> vector<8x8xf32>
    %cst_47 = arith.constant dense<0xFF800000> : vector<8xf32>
    %125 = vector.multi_reduction <maximumf>, %124, %cst_47 [1] : vector<8x8xf32> to vector<8xf32>
    %126 = vector.shape_cast %125 : vector<8xf32> to vector<8x1xf32>
    %127 = vector.broadcast %126 : vector<8x1xf32> to vector<8x8xf32>
    %128 = arith.subf %124, %127 : vector<8x8xf32>
    %129 = math.exp %128 : vector<8x8xf32>
    %cst_48 = arith.constant dense<0.000000e+00> : vector<8xf32>
    %130 = vector.multi_reduction <add>, %129, %cst_48 [1] : vector<8x8xf32> to vector<8xf32>
    %131 = vector.shape_cast %130 : vector<8xf32> to vector<8x1xf32>
    %132 = tpu.reciprocal %131 {approx = true} : vector<8x1xf32> -> vector<8x1xf32>
    %133 = vector.broadcast %132 : vector<8x1xf32> to vector<8x8xf32>
    %134 = arith.mulf %129, %133 : vector<8x8xf32>
    %135 = arith.truncf %134 : vector<8x8xf32> to vector<8x8xbf16>
    %cst_49 = arith.constant dense<0.000000e+00> : vector<8x8xf32>
    %136 = tpu.matmul %135, %123, %cst_49 {dimension_numbers = #tpu.dot_dimension_numbers<[1], [0], [0], [1], [0, 0, 1, 1], [], []>} : vector<8x8xbf16>, vector<8x8xbf16>, vector<8x8xf32> -> vector<8x8xf32>
    %137 = arith.truncf %136 : vector<8x8xf32> to vector<8x8xbf16>
    %138 = tpu.concatenate %77, %97, %117, %137 in 1 : vector<8x8xbf16>, vector<8x8xbf16>, vector<8x8xbf16>, vector<8x8xbf16> -> vector<8x32xbf16>
    %c0_50 = arith.constant 0 : index
    %c0_51 = arith.constant 0 : index
    %139 = vector.load %arg16[%c0_50, %c0_51] : memref<8x32xf32, #tpu.memory_space<vmem>>, vector<8x32xf32>
    %c0_52 = arith.constant 0 : index
    %c0_53 = arith.constant 0 : index
    %c0_54 = arith.constant 0 : index
    %140 = vector.load %arg9[%c0_52, %c0_53, %c0_54] : memref<1x32x32xbf16, #tpu.memory_space<vmem>>, vector<1x32x32xbf16>
    %141 = vector.shape_cast %140 : vector<1x32x32xbf16> to vector<32x32xbf16>
    %cst_55 = arith.constant dense<0.000000e+00> : vector<8x32xf32>
    %142 = tpu.matmul %138, %141, %cst_55 {dimension_numbers = #tpu.dot_dimension_numbers<[1], [0], [0], [1], [0, 0, 1, 1], [], []>} : vector<8x32xbf16>, vector<32x32xbf16>, vector<8x32xf32> -> vector<8x32xf32>
    %143 = arith.addf %139, %142 : vector<8x32xf32>
    %c0_56 = arith.constant 0 : index
    %c0_57 = arith.constant 0 : index
    %144 = vector.load %arg16[%c0_56, %c0_57] : memref<8x32xf32, #tpu.memory_space<vmem>>, vector<8x32xf32>
    tpu.vector_store %arg16[%c0_56, %c0_57], %143 {strides = array<i32>} : memref<8x32xf32, #tpu.memory_space<vmem>>, vector<8x32xf32>,
    %c0_58 = arith.constant 0 : index
    %c0_59 = arith.constant 0 : index
    %145 = vector.load %arg16[%c0_58, %c0_59] : memref<8x32xf32, #tpu.memory_space<vmem>>, vector<8x32xf32>
    %c0_60 = arith.constant 0 : index
    %c0_61 = arith.constant 0 : index
    %146 = vector.load %arg10[%c0_60, %c0_61] : memref<1x32xf32, #tpu.memory_space<vmem>>, vector<1x32xf32>
    %147 = vector.broadcast %146 : vector<1x32xf32> to vector<8x32xf32>
    %148 = arith.addf %145, %147 : vector<8x32xf32>
    %149 = vector.broadcast %6 : vector<1x32xf32> to vector<8x32xf32>
    %150 = arith.mulf %149, %148 : vector<8x32xf32>
    %151 = arith.addf %1, %150 : vector<8x32xf32>
    %cst_62 = arith.constant dense<0.000000e+00> : vector<8xf32>
    %152 = vector.multi_reduction <add>, %151, %cst_62 [1] : vector<8x32xf32> to vector<8xf32>
    %153 = vector.shape_cast %152 : vector<8xf32> to vector<8x1xf32>
    %cst_63 = arith.constant 3.200000e+01 : f32
    %154 = vector.broadcast %cst_63 : f32 to vector<8x1xf32>
    %155 = arith.divf %153, %154 : vector<8x1xf32>
    %156 = vector.broadcast %155 : vector<8x1xf32> to vector<8x32xf32>
    %157 = arith.subf %151, %156 : vector<8x32xf32>
    %158 = arith.mulf %157, %157 : vector<8x32xf32>
    %cst_64 = arith.constant dense<0.000000e+00> : vector<8xf32>
    %159 = vector.multi_reduction <add>, %158, %cst_64 [1] : vector<8x32xf32> to vector<8xf32>
    %160 = vector.shape_cast %159 : vector<8xf32> to vector<8x1xf32>
    %cst_65 = arith.constant 3.200000e+01 : f32
    %161 = vector.broadcast %cst_65 : f32 to vector<8x1xf32>
    %162 = arith.divf %160, %161 : vector<8x1xf32>
    %163 = vector.broadcast %155 : vector<8x1xf32> to vector<8x32xf32>
    %164 = arith.subf %151, %163 : vector<8x32xf32>
    %cst_66 = arith.constant 9.99999997E-7 : f32
    %165 = vector.broadcast %cst_66 : f32 to vector<8x1xf32>
    %166 = arith.addf %162, %165 : vector<8x1xf32>
    %167 = math.rsqrt %166 : vector<8x1xf32>
    %168 = vector.broadcast %167 : vector<8x1xf32> to vector<8x32xf32>
    %169 = arith.mulf %164, %168 : vector<8x32xf32>
    %cst_67 = arith.constant 1.000000e+00 : f32
    %170 = vector.broadcast %cst_67 : f32 to vector<1x32xf32>
    %171 = arith.addf %170, %8 : vector<1x32xf32>
    %172 = vector.broadcast %171 : vector<1x32xf32> to vector<8x32xf32>
    %173 = arith.mulf %169, %172 : vector<8x32xf32>
    %174 = vector.broadcast %7 : vector<1x32xf32> to vector<8x32xf32>
    %175 = arith.addf %173, %174 : vector<8x32xf32>
    %176 = arith.truncf %175 : vector<8x32xf32> to vector<8x32xbf16>
    %cst_68 = arith.constant 0.000000e+00 : f32
    %177 = vector.broadcast %cst_68 : f32 to vector<8x32xf32>
    %c0_69 = arith.constant 0 : index
    %c0_70 = arith.constant 0 : index
    %178 = vector.load %arg16[%c0_69, %c0_70] : memref<8x32xf32, #tpu.memory_space<vmem>>, vector<8x32xf32>
    tpu.vector_store %arg16[%c0_69, %c0_70], %177 {strides = array<i32>} : memref<8x32xf32, #tpu.memory_space<vmem>>, vector<8x32xf32>,
    %c0_71 = arith.constant 0 : index
    %c0_72 = arith.constant 0 : index
    %c0_73 = arith.constant 0 : index
    %179 = vector.load %arg11[%c0_71, %c0_72, %c0_73] : memref<1x32x128xbf16, #tpu.memory_space<vmem>>, vector<1x32x128xbf16>
    %180 = vector.shape_cast %179 : vector<1x32x128xbf16> to vector<32x128xbf16>
    %cst_74 = arith.constant dense<0.000000e+00> : vector<8x128xf32>
    %181 = tpu.matmul %176, %180, %cst_74 {dimension_numbers = #tpu.dot_dimension_numbers<[1], [0], [0], [1], [0, 0, 1, 1], [], []>} : vector<8x32xbf16>, vector<32x128xbf16>, vector<8x128xf32> -> vector<8x128xf32>
    %c0_75 = arith.constant 0 : index
    %c0_76 = arith.constant 0 : index
    %c0_77 = arith.constant 0 : index
    %182 = vector.load %arg12[%c0_75, %c0_76, %c0_77] : memref<1x1x128xf32, #tpu.memory_space<vmem>>, vector<1x1x128xf32>
    %183 = vector.shape_cast %182 : vector<1x1x128xf32> to vector<1x128xf32>
    %184 = vector.broadcast %183 : vector<1x128xf32> to vector<8x128xf32>
    %185 = arith.addf %181, %184 : vector<8x128xf32>
    %186 = arith.mulf %185, %185 : vector<8x128xf32>
    %187 = arith.mulf %185, %186 : vector<8x128xf32>
    %cst_78 = arith.constant 4.471500e-02 : f32
    %188 = vector.broadcast %cst_78 : f32 to vector<8x128xf32>
    %189 = arith.mulf %188, %187 : vector<8x128xf32>
    %190 = arith.addf %185, %189 : vector<8x128xf32>
    %cst_79 = arith.constant 0.797884583 : f32
    %191 = vector.broadcast %cst_79 : f32 to vector<8x128xf32>
    %192 = arith.mulf %191, %190 : vector<8x128xf32>
    %193 = math.tanh %192 : vector<8x128xf32>
    %cst_80 = arith.constant 1.000000e+00 : f32
    %194 = vector.broadcast %cst_80 : f32 to vector<8x128xf32>
    %195 = arith.addf %194, %193 : vector<8x128xf32>
    %cst_81 = arith.constant 5.000000e-01 : f32
    %196 = vector.broadcast %cst_81 : f32 to vector<8x128xf32>
    %197 = arith.mulf %196, %195 : vector<8x128xf32>
    %198 = arith.mulf %185, %197 : vector<8x128xf32>
    %c0_82 = arith.constant 0 : index
    %c0_83 = arith.constant 0 : index
    %199 = vector.load %arg16[%c0_82, %c0_83] : memref<8x32xf32, #tpu.memory_space<vmem>>, vector<8x32xf32>
    %200 = arith.truncf %198 : vector<8x128xf32> to vector<8x128xbf16>
    %c0_84 = arith.constant 0 : index
    %c0_85 = arith.constant 0 : index
    %c0_86 = arith.constant 0 : index
    %201 = vector.load %arg13[%c0_84, %c0_85, %c0_86] : memref<1x128x32xbf16, #tpu.memory_space<vmem>>, vector<1x128x32xbf16>
    %202 = vector.shape_cast %201 : vector<1x128x32xbf16> to vector<128x32xbf16>
    %cst_87 = arith.constant dense<0.000000e+00> : vector<8x32xf32>
    %203 = tpu.matmul %200, %202, %cst_87 {dimension_numbers = #tpu.dot_dimension_numbers<[1], [0], [0], [1], [0, 0, 1, 1], [], []>} : vector<8x128xbf16>, vector<128x32xbf16>, vector<8x32xf32> -> vector<8x32xf32>
    %204 = arith.addf %199, %203 : vector<8x32xf32>
    %c0_88 = arith.constant 0 : index
    %c0_89 = arith.constant 0 : index
    %205 = vector.load %arg16[%c0_88, %c0_89] : memref<8x32xf32, #tpu.memory_space<vmem>>, vector<8x32xf32>
    tpu.vector_store %arg16[%c0_88, %c0_89], %204 {strides = array<i32>} : memref<8x32xf32, #tpu.memory_space<vmem>>, vector<8x32xf32>,
    %c0_90 = arith.constant 0 : index
    %c0_91 = arith.constant 0 : index
    %206 = vector.load %arg16[%c0_90, %c0_91] : memref<8x32xf32, #tpu.memory_space<vmem>>, vector<8x32xf32>
    %c0_92 = arith.constant 0 : index
    %c0_93 = arith.constant 0 : index
    %207 = vector.load %arg14[%c0_92, %c0_93] : memref<1x32xf32, #tpu.memory_space<vmem>>, vector<1x32xf32>
    %208 = vector.broadcast %207 : vector<1x32xf32> to vector<8x32xf32>
    %209 = arith.addf %206, %208 : vector<8x32xf32>
    %210 = vector.broadcast %9 : vector<1x32xf32> to vector<8x32xf32>
    %211 = arith.mulf %210, %209 : vector<8x32xf32>
    %212 = arith.addf %151, %211 : vector<8x32xf32>
    %c0_94 = arith.constant 0 : index
    %c0_95 = arith.constant 0 : index
    %c0_96 = arith.constant 0 : index
    %213 = vector.load %arg15[%c0_94, %c0_95, %c0_96] : memref<1x8x32xf32, #tpu.memory_space<vmem>>, vector<1x8x32xf32>
    %214 = vector.shape_cast %213 : vector<1x8x32xf32> to vector<8x32xf32>
    %215 = vector.shape_cast %212 : vector<8x32xf32> to vector<1x8x32xf32>
    tpu.vector_store %arg15[%c0_94, %c0_95, %c0_96], %215 {strides = array<i32>} : memref<1x8x32xf32, #tpu.memory_space<vmem>>, vector<1x8x32xf32>,
    return
  }
  func.func @transform_0(%arg0: i32) -> (i32, i32, i32) {
    %c0_i32 = arith.constant 0 : i32
    %c0_i32_0 = arith.constant 0 : i32
    %c0_i32_1 = arith.constant 0 : i32
    return %arg0, %c0_i32, %c0_i32_0 : i32, i32, i32
  }
  func.func @transform_1(%arg0: i32) -> (i32, i32, i32) {
    %c0_i32 = arith.constant 0 : i32
    %c0_i32_0 = arith.constant 0 : i32
    %c0_i32_1 = arith.constant 0 : i32
    return %arg0, %c0_i32, %c0_i32_0 : i32, i32, i32
  }
  func.func @transform_2(%arg0: i32) -> (i32, i32, i32) {
    %c0_i32 = arith.constant 0 : i32
    %c0_i32_0 = arith.constant 0 : i32
    %c0_i32_1 = arith.constant 0 : i32
    %c0_i32_2 = arith.constant 0 : i32
    return %c0_i32, %c0_i32_0, %c0_i32_1 : i32, i32, i32
  }
  func.func @transform_3(%arg0: i32) -> (i32, i32, i32) {
    %c0_i32 = arith.constant 0 : i32
    %c0_i32_0 = arith.constant 0 : i32
    %c0_i32_1 = arith.constant 0 : i32
    %c0_i32_2 = arith.constant 0 : i32
    return %c0_i32, %c0_i32_0, %c0_i32_1 : i32, i32, i32
  }
  func.func @transform_4(%arg0: i32) -> (i32, i32, i32) {
    %c0_i32 = arith.constant 0 : i32
    %c0_i32_0 = arith.constant 0 : i32
    %c0_i32_1 = arith.constant 0 : i32
    %c0_i32_2 = arith.constant 0 : i32
    return %c0_i32, %c0_i32_0, %c0_i32_1 : i32, i32, i32
  }
  func.func @transform_5(%arg0: i32) -> (i32, i32, i32) {
    %c0_i32 = arith.constant 0 : i32
    %c0_i32_0 = arith.constant 0 : i32
    %c0_i32_1 = arith.constant 0 : i32
    %c0_i32_2 = arith.constant 0 : i32
    return %c0_i32, %c0_i32_0, %c0_i32_1 : i32, i32, i32
  }
  func.func @transform_6(%arg0: i32) -> (i32, i32, i32) {
    %c0_i32 = arith.constant 0 : i32
    %c0_i32_0 = arith.constant 0 : i32
    %c0_i32_1 = arith.constant 0 : i32
    %c0_i32_2 = arith.constant 0 : i32
    return %c0_i32, %c0_i32_0, %c0_i32_1 : i32, i32, i32
  }
  func.func @transform_7(%arg0: i32) -> (i32, i32, i32) {
    %c0_i32 = arith.constant 0 : i32
    %c0_i32_0 = arith.constant 0 : i32
    %c0_i32_1 = arith.constant 0 : i32
    %c0_i32_2 = arith.constant 0 : i32
    return %c0_i32, %c0_i32_0, %c0_i32_1 : i32, i32, i32
  }
  func.func @transform_8(%arg0: i32) -> (i32, i32, i32) {
    %c0_i32 = arith.constant 0 : i32
    %c0_i32_0 = arith.constant 0 : i32
    %c0_i32_1 = arith.constant 0 : i32
    %c0_i32_2 = arith.constant 0 : i32
    return %c0_i32, %c0_i32_0, %c0_i32_1 : i32, i32, i32
  }
  func.func @transform_9(%arg0: i32) -> (i32, i32) {
    %c0_i32 = arith.constant 0 : i32
    %c0_i32_0 = arith.constant 0 : i32
    %c0_i32_1 = arith.constant 0 : i32
    return %c0_i32, %c0_i32_0 : i32, i32
  }
  func.func @transform_10(%arg0: i32) -> (i32, i32, i32) {
    %c0_i32 = arith.constant 0 : i32
    %c0_i32_0 = arith.constant 0 : i32
    %c0_i32_1 = arith.constant 0 : i32
    %c0_i32_2 = arith.constant 0 : i32
    return %c0_i32, %c0_i32_0, %c0_i32_1 : i32, i32, i32
  }
  func.func @transform_11(%arg0: i32) -> (i32, i32, i32) {
    %c0_i32 = arith.constant 0 : i32
    %c0_i32_0 = arith.constant 0 : i32
    %c0_i32_1 = arith.constant 0 : i32
    %c0_i32_2 = arith.constant 0 : i32
    return %c0_i32, %c0_i32_0, %c0_i32_1 : i32, i32, i32
  }
  func.func @transform_12(%arg0: i32) -> (i32, i32, i32) {
    %c0_i32 = arith.constant 0 : i32
    %c0_i32_0 = arith.constant 0 : i32
    %c0_i32_1 = arith.constant 0 : i32
    %c0_i32_2 = arith.constant 0 : i32
    return %c0_i32, %c0_i32_0, %c0_i32_1 : i32, i32, i32
  }
  func.func @transform_13(%arg0: i32) -> (i32, i32) {
    %c0_i32 = arith.constant 0 : i32
    %c0_i32_0 = arith.constant 0 : i32
    %c0_i32_1 = arith.constant 0 : i32
    return %c0_i32, %c0_i32_0 : i32, i32
  }
  func.func @transform_14(%arg0: i32) -> (i32, i32, i32) {
    %c0_i32 = arith.constant 0 : i32
    %c0_i32_0 = arith.constant 0 : i32
    %c0_i32_1 = arith.constant 0 : i32
    return %arg0, %c0_i32, %c0_i32_0 : i32, i32, i32
  }
}

module attributes {stable_mosaic.version = 11 : i64} {
  func.func @dit_block_kernel(%arg0: i32, %arg1: memref<1x8x32xf32, #tpu.memory_space<vmem>>, %arg2: memref<1x6x32xf32, #tpu.memory_space<vmem>>, %arg3: memref<1x32x32xbf16, #tpu.memory_space<vmem>>, %arg4: memref<1x32x32xbf16, #tpu.memory_space<vmem>>, %arg5: memref<1x32x32xbf16, #tpu.memory_space<vmem>>, %arg6: memref<1x1x32xf32, #tpu.memory_space<vmem>>, %arg7: memref<1x1x32xf32, #tpu.memory_space<vmem>>, %arg8: memref<1x1x32xf32, #tpu.memory_space<vmem>>, %arg9: memref<1x32x32xbf16, #tpu.memory_space<vmem>>, %arg10: memref<1x32xf32, #tpu.memory_space<vmem>>, %arg11: memref<1x32x128xbf16, #tpu.memory_space<vmem>>, %arg12: memref<1x1x128xf32, #tpu.memory_space<vmem>>, %arg13: memref<1x128x32xbf16, #tpu.memory_space<vmem>>, %arg14: memref<1x32xf32, #tpu.memory_space<vmem>>, %arg15: memref<1x8x32xf32, #tpu.memory_space<vmem>>, %arg16: memref<8x32xf32, #tpu.memory_space<vmem>>) attributes {dimension_semantics = [#tpu.dimension_semantics<parallel>], iteration_bounds = array<i64: 2>, scalar_prefetch = 0 : i64, scratch_operands = 1 : i64, tpu.core_type = #tpu.core_type<tc>, window_params = [{transform_indices = @transform_0, window_bounds = array<i64: 1, 8, 32>}, {transform_indices = @transform_1, window_bounds = array<i64: 1, 6, 32>}, {pipeline_mode = #tpu.pipeline_mode<synchronous>, transform_indices = @transform_2, window_bounds = array<i64: 1, 32, 32>}, {pipeline_mode = #tpu.pipeline_mode<synchronous>, transform_indices = @transform_3, window_bounds = array<i64: 1, 32, 32>}, {pipeline_mode = #tpu.pipeline_mode<synchronous>, transform_indices = @transform_4, window_bounds = array<i64: 1, 32, 32>}, {pipeline_mode = #tpu.pipeline_mode<synchronous>, transform_indices = @transform_5, window_bounds = array<i64: 1, 1, 32>}, {pipeline_mode = #tpu.pipeline_mode<synchronous>, transform_indices = @transform_6, window_bounds = array<i64: 1, 1, 32>}, {pipeline_mode = #tpu.pipeline_mode<synchronous>, transform_indices = @transform_7, window_bounds = array<i64: 1, 1, 32>}, {pipeline_mode = #tpu.pipeline_mode<synchronous>, transform_indices = @transform_8, window_bounds = array<i64: 1, 32, 32>}, {pipeline_mode = #tpu.pipeline_mode<synchronous>, transform_indices = @transform_9, window_bounds = array<i64: 1, 32>}, {pipeline_mode = #tpu.pipeline_mode<synchronous>, transform_indices = @transform_10, window_bounds = array<i64: 1, 32, 128>}, {pipeline_mode = #tpu.pipeline_mode<synchronous>, transform_indices = @transform_11, window_bounds = array<i64: 1, 1, 128>}, {pipeline_mode = #tpu.pipeline_mode<synchronous>, transform_indices = @transform_12, window_bounds = array<i64: 1, 128, 32>}, {pipeline_mode = #tpu.pipeline_mode<synchronous>, transform_indices = @transform_13, window_bounds = array<i64: 1, 32>}, {transform_indices = @transform_14, window_bounds = array<i64: 1, 8, 32>}]} {
    %c0 = arith.constant 0 : index
    %c0_0 = arith.constant 0 : index
    %c0_1 = arith.constant 0 : index
    %0 = vector.load %arg1[%c0, %c0_0, %c0_1] : memref<1x8x32xf32, #tpu.memory_space<vmem>>, vector<1x8x32xf32>
    %1 = vector.shape_cast %0 : vector<1x8x32xf32> to vector<8x32xf32>
    %c0_2 = arith.constant 0 : index
    %c0_3 = arith.constant 0 : index
    %c0_4 = arith.constant 0 : index
    %2 = vector.load %arg2[%c0_2, %c0_3, %c0_4] : memref<1x6x32xf32, #tpu.memory_space<vmem>>, vector<1x6x32xf32>
    %3 = vector.shape_cast %2 : vector<1x6x32xf32> to vector<6x32xf32>
    %4 = vector.extract_strided_slice %3 {offsets = [0, 0], sizes = [1, 32], strides = [1, 1]} : vector<6x32xf32> to vector<1x32xf32>
    %5 = vector.extract_strided_slice %3 {offsets = [1, 0], sizes = [1, 32], strides = [1, 1]} : vector<6x32xf32> to vector<1x32xf32>
    %6 = vector.extract_strided_slice %3 {offsets = [2, 0], sizes = [1, 32], strides = [1, 1]} : vector<6x32xf32> to vector<1x32xf32>
    %7 = vector.extract_strided_slice %3 {offsets = [3, 0], sizes = [1, 32], strides = [1, 1]} : vector<6x32xf32> to vector<1x32xf32>
    %8 = vector.extract_strided_slice %3 {offsets = [4, 0], sizes = [1, 32], strides = [1, 1]} : vector<6x32xf32> to vector<1x32xf32>
    %9 = vector.extract_strided_slice %3 {offsets = [5, 0], sizes = [1, 32], strides = [1, 1]} : vector<6x32xf32> to vector<1x32xf32>
    %cst = arith.constant dense<0.000000e+00> : vector<8xf32>
    %10 = vector.multi_reduction <add>, %1, %cst [1] : vector<8x32xf32> to vector<8xf32>
    %11 = vector.shape_cast %10 : vector<8xf32> to vector<8x1xf32>
    %cst_5 = arith.constant 3.200000e+01 : f32
    %12 = vector.broadcast %cst_5 : f32 to vector<8x1xf32>
    %13 = arith.divf %11, %12 : vector<8x1xf32>
    %14 = vector.broadcast %13 : vector<8x1xf32> to vector<8x32xf32>
    %15 = arith.subf %1, %14 : vector<8x32xf32>
    %16 = arith.mulf %15, %15 : vector<8x32xf32>
    %cst_6 = arith.constant dense<0.000000e+00> : vector<8xf32>
    %17 = vector.multi_reduction <add>, %16, %cst_6 [1] : vector<8x32xf32> to vector<8xf32>
    %18 = vector.shape_cast %17 : vector<8xf32> to vector<8x1xf32>
    %cst_7 = arith.constant 3.200000e+01 : f32
    %19 = vector.broadcast %cst_7 : f32 to vector<8x1xf32>
    %20 = arith.divf %18, %19 : vector<8x1xf32>
    %21 = vector.broadcast %13 : vector<8x1xf32> to vector<8x32xf32>
    %22 = arith.subf %1, %21 : vector<8x32xf32>
    %cst_8 = arith.constant 9.99999997E-7 : f32
    %23 = vector.broadcast %cst_8 : f32 to vector<8x1xf32>
    %24 = arith.addf %20, %23 : vector<8x1xf32>
    %25 = math.rsqrt %24 : vector<8x1xf32>
    %26 = vector.broadcast %25 : vector<8x1xf32> to vector<8x32xf32>
    %27 = arith.mulf %22, %26 : vector<8x32xf32>
    %cst_9 = arith.constant 1.000000e+00 : f32
    %28 = vector.broadcast %cst_9 : f32 to vector<1x32xf32>
    %29 = arith.addf %28, %5 : vector<1x32xf32>
    %30 = vector.broadcast %29 : vector<1x32xf32> to vector<8x32xf32>
    %31 = arith.mulf %27, %30 : vector<8x32xf32>
    %32 = vector.broadcast %4 : vector<1x32xf32> to vector<8x32xf32>
    %33 = arith.addf %31, %32 : vector<8x32xf32>
    %34 = arith.truncf %33 : vector<8x32xf32> to vector<8x32xbf16>
    %cst_10 = arith.constant 0.000000e+00 : f32
    %35 = vector.broadcast %cst_10 : f32 to vector<8x32xf32>
    %c0_11 = arith.constant 0 : index
    %c0_12 = arith.constant 0 : index
    %36 = vector.load %arg16[%c0_11, %c0_12] : memref<8x32xf32, #tpu.memory_space<vmem>>, vector<8x32xf32>
    tpu.vector_store %arg16[%c0_11, %c0_12], %35 {strides = array<i32>} : memref<8x32xf32, #tpu.memory_space<vmem>>, vector<8x32xf32>,
    %c0_13 = arith.constant 0 : index
    %c0_14 = arith.constant 0 : index
    %c0_15 = arith.constant 0 : index
    %37 = vector.load %arg3[%c0_13, %c0_14, %c0_15] : memref<1x32x32xbf16, #tpu.memory_space<vmem>>, vector<1x32x32xbf16>
    %38 = vector.shape_cast %37 : vector<1x32x32xbf16> to vector<32x32xbf16>
    %cst_16 = arith.constant dense<0.000000e+00> : vector<8x32xf32>
    %39 = tpu.matmul %34, %38, %cst_16 {dimension_numbers = #tpu.dot_dimension_numbers<[1], [0], [0], [1], [0, 0, 1, 1], [], []>} : vector<8x32xbf16>, vector<32x32xbf16>, vector<8x32xf32> -> vector<8x32xf32>
    %c0_17 = arith.constant 0 : index
    %c0_18 = arith.constant 0 : index
    %c0_19 = arith.constant 0 : index
    %40 = vector.load %arg6[%c0_17, %c0_18, %c0_19] : memref<1x1x32xf32, #tpu.memory_space<vmem>>, vector<1x1x32xf32>
    %41 = vector.shape_cast %40 : vector<1x1x32xf32> to vector<1x32xf32>
    %42 = vector.broadcast %41 : vector<1x32xf32> to vector<8x32xf32>
    %43 = arith.addf %39, %42 : vector<8x32xf32>
    %c0_20 = arith.constant 0 : index
    %c0_21 = arith.constant 0 : index
    %c0_22 = arith.constant 0 : index
    %44 = vector.load %arg4[%c0_20, %c0_21, %c0_22] : memref<1x32x32xbf16, #tpu.memory_space<vmem>>, vector<1x32x32xbf16>
    %45 = vector.shape_cast %44 : vector<1x32x32xbf16> to vector<32x32xbf16>
    %cst_23 = arith.constant dense<0.000000e+00> : vector<8x32xf32>
    %46 = tpu.matmul %34, %45, %cst_23 {dimension_numbers = #tpu.dot_dimension_numbers<[1], [0], [0], [1], [0, 0, 1, 1], [], []>} : vector<8x32xbf16>, vector<32x32xbf16>, vector<8x32xf32> -> vector<8x32xf32>
    %c0_24 = arith.constant 0 : index
    %c0_25 = arith.constant 0 : index
    %c0_26 = arith.constant 0 : index
    %47 = vector.load %arg7[%c0_24, %c0_25, %c0_26] : memref<1x1x32xf32, #tpu.memory_space<vmem>>, vector<1x1x32xf32>
    %48 = vector.shape_cast %47 : vector<1x1x32xf32> to vector<1x32xf32>
    %49 = vector.broadcast %48 : vector<1x32xf32> to vector<8x32xf32>
    %50 = arith.addf %46, %49 : vector<8x32xf32>
    %c0_27 = arith.constant 0 : index
    %c0_28 = arith.constant 0 : index
    %c0_29 = arith.constant 0 : index
    %51 = vector.load %arg5[%c0_27, %c0_28, %c0_29] : memref<1x32x32xbf16, #tpu.memory_space<vmem>>, vector<1x32x32xbf16>
    %52 = vector.shape_cast %51 : vector<1x32x32xbf16> to vector<32x32xbf16>
    %cst_30 = arith.constant dense<0.000000e+00> : vector<8x32xf32>
    %53 = tpu.matmul %34, %52, %cst_30 {dimension_numbers = #tpu.dot_dimension_numbers<[1], [0], [0], [1], [0, 0, 1, 1], [], []>} : vector<8x32xbf16>, vector<32x32xbf16>, vector<8x32xf32> -> vector<8x32xf32>
    %c0_31 = arith.constant 0 : index
    %c0_32 = arith.constant 0 : index
    %c0_33 = arith.constant 0 : index
    %54 = vector.load %arg8[%c0_31, %c0_32, %c0_33] : memref<1x1x32xf32, #tpu.memory_space<vmem>>, vector<1x1x32xf32>
    %55 = vector.shape_cast %54 : vector<1x1x32xf32> to vector<1x32xf32>
    %56 = vector.broadcast %55 : vector<1x32xf32> to vector<8x32xf32>
    %57 = arith.addf %53, %56 : vector<8x32xf32>
    %58 = vector.extract_strided_slice %43 {offsets = [0, 0], sizes = [8, 8], strides = [1, 1]} : vector<8x32xf32> to vector<8x8xf32>
    %59 = arith.truncf %58 : vector<8x8xf32> to vector<8x8xbf16>
    %60 = vector.extract_strided_slice %50 {offsets = [0, 0], sizes = [8, 8], strides = [1, 1]} : vector<8x32xf32> to vector<8x8xf32>
    %61 = arith.truncf %60 : vector<8x8xf32> to vector<8x8xbf16>
    %62 = vector.extract_strided_slice %57 {offsets = [0, 0], sizes = [8, 8], strides = [1, 1]} : vector<8x32xf32> to vector<8x8xf32>
    %63 = arith.truncf %62 : vector<8x8xf32> to vector<8x8xbf16>
    %cst_34 = arith.constant dense<0.000000e+00> : vector<8x8xf32>
    %64 = tpu.matmul %59, %61, %cst_34 {dimension_numbers = #tpu.dot_dimension_numbers<[1], [1], [0], [0], [0, 0, 1, 0], [], []>} : vector<8x8xbf16>, vector<8x8xbf16>, vector<8x8xf32> -> vector<8x8xf32>
    %cst_35 = arith.constant dense<0xFF800000> : vector<8xf32>
    %65 = vector.multi_reduction <maximumf>, %64, %cst_35 [1] : vector<8x8xf32> to vector<8xf32>
    %66 = vector.shape_cast %65 : vector<8xf32> to vector<8x1xf32>
    %67 = vector.broadcast %66 : vector<8x1xf32> to vector<8x8xf32>
    %68 = arith.subf %64, %67 : vector<8x8xf32>
    %69 = math.exp %68 : vector<8x8xf32>
    %cst_36 = arith.constant dense<0.000000e+00> : vector<8xf32>
    %70 = vector.multi_reduction <add>, %69, %cst_36 [1] : vector<8x8xf32> to vector<8xf32>
    %71 = vector.shape_cast %70 : vector<8xf32> to vector<8x1xf32>
    %72 = tpu.reciprocal %71 {approx = true} : vector<8x1xf32> -> vector<8x1xf32>
    %73 = vector.broadcast %72 : vector<8x1xf32> to vector<8x8xf32>
    %74 = arith.mulf %69, %73 : vector<8x8xf32>
    %75 = arith.truncf %74 : vector<8x8xf32> to vector<8x8xbf16>
    %cst_37 = arith.constant dense<0.000000e+00> : vector<8x8xf32>
    %76 = tpu.matmul %75, %63, %cst_37 {dimension_numbers = #tpu.dot_dimension_numbers<[1], [0], [0], [1], [0, 0, 1, 1], [], []>} : vector<8x8xbf16>, vector<8x8xbf16>, vector<8x8xf32> -> vector<8x8xf32>
    %77 = arith.truncf %76 : vector<8x8xf32> to vector<8x8xbf16>
    %78 = vector.extract_strided_slice %43 {offsets = [0, 8], sizes = [8, 8], strides = [1, 1]} : vector<8x32xf32> to vector<8x8xf32>
    %79 = arith.truncf %78 : vector<8x8xf32> to vector<8x8xbf16>
    %80 = vector.extract_strided_slice %50 {offsets = [0, 8], sizes = [8, 8], strides = [1, 1]} : vector<8x32xf32> to vector<8x8xf32>
    %81 = arith.truncf %80 : vector<8x8xf32> to vector<8x8xbf16>
    %82 = vector.extract_strided_slice %57 {offsets = [0, 8], sizes = [8, 8], strides = [1, 1]} : vector<8x32xf32> to vector<8x8xf32>
    %83 = arith.truncf %82 : vector<8x8xf32> to vector<8x8xbf16>
    %cst_38 = arith.constant dense<0.000000e+00> : vector<8x8xf32>
    %84 = tpu.matmul %79, %81, %cst_38 {dimension_numbers = #tpu.dot_dimension_numbers<[1], [1], [0], [0], [0, 0, 1, 0], [], []>} : vector<8x8xbf16>, vector<8x8xbf16>, vector<8x8xf32> -> vector<8x8xf32>
    %cst_39 = arith.constant dense<0xFF800000> : vector<8xf32>
    %85 = vector.multi_reduction <maximumf>, %84, %cst_39 [1] : vector<8x8xf32> to vector<8xf32>
    %86 = vector.shape_cast %85 : vector<8xf32> to vector<8x1xf32>
    %87 = vector.broadcast %86 : vector<8x1xf32> to vector<8x8xf32>
    %88 = arith.subf %84, %87 : vector<8x8xf32>
    %89 = math.exp %88 : vector<8x8xf32>
    %cst_40 = arith.constant dense<0.000000e+00> : vector<8xf32>
    %90 = vector.multi_reduction <add>, %89, %cst_40 [1] : vector<8x8xf32> to vector<8xf32>
    %91 = vector.shape_cast %90 : vector<8xf32> to vector<8x1xf32>
    %92 = tpu.reciprocal %91 {approx = true} : vector<8x1xf32> -> vector<8x1xf32>
    %93 = vector.broadcast %92 : vector<8x1xf32> to vector<8x8xf32>
    %94 = arith.mulf %89, %93 : vector<8x8xf32>
    %95 = arith.truncf %94 : vector<8x8xf32> to vector<8x8xbf16>
    %cst_41 = arith.constant dense<0.000000e+00> : vector<8x8xf32>
    %96 = tpu.matmul %95, %83, %cst_41 {dimension_numbers = #tpu.dot_dimension_numbers<[1], [0], [0], [1], [0, 0, 1, 1], [], []>} : vector<8x8xbf16>, vector<8x8xbf16>, vector<8x8xf32> -> vector<8x8xf32>
    %97 = arith.truncf %96 : vector<8x8xf32> to vector<8x8xbf16>
    %98 = vector.extract_strided_slice %43 {offsets = [0, 16], sizes = [8, 8], strides = [1, 1]} : vector<8x32xf32> to vector<8x8xf32>
    %99 = arith.truncf %98 : vector<8x8xf32> to vector<8x8xbf16>
    %100 = vector.extract_strided_slice %50 {offsets = [0, 16], sizes = [8, 8], strides = [1, 1]} : vector<8x32xf32> to vector<8x8xf32>
    %101 = arith.truncf %100 : vector<8x8xf32> to vector<8x8xbf16>
    %102 = vector.extract_strided_slice %57 {offsets = [0, 16], sizes = [8, 8], strides = [1, 1]} : vector<8x32xf32> to vector<8x8xf32>
    %103 = arith.truncf %102 : vector<8x8xf32> to vector<8x8xbf16>
    %cst_42 = arith.constant dense<0.000000e+00> : vector<8x8xf32>
    %104 = tpu.matmul %99, %101, %cst_42 {dimension_numbers = #tpu.dot_dimension_numbers<[1], [1], [0], [0], [0, 0, 1, 0], [], []>} : vector<8x8xbf16>, vector<8x8xbf16>, vector<8x8xf32> -> vector<8x8xf32>
    %cst_43 = arith.constant dense<0xFF800000> : vector<8xf32>
    %105 = vector.multi_reduction <maximumf>, %104, %cst_43 [1] : vector<8x8xf32> to vector<8xf32>
    %106 = vector.shape_cast %105 : vector<8xf32> to vector<8x1xf32>
    %107 = vector.broadcast %106 : vector<8x1xf32> to vector<8x8xf32>
    %108 = arith.subf %104, %107 : vector<8x8xf32>
    %109 = math.exp %108 : vector<8x8xf32>
    %cst_44 = arith.constant dense<0.000000e+00> : vector<8xf32>
    %110 = vector.multi_reduction <add>, %109, %cst_44 [1] : vector<8x8xf32> to vector<8xf32>
    %111 = vector.shape_cast %110 : vector<8xf32> to vector<8x1xf32>
    %112 = tpu.reciprocal %111 {approx = true} : vector<8x1xf32> -> vector<8x1xf32>
    %113 = vector.broadcast %112 : vector<8x1xf32> to vector<8x8xf32>
    %114 = arith.mulf %109, %113 : vector<8x8xf32>
    %115 = arith.truncf %114 : vector<8x8xf32> to vector<8x8xbf16>
    %cst_45 = arith.constant dense<0.000000e+00> : vector<8x8xf32>
    %116 = tpu.matmul %115, %103, %cst_45 {dimension_numbers = #tpu.dot_dimension_numbers<[1], [0], [0], [1], [0, 0, 1, 1], [], []>} : vector<8x8xbf16>, vector<8x8xbf16>, vector<8x8xf32> -> vector<8x8xf32>
    %117 = arith.truncf %116 : vector<8x8xf32> to vector<8x8xbf16>
    %118 = vector.extract_strided_slice %43 {offsets = [0, 24], sizes = [8, 8], strides = [1, 1]} : vector<8x32xf32> to vector<8x8xf32>
    %119 = arith.truncf %118 : vector<8x8xf32> to vector<8x8xbf16>
    %120 = vector.extract_strided_slice %50 {offsets = [0, 24], sizes = [8, 8], strides = [1, 1]} : vector<8x32xf32> to vector<8x8xf32>
    %121 = arith.truncf %120 : vector<8x8xf32> to vector<8x8xbf16>
    %122 = vector.extract_strided_slice %57 {offsets = [0, 24], sizes = [8, 8], strides = [1, 1]} : vector<8x32xf32> to vector<8x8xf32>
    %123 = arith.truncf %122 : vector<8x8xf32> to vector<8x8xbf16>
    %cst_46 = arith.constant dense<0.000000e+00> : vector<8x8xf32>
    %124 = tpu.matmul %119, %121, %cst_46 {dimension_numbers = #tpu.dot_dimension_numbers<[1], [1], [0], [0], [0, 0, 1, 0], [], []>} : vector<8x8xbf16>, vector<8x8xbf16>, vector<8x8xf32> -> vector<8x8xf32>
    %cst_47 = arith.constant dense<0xFF800000> : vector<8xf32>
    %125 = vector.multi_reduction <maximumf>, %124, %cst_47 [1] : vector<8x8xf32> to vector<8xf32>
    %126 = vector.shape_cast %125 : vector<8xf32> to vector<8x1xf32>
    %127 = vector.broadcast %126 : vector<8x1xf32> to vector<8x8xf32>
    %128 = arith.subf %124, %127 : vector<8x8xf32>
    %129 = math.exp %128 : vector<8x8xf32>
    %cst_48 = arith.constant dense<0.000000e+00> : vector<8xf32>
    %130 = vector.multi_reduction <add>, %129, %cst_48 [1] : vector<8x8xf32> to vector<8xf32>
    %131 = vector.shape_cast %130 : vector<8xf32> to vector<8x1xf32>
    %132 = tpu.reciprocal %131 {approx = true} : vector<8x1xf32> -> vector<8x1xf32>
    %133 = vector.broadcast %132 : vector<8x1xf32> to vector<8x8xf32>
    %134 = arith.mulf %129, %133 : vector<8x8xf32>
    %135 = arith.truncf %134 : vector<8x8xf32> to vector<8x8xbf16>
    %cst_49 = arith.constant dense<0.000000e+00> : vector<8x8xf32>
    %136 = tpu.matmul %135, %123, %cst_49 {dimension_numbers = #tpu.dot_dimension_numbers<[1], [0], [0], [1], [0, 0, 1, 1], [], []>} : vector<8x8xbf16>, vector<8x8xbf16>, vector<8x8xf32> -> vector<8x8xf32>
    %137 = arith.truncf %136 : vector<8x8xf32> to vector<8x8xbf16>
    %138 = tpu.concatenate %77, %97, %117, %137 in 1 : vector<8x8xbf16>, vector<8x8xbf16>, vector<8x8xbf16>, vector<8x8xbf16> -> vector<8x32xbf16>
    %c0_50 = arith.constant 0 : index
    %c0_51 = arith.constant 0 : index
    %139 = vector.load %arg16[%c0_50, %c0_51] : memref<8x32xf32, #tpu.memory_space<vmem>>, vector<8x32xf32>
    %c0_52 = arith.constant 0 : index
    %c0_53 = arith.constant 0 : index
    %c0_54 = arith.constant 0 : index
    %140 = vector.load %arg9[%c0_52, %c0_53, %c0_54] : memref<1x32x32xbf16, #tpu.memory_space<vmem>>, vector<1x32x32xbf16>
    %141 = vector.shape_cast %140 : vector<1x32x32xbf16> to vector<32x32xbf16>
    %cst_55 = arith.constant dense<0.000000e+00> : vector<8x32xf32>
    %142 = tpu.matmul %138, %141, %cst_55 {dimension_numbers = #tpu.dot_dimension_numbers<[1], [0], [0], [1], [0, 0, 1, 1], [], []>} : vector<8x32xbf16>, vector<32x32xbf16>, vector<8x32xf32> -> vector<8x32xf32>
    %143 = arith.addf %139, %142 : vector<8x32xf32>
    %c0_56 = arith.constant 0 : index
    %c0_57 = arith.constant 0 : index
    %144 = vector.load %arg16[%c0_56, %c0_57] : memref<8x32xf32, #tpu.memory_space<vmem>>, vector<8x32xf32>
    tpu.vector_store %arg16[%c0_56, %c0_57], %143 {strides = array<i32>} : memref<8x32xf32, #tpu.memory_space<vmem>>, vector<8x32xf32>,
    %c0_58 = arith.constant 0 : index
    %c0_59 = arith.constant 0 : index
    %145 = vector.load %arg16[%c0_58, %c0_59] : memref<8x32xf32, #tpu.memory_space<vmem>>, vector<8x32xf32>
    %c0_60 = arith.constant 0 : index
    %c0_61 = arith.constant 0 : index
    %146 = vector.load %arg10[%c0_60, %c0_61] : memref<1x32xf32, #tpu.memory_space<vmem>>, vector<1x32xf32>
    %147 = vector.broadcast %146 : vector<1x32xf32> to vector<8x32xf32>
    %148 = arith.addf %145, %147 : vector<8x32xf32>
    %149 = vector.broadcast %6 : vector<1x32xf32> to vector<8x32xf32>
    %150 = arith.mulf %149, %148 : vector<8x32xf32>
    %151 = arith.addf %1, %150 : vector<8x32xf32>
    %cst_62 = arith.constant dense<0.000000e+00> : vector<8xf32>
    %152 = vector.multi_reduction <add>, %151, %cst_62 [1] : vector<8x32xf32> to vector<8xf32>
    %153 = vector.shape_cast %152 : vector<8xf32> to vector<8x1xf32>
    %cst_63 = arith.constant 3.200000e+01 : f32
    %154 = vector.broadcast %cst_63 : f32 to vector<8x1xf32>
    %155 = arith.divf %153, %154 : vector<8x1xf32>
    %156 = vector.broadcast %155 : vector<8x1xf32> to vector<8x32xf32>
    %157 = arith.subf %151, %156 : vector<8x32xf32>
    %158 = arith.mulf %157, %157 : vector<8x32xf32>
    %cst_64 = arith.constant dense<0.000000e+00> : vector<8xf32>
    %159 = vector.multi_reduction <add>, %158, %cst_64 [1] : vector<8x32xf32> to vector<8xf32>
    %160 = vector.shape_cast %159 : vector<8xf32> to vector<8x1xf32>
    %cst_65 = arith.constant 3.200000e+01 : f32
    %161 = vector.broadcast %cst_65 : f32 to vector<8x1xf32>
    %162 = arith.divf %160, %161 : vector<8x1xf32>
    %163 = vector.broadcast %155 : vector<8x1xf32> to vector<8x32xf32>
    %164 = arith.subf %151, %163 : vector<8x32xf32>
    %cst_66 = arith.constant 9.99999997E-7 : f32
    %165 = vector.broadcast %cst_66 : f32 to vector<8x1xf32>
    %166 = arith.addf %162, %165 : vector<8x1xf32>
    %167 = math.rsqrt %166 : vector<8x1xf32>
    %168 = vector.broadcast %167 : vector<8x1xf32> to vector<8x32xf32>
    %169 = arith.mulf %164, %168 : vector<8x32xf32>
    %cst_67 = arith.constant 1.000000e+00 : f32
    %170 = vector.broadcast %cst_67 : f32 to vector<1x32xf32>
    %171 = arith.addf %170, %8 : vector<1x32xf32>
    %172 = vector.broadcast %171 : vector<1x32xf32> to vector<8x32xf32>
    %173 = arith.mulf %169, %172 : vector<8x32xf32>
    %174 = vector.broadcast %7 : vector<1x32xf32> to vector<8x32xf32>
    %175 = arith.addf %173, %174 : vector<8x32xf32>
    %176 = arith.truncf %175 : vector<8x32xf32> to vector<8x32xbf16>
    %cst_68 = arith.constant 0.000000e+00 : f32
    %177 = vector.broadcast %cst_68 : f32 to vector<8x32xf32>
    %c0_69 = arith.constant 0 : index
    %c0_70 = arith.constant 0 : index
    %178 = vector.load %arg16[%c0_69, %c0_70] : memref<8x32xf32, #tpu.memory_space<vmem>>, vector<8x32xf32>
    tpu.vector_store %arg16[%c0_69, %c0_70], %177 {strides = array<i32>} : memref<8x32xf32, #tpu.memory_space<vmem>>, vector<8x32xf32>,
    %c0_71 = arith.constant 0 : index
    %c0_72 = arith.constant 0 : index
    %c0_73 = arith.constant 0 : index
    %179 = vector.load %arg11[%c0_71, %c0_72, %c0_73] : memref<1x32x128xbf16, #tpu.memory_space<vmem>>, vector<1x32x128xbf16>
    %180 = vector.shape_cast %179 : vector<1x32x128xbf16> to vector<32x128xbf16>
    %cst_74 = arith.constant dense<0.000000e+00> : vector<8x128xf32>
    %181 = tpu.matmul %176, %180, %cst_74 {dimension_numbers = #tpu.dot_dimension_numbers<[1], [0], [0], [1], [0, 0, 1, 1], [], []>} : vector<8x32xbf16>, vector<32x128xbf16>, vector<8x128xf32> -> vector<8x128xf32>
    %c0_75 = arith.constant 0 : index
    %c0_76 = arith.constant 0 : index
    %c0_77 = arith.constant 0 : index
    %182 = vector.load %arg12[%c0_75, %c0_76, %c0_77] : memref<1x1x128xf32, #tpu.memory_space<vmem>>, vector<1x1x128xf32>
    %183 = vector.shape_cast %182 : vector<1x1x128xf32> to vector<1x128xf32>
    %184 = vector.broadcast %183 : vector<1x128xf32> to vector<8x128xf32>
    %185 = arith.addf %181, %184 : vector<8x128xf32>
    %186 = arith.mulf %185, %185 : vector<8x128xf32>
    %187 = arith.mulf %185, %186 : vector<8x128xf32>
    %cst_78 = arith.constant 4.471500e-02 : f32
    %188 = vector.broadcast %cst_78 : f32 to vector<8x128xf32>
    %189 = arith.mulf %188, %187 : vector<8x128xf32>
    %190 = arith.addf %185, %189 : vector<8x128xf32>
    %cst_79 = arith.constant 0.797884583 : f32
    %191 = vector.broadcast %cst_79 : f32 to vector<8x128xf32>
    %192 = arith.mulf %191, %190 : vector<8x128xf32>
    %193 = math.tanh %192 : vector<8x128xf32>
    %cst_80 = arith.constant 1.000000e+00 : f32
    %194 = vector.broadcast %cst_80 : f32 to vector<8x128xf32>
    %195 = arith.addf %194, %193 : vector<8x128xf32>
    %cst_81 = arith.constant 5.000000e-01 : f32
    %196 = vector.broadcast %cst_81 : f32 to vector<8x128xf32>
    %197 = arith.mulf %196, %195 : vector<8x128xf32>
    %198 = arith.mulf %185, %197 : vector<8x128xf32>
    %c0_82 = arith.constant 0 : index
    %c0_83 = arith.constant 0 : index
    %199 = vector.load %arg16[%c0_82, %c0_83] : memref<8x32xf32, #tpu.memory_space<vmem>>, vector<8x32xf32>
    %200 = arith.truncf %198 : vector<8x128xf32> to vector<8x128xbf16>
    %c0_84 = arith.constant 0 : index
    %c0_85 = arith.constant 0 : index
    %c0_86 = arith.constant 0 : index
    %201 = vector.load %arg13[%c0_84, %c0_85, %c0_86] : memref<1x128x32xbf16, #tpu.memory_space<vmem>>, vector<1x128x32xbf16>
    %202 = vector.shape_cast %201 : vector<1x128x32xbf16> to vector<128x32xbf16>
    %cst_87 = arith.constant dense<0.000000e+00> : vector<8x32xf32>
    %203 = tpu.matmul %200, %202, %cst_87 {dimension_numbers = #tpu.dot_dimension_numbers<[1], [0], [0], [1], [0, 0, 1, 1], [], []>} : vector<8x128xbf16>, vector<128x32xbf16>, vector<8x32xf32> -> vector<8x32xf32>
    %204 = arith.addf %199, %203 : vector<8x32xf32>
    %c0_88 = arith.constant 0 : index
    %c0_89 = arith.constant 0 : index
    %205 = vector.load %arg16[%c0_88, %c0_89] : memref<8x32xf32, #tpu.memory_space<vmem>>, vector<8x32xf32>
    tpu.vector_store %arg16[%c0_88, %c0_89], %204 {strides = array<i32>} : memref<8x32xf32, #tpu.memory_space<vmem>>, vector<8x32xf32>,
    %c0_90 = arith.constant 0 : index
    %c0_91 = arith.constant 0 : index
    %206 = vector.load %arg16[%c0_90, %c0_91] : memref<8x32xf32, #tpu.memory_space<vmem>>, vector<8x32xf32>
    %c0_92 = arith.constant 0 : index
    %c0_93 = arith.constant 0 : index
    %207 = vector.load %arg14[%c0_92, %c0_93] : memref<1x32xf32, #tpu.memory_space<vmem>>, vector<1x32xf32>
    %208 = vector.broadcast %207 : vector<1x32xf32> to vector<8x32xf32>
    %209 = arith.addf %206, %208 : vector<8x32xf32>
    %210 = vector.broadcast %9 : vector<1x32xf32> to vector<8x32xf32>
    %211 = arith.mulf %210, %209 : vector<8x32xf32>
    %212 = arith.addf %151, %211 : vector<8x32xf32>
    %c0_94 = arith.constant 0 : index
    %c0_95 = arith.constant 0 : index
    %c0_96 = arith.constant 0 : index
    %213 = vector.load %arg15[%c0_94, %c0_95, %c0_96] : memref<1x8x32xf32, #tpu.memory_space<vmem>>, vector<1x8x32xf32>
    %214 = vector.shape_cast %213 : vector<1x8x32xf32> to vector<8x32xf32>
    %215 = vector.shape_cast %212 : vector<8x32xf32> to vector<1x8x32xf32>
    tpu.vector_store %arg15[%c0_94, %c0_95, %c0_96], %215 {strides = array<i32>} : memref<1x8x32xf32, #tpu.memory_space<vmem>>, vector<1x8x32xf32>,
    return
  }
  func.func @transform_0(%arg0: i32) -> (i32, i32, i32) {
    %c0_i32 = arith.constant 0 : i32
    %c0_i32_0 = arith.constant 0 : i32
    %c0_i32_1 = arith.constant 0 : i32
    return %arg0, %c0_i32, %c0_i32_0 : i32, i32, i32
  }
  func.func @transform_1(%arg0: i32) -> (i32, i32, i32) {
    %c0_i32 = arith.constant 0 : i32
    %c0_i32_0 = arith.constant 0 : i32
    %c0_i32_1 = arith.constant 0 : i32
    return %arg0, %c0_i32, %c0_i32_0 : i32, i32, i32
  }
  func.func @transform_2(%arg0: i32) -> (i32, i32, i32) {
    %c0_i32 = arith.constant 0 : i32
    %c0_i32_0 = arith.constant 0 : i32
    %c0_i32_1 = arith.constant 0 : i32
    %c0_i32_2 = arith.constant 0 : i32
    return %c0_i32, %c0_i32_0, %c0_i32_1 : i32, i32, i32
  }
  func.func @transform_3(%arg0: i32) -> (i32, i32, i32) {
    %c0_i32 = arith.constant 0 : i32
    %c0_i32_0 = arith.constant 0 : i32
    %c0_i32_1 = arith.constant 0 : i32
    %c0_i32_2 = arith.constant 0 : i32
    return %c0_i32, %c0_i32_0, %c0_i32_1 : i32, i32, i32
  }
  func.func @transform_4(%arg0: i32) -> (i32, i32, i32) {
    %c0_i32 = arith.constant 0 : i32
    %c0_i32_0 = arith.constant 0 : i32
    %c0_i32_1 = arith.constant 0 : i32
    %c0_i32_2 = arith.constant 0 : i32
    return %c0_i32, %c0_i32_0, %c0_i32_1 : i32, i32, i32
  }
  func.func @transform_5(%arg0: i32) -> (i32, i32, i32) {
    %c0_i32 = arith.constant 0 : i32
    %c0_i32_0 = arith.constant 0 : i32
    %c0_i32_1 = arith.constant 0 : i32
    %c0_i32_2 = arith.constant 0 : i32
    return %c0_i32, %c0_i32_0, %c0_i32_1 : i32, i32, i32
  }
  func.func @transform_6(%arg0: i32) -> (i32, i32, i32) {
    %c0_i32 = arith.constant 0 : i32
    %c0_i32_0 = arith.constant 0 : i32
    %c0_i32_1 = arith.constant 0 : i32
    %c0_i32_2 = arith.constant 0 : i32
    return %c0_i32, %c0_i32_0, %c0_i32_1 : i32, i32, i32
  }
  func.func @transform_7(%arg0: i32) -> (i32, i32, i32) {
    %c0_i32 = arith.constant 0 : i32
    %c0_i32_0 = arith.constant 0 : i32
    %c0_i32_1 = arith.constant 0 : i32
    %c0_i32_2 = arith.constant 0 : i32
    return %c0_i32, %c0_i32_0, %c0_i32_1 : i32, i32, i32
  }
  func.func @transform_8(%arg0: i32) -> (i32, i32, i32) {
    %c0_i32 = arith.constant 0 : i32
    %c0_i32_0 = arith.constant 0 : i32
    %c0_i32_1 = arith.constant 0 : i32
    %c0_i32_2 = arith.constant 0 : i32
    return %c0_i32, %c0_i32_0, %c0_i32_1 : i32, i32, i32
  }
  func.func @transform_9(%arg0: i32) -> (i32, i32) {
    %c0_i32 = arith.constant 0 : i32
    %c0_i32_0 = arith.constant 0 : i32
    %c0_i32_1 = arith.constant 0 : i32
    return %c0_i32, %c0_i32_0 : i32, i32
  }
  func.func @transform_10(%arg0: i32) -> (i32, i32, i32) {
    %c0_i32 = arith.constant 0 : i32
    %c0_i32_0 = arith.constant 0 : i32
    %c0_i32_1 = arith.constant 0 : i32
    %c0_i32_2 = arith.constant 0 : i32
    return %c0_i32, %c0_i32_0, %c0_i32_1 : i32, i32, i32
  }
  func.func @transform_11(%arg0: i32) -> (i32, i32, i32) {
    %c0_i32 = arith.constant 0 : i32
    %c0_i32_0 = arith.constant 0 : i32
    %c0_i32_1 = arith.constant 0 : i32
    %c0_i32_2 = arith.constant 0 : i32
    return %c0_i32, %c0_i32_0, %c0_i32_1 : i32, i32, i32
  }
  func.func @transform_12(%arg0: i32) -> (i32, i32, i32) {
    %c0_i32 = arith.constant 0 : i32
    %c0_i32_0 = arith.constant 0 : i32
    %c0_i32_1 = arith.constant 0 : i32
    %c0_i32_2 = arith.constant 0 : i32
    return %c0_i32, %c0_i32_0, %c0_i32_1 : i32, i32, i32
  }
  func.func @transform_13(%arg0: i32) -> (i32, i32) {
    %c0_i32 = arith.constant 0 : i32
    %c0_i32_0 = arith.constant 0 : i32
    %c0_i32_1 = arith.constant 0 : i32
    return %c0_i32, %c0_i32_0 : i32, i32
  }
  func.func @transform_14(%arg0: i32) -> (i32, i32, i32) {
    %c0_i32 = arith.constant 0 : i32
    %c0_i32_0 = arith.constant 0 : i32
    %c0_i32_1 = arith.constant 0 : i32
    return %arg0, %c0_i32, %c0_i32_0 : i32, i32, i32
  }
}

</mosaic_0001>

<llo_original>
// kernel: tpu_custom_call.1
$region0: #{tpu_custom_call.1}
  #allocation0 [shape = 'u32[]', space=smem, size = 0x4, offset = 0x4, fixed_abs, tag = 'smem constant byte address 0x4 - core index']
  #allocation1 [shape = 'u32[72,128]{1,0:T(1,128)}', space=vmem, size = 0x9000, scoped, tag = 'internal scratch']
  #allocation2 [shape = 'f32[8,32]{1,0:T(8,128)}', space=vmem, size = 0x1000, scoped, tag = 'scratch operand']
  %s0 = inlined_call_operand.hbm [shape: f32[2,8,32], index: 0, kind: input, shape index: {}, may-alias: {0,14}]
  %s1 = inlined_call_operand.vmem [shape: f32[2,6,32], index: 1, kind: input, shape index: {}]
  %s2 = inlined_call_operand.vmem [shape: bf16[1,32,32], index: 2, kind: input, shape index: {}]
  %s3 = inlined_call_operand.vmem [shape: bf16[1,32,32], index: 3, kind: input, shape index: {}]
  %s4 = inlined_call_operand.vmem [shape: bf16[1,32,32], index: 4, kind: input, shape index: {}]
  %s5 = inlined_call_operand.vmem [shape: f32[1,1,32], index: 5, kind: input, shape index: {}]
  %s6 = inlined_call_operand.vmem [shape: f32[1,1,32], index: 6, kind: input, shape index: {}]
  %s7 = inlined_call_operand.vmem [shape: f32[1,1,32], index: 7, kind: input, shape index: {}]
  %s8 = inlined_call_operand.vmem [shape: bf16[1,32,32], index: 8, kind: input, shape index: {}]
  %s9 = inlined_call_operand.vmem [shape: f32[1,32], index: 9, kind: input, shape index: {}]
  %s10 = inlined_call_operand.vmem [shape: bf16[1,32,128], index: 10, kind: input, shape index: {}]
  %s11 = inlined_call_operand.vmem [shape: f32[1,1,128], index: 11, kind: input, shape index: {}]
  %s12 = inlined_call_operand.vmem [shape: bf16[1,128,32], index: 12, kind: input, shape index: {}]
  %s13 = inlined_call_operand.vmem [shape: f32[1,32], index: 13, kind: input, shape index: {}]
  %s14 = inlined_call_operand.hbm [shape: f32[2,8,32], index: 14, kind: output, shape index: {}, may-alias: {0,14}]
  %s15 = sld [smem:[#allocation0]]
  $region93: #{tpu_custom_call.1} parent=0
    _
  %s17 = ssub.s32 1, %s15
  %s18 = scalar_select 0, %s17, %s15
  $region1: #{tpu_custom_call.1} parent=0
    #allocation3 [shape = 'u8[8192]{0}', space=vmem, size = 0x2000, scoped, tag = 'input window, operand 0']
    #allocation4 [shape = 's32[2]{0}', space=sflag, size = 0x8, scoped, tag = 'scoped memory for tpu_custom_call.1']
    #allocation5 [shape = 's32[2]{0}', space=sflag, size = 0x8, scoped, tag = 'scoped memory for tpu_custom_call.1']
    #allocation6 [shape = 'u8[8192]{0}', space=vmem, size = 0x2000, scoped, tag = 'output window, operand 0']
    %19 = vsyncpa [#allocation4], 0
    %s20 = scalar_lea.sflag [#allocation4], 1
    %21 = vsyncpa %s20, 0
    %22 = vsyncpa [#allocation5], 0
    %s23 = scalar_lea.sflag [#allocation5], 1
    %24 = vsyncpa %s23, 0
    loop: start=0, step=1, limit=4
    $region2: #{tpu_custom_call.1} parent=1 // loop_pre_header
      _
    $region3: #{tpu_custom_call.1} parent=1 // loop_header
      %s26 = sphi 0, %s30
      %p27 = scmp.ge.s32.totalorder %s26, 4
      %s36 = sphi 0, %s38
      %s39 = sphi 0, %s36
      %s40 = sphi 0, %s39
      %s56 = sphi 0, %s40
      %s62 = sphi 0, %s64
      %s65 = sphi 0, %s62
      %s66 = sphi 0, %s65
      %s82 = sphi 0, %s66
      %s86 = sphi 0, %s86
      %s88 = sphi 0, %s86
      %s89 = sphi 0, %s88
      %s103 = sphi 0, %s89
      %s107 = sphi 0, %s107
      %s109 = sphi 0, %s107
      %s110 = sphi 0, %s109
      %s124 = sphi 0, %s110
      %s128 = sphi 0, %s128
      %s130 = sphi 0, %s128
      %s131 = sphi 0, %s130
      %s145 = sphi 0, %s131
      %s149 = sphi 0, %s149
      %s151 = sphi 0, %s149
      %s152 = sphi 0, %s151
      %s166 = sphi 0, %s152
      %s170 = sphi 0, %s170
      %s172 = sphi 0, %s170
      %s173 = sphi 0, %s172
      %s187 = sphi 0, %s173
      %s191 = sphi 0, %s191
      %s193 = sphi 0, %s191
      %s194 = sphi 0, %s193
      %s208 = sphi 0, %s194
      %s212 = sphi 0, %s212
      %s214 = sphi 0, %s212
      %s215 = sphi 0, %s214
      %s229 = sphi 0, %s215
      %s233 = sphi 0, %s233
      %s235 = sphi 0, %s233
      %s236 = sphi 0, %s235
      %s250 = sphi 0, %s236
      %s254 = sphi 0, %s254
      %s256 = sphi 0, %s254
      %s257 = sphi 0, %s256
      %s271 = sphi 0, %s257
      %s275 = sphi 0, %s275
      %s277 = sphi 0, %s275
      %s278 = sphi 0, %s277
      %s292 = sphi 0, %s278
      %s296 = sphi 0, %s296
      %s298 = sphi 0, %s296
      %s299 = sphi 0, %s298
      %s313 = sphi 0, %s299
      %s317 = sphi 0, %s317
      %s319 = sphi 0, %s317
      %s320 = sphi 0, %s319
      %s334 = sphi 0, %s320
      %s340 = sphi 0, %s342
      %s343 = sphi 0, %s340
      %s344 = sphi 0, %s343
      %s360 = sphi 0, %s344
    $region4: #{tpu_custom_call.1} parent=1 // loop_header_branch
      %29 = sbr.rel (%p27) target = $region8
    $region5: #{tpu_custom_call.1} parent=1 // loop_body
      %s31 = ssub.s32 %s26, 1
      %s32 = ssub.s32 %s26, 2
      %s33 = sadd.s32 %s26, 1
      %s34 = ssub.s32 %s26, %s33
      %p35 = scmp.eq.s32.totalorder %s34, 0
      %s37 = sadd.s32 %s36, 1
      %s38 = scalar_select %p35, %s36, %s37
      %p41 = pneg %p35
      %p42 = scmp.eq.s32.totalorder %s26, 1
      %p43 = por %p41, %p42
      %p44 = scmp.ne.s32.totalorder %s36, %s39
      %p45 = scmp.eq.s32.totalorder %s26, 0
      %p46 = por %p44, %p45
      %p47 = scmp.ne.s32.totalorder %s36, %s39
      %p48 = scmp.eq.s32.totalorder %s31, 1
      %p49 = por %p47, %p48
      %p50 = scmp.ne.s32.totalorder %s39, %s40
      %p51 = scmp.eq.s32.totalorder %s31, 0
      %p52 = por %p50, %p51
      %p53 = scmp.ne.s32.totalorder %s39, %s40
      %p54 = scmp.eq.s32.totalorder %s32, 1
      %p55 = por %p53, %p54
      %p57 = scmp.ne.s32.totalorder %s40, %s56
      %p58 = scmp.eq.s32.totalorder %s32, 0
      %p59 = por %p57, %p58
      %s60 = ssub.s32 %s26, %s33
      %p61 = scmp.eq.s32.totalorder %s60, 0
      %s63 = sadd.s32 %s62, 1
      %s64 = scalar_select %p61, %s62, %s63
      %p67 = pneg %p61
      %p68 = scmp.eq.s32.totalorder %s26, 1
      %p69 = por %p67, %p68
      %p70 = scmp.ne.s32.totalorder %s62, %s65
      %p71 = scmp.eq.s32.totalorder %s26, 0
      %p72 = por %p70, %p71
      %p73 = scmp.ne.s32.totalorder %s62, %s65
      %p74 = scmp.eq.s32.totalorder %s31, 1
      %p75 = por %p73, %p74
      %p76 = scmp.ne.s32.totalorder %s65, %s66
      %p77 = scmp.eq.s32.totalorder %s31, 0
      %p78 = por %p76, %p77
      %p79 = scmp.ne.s32.totalorder %s65, %s66
      %p80 = scmp.eq.s32.totalorder %s32, 1
      %p81 = por %p79, %p80
      %p83 = scmp.ne.s32.totalorder %s66, %s82
      %p84 = scmp.eq.s32.totalorder %s32, 0
      %p85 = por %p83, %p84
      %s87 = sadd.s32 %s86, 1
      %p90 = scmp.eq.s32.totalorder %s26, 1
      %p91 = scmp.ne.s32.totalorder %s86, %s88
      %p92 = scmp.eq.s32.totalorder %s26, 0
      %p93 = por %p91, %p92
      %p94 = scmp.ne.s32.totalorder %s86, %s88
      %p95 = scmp.eq.s32.totalorder %s31, 1
      %p96 = por %p94, %p95
      %p97 = scmp.ne.s32.totalorder %s88, %s89
      %p98 = scmp.eq.s32.totalorder %s31, 0
      %p99 = por %p97, %p98
      %p100 = scmp.ne.s32.totalorder %s88, %s89
      %p101 = scmp.eq.s32.totalorder %s32, 1
      %p102 = por %p100, %p101
      %p104 = scmp.ne.s32.totalorder %s89, %s103
      %p105 = scmp.eq.s32.totalorder %s32, 0
      %p106 = por %p104, %p105
      %s108 = sadd.s32 %s107, 1
      %p111 = scmp.eq.s32.totalorder %s26, 1
      %p112 = scmp.ne.s32.totalorder %s107, %s109
      %p113 = scmp.eq.s32.totalorder %s26, 0
      %p114 = por %p112, %p113
      %p115 = scmp.ne.s32.totalorder %s107, %s109
      %p116 = scmp.eq.s32.totalorder %s31, 1
      %p117 = por %p115, %p116
      %p118 = scmp.ne.s32.totalorder %s109, %s110
      %p119 = scmp.eq.s32.totalorder %s31, 0
      %p120 = por %p118, %p119
      %p121 = scmp.ne.s32.totalorder %s109, %s110
      %p122 = scmp.eq.s32.totalorder %s32, 1
      %p123 = por %p121, %p122
      %p125 = scmp.ne.s32.totalorder %s110, %s124
      %p126 = scmp.eq.s32.totalorder %s32, 0
      %p127 = por %p125, %p126
      %s129 = sadd.s32 %s128, 1
      %p132 = scmp.eq.s32.totalorder %s26, 1
      %p133 = scmp.ne.s32.totalorder %s128, %s130
      %p134 = scmp.eq.s32.totalorder %s26, 0
      %p135 = por %p133, %p134
      %p136 = scmp.ne.s32.totalorder %s128, %s130
      %p137 = scmp.eq.s32.totalorder %s31, 1
      %p138 = por %p136, %p137
      %p139 = scmp.ne.s32.totalorder %s130, %s131
      %p140 = scmp.eq.s32.totalorder %s31, 0
      %p141 = por %p139, %p140
      %p142 = scmp.ne.s32.totalorder %s130, %s131
      %p143 = scmp.eq.s32.totalorder %s32, 1
      %p144 = por %p142, %p143
      %p146 = scmp.ne.s32.totalorder %s131, %s145
      %p147 = scmp.eq.s32.totalorder %s32, 0
      %p148 = por %p146, %p147
      %s150 = sadd.s32 %s149, 1
      %p153 = scmp.eq.s32.totalorder %s26, 1
      %p154 = scmp.ne.s32.totalorder %s149, %s151
      %p155 = scmp.eq.s32.totalorder %s26, 0
      %p156 = por %p154, %p155
      %p157 = scmp.ne.s32.totalorder %s149, %s151
      %p158 = scmp.eq.s32.totalorder %s31, 1
      %p159 = por %p157, %p158
      %p160 = scmp.ne.s32.totalorder %s151, %s152
      %p161 = scmp.eq.s32.totalorder %s31, 0
      %p162 = por %p160, %p161
      %p163 = scmp.ne.s32.totalorder %s151, %s152
      %p164 = scmp.eq.s32.totalorder %s32, 1
      %p165 = por %p163, %p164
      %p167 = scmp.ne.s32.totalorder %s152, %s166
      %p168 = scmp.eq.s32.totalorder %s32, 0
      %p169 = por %p167, %p168
      %s171 = sadd.s32 %s170, 1
      %p174 = scmp.eq.s32.totalorder %s26, 1
      %p175 = scmp.ne.s32.totalorder %s170, %s172
      %p176 = scmp.eq.s32.totalorder %s26, 0
      %p177 = por %p175, %p176
      %p178 = scmp.ne.s32.totalorder %s170, %s172
      %p179 = scmp.eq.s32.totalorder %s31, 1
      %p180 = por %p178, %p179
      %p181 = scmp.ne.s32.totalorder %s172, %s173
      %p182 = scmp.eq.s32.totalorder %s31, 0
      %p183 = por %p181, %p182
      %p184 = scmp.ne.s32.totalorder %s172, %s173
      %p185 = scmp.eq.s32.totalorder %s32, 1
      %p186 = por %p184, %p185
      %p188 = scmp.ne.s32.totalorder %s173, %s187
      %p189 = scmp.eq.s32.totalorder %s32, 0
      %p190 = por %p188, %p189
      %s192 = sadd.s32 %s191, 1
      %p195 = scmp.eq.s32.totalorder %s26, 1
      %p196 = scmp.ne.s32.totalorder %s191, %s193
      %p197 = scmp.eq.s32.totalorder %s26, 0
      %p198 = por %p196, %p197
      %p199 = scmp.ne.s32.totalorder %s191, %s193
      %p200 = scmp.eq.s32.totalorder %s31, 1
      %p201 = por %p199, %p200
      %p202 = scmp.ne.s32.totalorder %s193, %s194
      %p203 = scmp.eq.s32.totalorder %s31, 0
      %p204 = por %p202, %p203
      %p205 = scmp.ne.s32.totalorder %s193, %s194
      %p206 = scmp.eq.s32.totalorder %s32, 1
      %p207 = por %p205, %p206
      %p209 = scmp.ne.s32.totalorder %s194, %s208
      %p210 = scmp.eq.s32.totalorder %s32, 0
      %p211 = por %p209, %p210
      %s213 = sadd.s32 %s212, 1
      %p216 = scmp.eq.s32.totalorder %s26, 1
      %p217 = scmp.ne.s32.totalorder %s212, %s214
      %p218 = scmp.eq.s32.totalorder %s26, 0
      %p219 = por %p217, %p218
      %p220 = scmp.ne.s32.totalorder %s212, %s214
      %p221 = scmp.eq.s32.totalorder %s31, 1
      %p222 = por %p220, %p221
      %p223 = scmp.ne.s32.totalorder %s214, %s215
      %p224 = scmp.eq.s32.totalorder %s31, 0
      %p225 = por %p223, %p224
      %p226 = scmp.ne.s32.totalorder %s214, %s215
      %p227 = scmp.eq.s32.totalorder %s32, 1
      %p228 = por %p226, %p227
      %p230 = scmp.ne.s32.totalorder %s215, %s229
      %p231 = scmp.eq.s32.totalorder %s32, 0
      %p232 = por %p230, %p231
      %s234 = sadd.s32 %s233, 1
      %p237 = scmp.eq.s32.totalorder %s26, 1
      %p238 = scmp.ne.s32.totalorder %s233, %s235
      %p239 = scmp.eq.s32.totalorder %s26, 0
      %p240 = por %p238, %p239
      %p241 = scmp.ne.s32.totalorder %s233, %s235
      %p242 = scmp.eq.s32.totalorder %s31, 1
      %p243 = por %p241, %p242
      %p244 = scmp.ne.s32.totalorder %s235, %s236
      %p245 = scmp.eq.s32.totalorder %s31, 0
      %p246 = por %p244, %p245
      %p247 = scmp.ne.s32.totalorder %s235, %s236
      %p248 = scmp.eq.s32.totalorder %s32, 1
      %p249 = por %p247, %p248
      %p251 = scmp.ne.s32.totalorder %s236, %s250
      %p252 = scmp.eq.s32.totalorder %s32, 0
      %p253 = por %p251, %p252
      %s255 = sadd.s32 %s254, 1
      %p258 = scmp.eq.s32.totalorder %s26, 1
      %p259 = scmp.ne.s32.totalorder %s254, %s256
      %p260 = scmp.eq.s32.totalorder %s26, 0
      %p261 = por %p259, %p260
      %p262 = scmp.ne.s32.totalorder %s254, %s256
      %p263 = scmp.eq.s32.totalorder %s31, 1
      %p264 = por %p262, %p263
      %p265 = scmp.ne.s32.totalorder %s256, %s257
      %p266 = scmp.eq.s32.totalorder %s31, 0
      %p267 = por %p265, %p266
      %p268 = scmp.ne.s32.totalorder %s256, %s257
      %p269 = scmp.eq.s32.totalorder %s32, 1
      %p270 = por %p268, %p269
      %p272 = scmp.ne.s32.totalorder %s257, %s271
      %p273 = scmp.eq.s32.totalorder %s32, 0
      %p274 = por %p272, %p273
      %s276 = sadd.s32 %s275, 1
      %p279 = scmp.eq.s32.totalorder %s26, 1
      %p280 = scmp.ne.s32.totalorder %s275, %s277
      %p281 = scmp.eq.s32.totalorder %s26, 0
      %p282 = por %p280, %p281
      %p283 = scmp.ne.s32.totalorder %s275, %s277
      %p284 = scmp.eq.s32.totalorder %s31, 1
      %p285 = por %p283, %p284
      %p286 = scmp.ne.s32.totalorder %s277, %s278
      %p287 = scmp.eq.s32.totalorder %s31, 0
      %p288 = por %p286, %p287
      %p289 = scmp.ne.s32.totalorder %s277, %s278
      %p290 = scmp.eq.s32.totalorder %s32, 1
      %p291 = por %p289, %p290
      %p293 = scmp.ne.s32.totalorder %s278, %s292
      %p294 = scmp.eq.s32.totalorder %s32, 0
      %p295 = por %p293, %p294
      %s297 = sadd.s32 %s296, 1
      %p300 = scmp.eq.s32.totalorder %s26, 1
      %p301 = scmp.ne.s32.totalorder %s296, %s298
      %p302 = scmp.eq.s32.totalorder %s26, 0
      %p303 = por %p301, %p302
      %p304 = scmp.ne.s32.totalorder %s296, %s298
      %p305 = scmp.eq.s32.totalorder %s31, 1
      %p306 = por %p304, %p305
      %p307 = scmp.ne.s32.totalorder %s298, %s299
      %p308 = scmp.eq.s32.totalorder %s31, 0
      %p309 = por %p307, %p308
      %p310 = scmp.ne.s32.totalorder %s298, %s299
      %p311 = scmp.eq.s32.totalorder %s32, 1
      %p312 = por %p310, %p311
      %p314 = scmp.ne.s32.totalorder %s299, %s313
      %p315 = scmp.eq.s32.totalorder %s32, 0
      %p316 = por %p314, %p315
      %s318 = sadd.s32 %s317, 1
      %p321 = scmp.eq.s32.totalorder %s26, 1
      %p322 = scmp.ne.s32.totalorder %s317, %s319
      %p323 = scmp.eq.s32.totalorder %s26, 0
      %p324 = por %p322, %p323
      %p325 = scmp.ne.s32.totalorder %s317, %s319
      %p326 = scmp.eq.s32.totalorder %s31, 1
      %p327 = por %p325, %p326
      %p328 = scmp.ne.s32.totalorder %s319, %s320
      %p329 = scmp.eq.s32.totalorder %s31, 0
      %p330 = por %p328, %p329
      %p331 = scmp.ne.s32.totalorder %s319, %s320
      %p332 = scmp.eq.s32.totalorder %s32, 1
      %p333 = por %p331, %p332
      %p335 = scmp.ne.s32.totalorder %s320, %s334
      %p336 = scmp.eq.s32.totalorder %s32, 0
      %p337 = por %p335, %p336
      %s338 = ssub.s32 %s26, %s33
      %p339 = scmp.eq.s32.totalorder %s338, 0
      %s341 = sadd.s32 %s340, 1
      %s342 = scalar_select %p339, %s340, %s341
      %p345 = pneg %p339
      %p346 = scmp.eq.s32.totalorder %s26, 1
      %p347 = por %p345, %p346
      %p348 = scmp.ne.s32.totalorder %s340, %s343
      %p349 = scmp.eq.s32.totalorder %s26, 0
      %p350 = por %p348, %p349
      %p351 = scmp.ne.s32.totalorder %s340, %s343
      %p352 = scmp.eq.s32.totalorder %s31, 1
      %p353 = por %p351, %p352
      %p354 = scmp.ne.s32.totalorder %s343, %s344
      %p355 = scmp.eq.s32.totalorder %s31, 0
      %p356 = por %p354, %p355
      %p357 = scmp.ne.s32.totalorder %s343, %s344
      %p358 = scmp.eq.s32.totalorder %s32, 1
      %p359 = por %p357, %p358
      %p361 = scmp.ne.s32.totalorder %s344, %s360
      %p362 = scmp.eq.s32.totalorder %s32, 0
      %p363 = por %p361, %p362
      %p364 = scmp.le.s32.totalorder 1, %s26
      %p365 = scmp.lt.s32.totalorder %s26, 3
      %p366 = pnand %p364, %p365
      %p367 = pneg %p366
      // Predicated region
      $region9: #{tpu_custom_call.1} parent=5 // pred_check
        _
      $region10: #{tpu_custom_call.1} parent=5 // pred_check_branch
        %369 = sbr.rel (%p366) target = $region12
      $region11: #{tpu_custom_call.1} parent=5 // pred_region
        %s370 = ssub.s32 %s26, 1
        // Predicated region
        $region13: #{tpu_custom_call.1} parent=11 // pred_check
          %p371 = pneg %p99
        $region14: #{tpu_custom_call.1} parent=11 // pred_check_branch
          %373 = sbr.rel (%p371) target = $region16
        $region15: #{tpu_custom_call.1} parent=11 // pred_region
          _
        $region16: #{tpu_custom_call.1} parent=11 // pred_fallthru
          _
        // Predicated region
        $region17: #{tpu_custom_call.1} parent=11 // pred_check
          %p374 = pneg %p120
        $region18: #{tpu_custom_call.1} parent=11 // pred_check_branch
          %376 = sbr.rel (%p374) target = $region20
        $region19: #{tpu_custom_call.1} parent=11 // pred_region
          _
        $region20: #{tpu_custom_call.1} parent=11 // pred_fallthru
          _
        // Predicated region
        $region21: #{tpu_custom_call.1} parent=11 // pred_check
          %p377 = pneg %p141
        $region22: #{tpu_custom_call.1} parent=11 // pred_check_branch
          %379 = sbr.rel (%p377) target = $region24
        $region23: #{tpu_custom_call.1} parent=11 // pred_region
          _
        $region24: #{tpu_custom_call.1} parent=11 // pred_fallthru
          _
        // Predicated region
        $region25: #{tpu_custom_call.1} parent=11 // pred_check
          %p380 = pneg %p162
        $region26: #{tpu_custom_call.1} parent=11 // pred_check_branch
          %382 = sbr.rel (%p380) target = $region28
        $region27: #{tpu_custom_call.1} parent=11 // pred_region
          _
        $region28: #{tpu_custom_call.1} parent=11 // pred_fallthru
          _
        // Predicated region
        $region29: #{tpu_custom_call.1} parent=11 // pred_check
          %p383 = pneg %p183
        $region30: #{tpu_custom_call.1} parent=11 // pred_check_branch
          %385 = sbr.rel (%p383) target = $region32
        $region31: #{tpu_custom_call.1} parent=11 // pred_region
          _
        $region32: #{tpu_custom_call.1} parent=11 // pred_fallthru
          _
        // Predicated region
        $region33: #{tpu_custom_call.1} parent=11 // pred_check
          %p386 = pneg %p204
        $region34: #{tpu_custom_call.1} parent=11 // pred_check_branch
          %388 = sbr.rel (%p386) target = $region36
        $region35: #{tpu_custom_call.1} parent=11 // pred_region
          _
        $region36: #{tpu_custom_call.1} parent=11 // pred_fallthru
          _
        // Predicated region
        $region37: #{tpu_custom_call.1} parent=11 // pred_check
          %p389 = pneg %p225
        $region38: #{tpu_custom_call.1} parent=11 // pred_check_branch
          %391 = sbr.rel (%p389) target = $region40
        $region39: #{tpu_custom_call.1} parent=11 // pred_region
          _
        $region40: #{tpu_custom_call.1} parent=11 // pred_fallthru
          _
        // Predicated region
        $region41: #{tpu_custom_call.1} parent=11 // pred_check
          %p392 = pneg %p246
        $region42: #{tpu_custom_call.1} parent=11 // pred_check_branch
          %394 = sbr.rel (%p392) target = $region44
        $region43: #{tpu_custom_call.1} parent=11 // pred_region
          _
        $region44: #{tpu_custom_call.1} parent=11 // pred_fallthru
          _
        // Predicated region
        $region45: #{tpu_custom_call.1} parent=11 // pred_check
          %p395 = pneg %p267
        $region46: #{tpu_custom_call.1} parent=11 // pred_check_branch
          %397 = sbr.rel (%p395) target = $region48
        $region47: #{tpu_custom_call.1} parent=11 // pred_region
          _
        $region48: #{tpu_custom_call.1} parent=11 // pred_fallthru
          _
        // Predicated region
        $region49: #{tpu_custom_call.1} parent=11 // pred_check
          %p398 = pneg %p288
        $region50: #{tpu_custom_call.1} parent=11 // pred_check_branch
          %400 = sbr.rel (%p398) target = $region52
        $region51: #{tpu_custom_call.1} parent=11 // pred_region
          _
        $region52: #{tpu_custom_call.1} parent=11 // pred_fallthru
          _
        // Predicated region
        $region53: #{tpu_custom_call.1} parent=11 // pred_check
          %p401 = pneg %p309
        $region54: #{tpu_custom_call.1} parent=11 // pred_check_branch
          %403 = sbr.rel (%p401) target = $region56
        $region55: #{tpu_custom_call.1} parent=11 // pred_region
          _
        $region56: #{tpu_custom_call.1} parent=11 // pred_fallthru
          _
        // Predicated region
        $region57: #{tpu_custom_call.1} parent=11 // pred_check
          %p404 = pneg %p330
        $region58: #{tpu_custom_call.1} parent=11 // pred_check_branch
          %406 = sbr.rel (%p404) target = $region60
        $region59: #{tpu_custom_call.1} parent=11 // pred_region
          _
        $region60: #{tpu_custom_call.1} parent=11 // pred_fallthru
          _
      $region12: #{tpu_custom_call.1} parent=5 // pred_fallthru
        _
      %p407 = scmp.lt.s32.totalorder %s26, 2
      // Predicated region
      $region61: #{tpu_custom_call.1} parent=5 // pred_check
        %p408 = pneg %p407
      $region62: #{tpu_custom_call.1} parent=5 // pred_check_branch
        %410 = sbr.rel (%p408) target = $region64
      $region63: #{tpu_custom_call.1} parent=5 // pred_region
        // Predicated region
        $region65: #{tpu_custom_call.1} parent=63 // pred_check
          %p411 = pneg %p46
        $region66: #{tpu_custom_call.1} parent=63 // pred_check_branch
          %413 = sbr.rel (%p411) target = $region68
        $region67: #{tpu_custom_call.1} parent=63 // pred_region
          %s414 = sand.u32 %s36, 1
          %s415 = scalar_lea.sflag [#allocation4], %s414
          %s416 = sand.u32 %s36, 1
          %s417 = smul.addr %s416, 8
          %s418 = scalar_lea.vmem [#allocation3], %s417
          %420 = vsyncadd %s415, 0
          %s421 = smul.addr %s26, 8
          %s422 = scalar_lea.hbm %s0, %s421
          %s424 = sshll.u32 %s422, 4
          %s425 = int_to_ptr.hbm [resolvable:$true] %s424
          %s426 = sshll.u32 %s418, 4
          %s427 = int_to_ptr.vmem [resolvable:$true] %s426
          %429 = dma.hbm_to_vmem [thread:$0]  %s425, 128, %s427, %s415
        $region68: #{tpu_custom_call.1} parent=63 // pred_fallthru
          _
        // Predicated region
        $region69: #{tpu_custom_call.1} parent=63 // pred_check
          %p430 = pneg %p72
        $region70: #{tpu_custom_call.1} parent=63 // pred_check_branch
          %432 = sbr.rel (%p430) target = $region72
        $region71: #{tpu_custom_call.1} parent=63 // pred_region
          %p433 = scmp.lt.s32.totalorder %s26, 1
          %s434 = scalar_select %p433, %s26, 1
          %s435 = smul.addr %s434, 8
          %s436 = scalar_lea.vmem %s1, %s435
        $region72: #{tpu_custom_call.1} parent=63 // pred_fallthru
          _
      $region64: #{tpu_custom_call.1} parent=5 // pred_fallthru
        _
      %p437 = scmp.le.s32.totalorder 1, %s26
      %p438 = scmp.lt.s32.totalorder %s26, 3
      %p439 = pnand %p437, %p438
      %p440 = pneg %p439
      // Predicated region
      $region73: #{tpu_custom_call.1} parent=5 // pred_check
        _
      $region74: #{tpu_custom_call.1} parent=5 // pred_check_branch
        %442 = sbr.rel (%p439) target = $region76
      $region75: #{tpu_custom_call.1} parent=5 // pred_region
        %s443 = ssub.s32 %s26, 1
        %s444 = sand.u32 %s39, 1
        %s445 = scalar_lea.sflag [#allocation4], %s444
        %s446 = sand.u32 %s39, 1
        %s447 = smul.addr %s446, 8
        %s448 = scalar_lea.vmem [#allocation3], %s447
        // Predicated region
        $region77: #{tpu_custom_call.1} parent=75 // pred_check
          %p449 = pneg %p52
        $region78: #{tpu_custom_call.1} parent=75 // pred_check_branch
          %451 = sbr.rel (%p449) target = $region80
        $region79: #{tpu_custom_call.1} parent=75 // pred_region
          %453 = dma.done %s445, 128
        $region80: #{tpu_custom_call.1} parent=75 // pred_fallthru
          _
        %s454 = sand.u32 %s39, 1
        %s455 = scalar_lea.sflag [#allocation4], %s454
        %s456 = sand.u32 %s39, 1
        %s457 = smul.addr %s456, 8
        %s458 = scalar_lea.vmem [#allocation3], %s457
        %p459 = pneg %p52
        %p460 = pneg %p49
        %p461 = scmp.lt.s32.totalorder %s31, 1
        %s462 = scalar_select %p461, %s31, 1
        %s463 = smul.addr %s462, 8
        %s464 = scalar_lea.vmem %s1, %s463
        %p465 = pneg %p78
        %p466 = pneg %p75
        %p467 = pneg %p99
        %p468 = pneg %p96
        %p469 = pneg %p120
        %p470 = pneg %p117
        %p471 = pneg %p141
        %p472 = pneg %p138
        %p473 = pneg %p162
        %p474 = pneg %p159
        %p475 = pneg %p183
        %p476 = pneg %p180
        %p477 = pneg %p204
        %p478 = pneg %p201
        %p479 = pneg %p225
        %p480 = pneg %p222
        %p481 = pneg %p246
        %p482 = pneg %p243
        %p483 = pneg %p267
        %p484 = pneg %p264
        %p485 = pneg %p288
        %p486 = pneg %p285
        %p487 = pneg %p309
        %p488 = pneg %p306
        %p489 = pneg %p330
        %p490 = pneg %p327
        %p491 = pneg %p356
        %p492 = pneg %p353
        %s493 = sand.u32 %s343, 1
        %s494 = scalar_lea.sflag [#allocation5], %s493
        %s495 = sand.u32 %s343, 1
        %s496 = smul.addr %s495, 8
        %s497 = scalar_lea.vmem [#allocation6], %s496
        %p498 = scmp.lt.s32.totalorder %s31, 1
        %s499 = scalar_select %p498, %s31, 1
        %s500 = smul.addr %s499, 8
        %s501 = scalar_lea.vmem %s1, %s500
        %v503 = vld [vmem:[%s448] sm:$0xff]
        %v504 = vld [vmem:[%s501] sm:$0x3f]
        %vm505 = vcmask 261120
        %v506 = vsel %vm505, %v503, 0.0
        %507 = vadd.xlane.f32.xlu0 %v506
        %v508 = vpop.xlane.xlu0 %507
        %v509 = vrcp.pop 32.0
        %v510 = vmul.f32 32.0, %v509
        %v511 = vsub.f32 1.0, %v510
        %v512 = vmul.f32 %v509, %v511
        %v513 = vadd.f32 %v509, %v512
        %vm514 = vweird.f32 %v509
        %v515 = vsel %vm514, %v509, %v513
        %v516 = vmul.f32 %v508, %v515
        %v517 = vsub.f32 %v503, %v516
        %v518 = vmul.f32 %v517, %v517
        %v519 = vsel %vm505, %v518, 0.0
        %520 = vadd.xlane.f32.xlu0 %v519
        %v521 = vpop.xlane.xlu0 %520
        %v522 = vmul.f32 %v521, %v515
        %v523 = vadd.f32 %v522, 1e-06
        %v524 = vrsqrt.pop %v523
        %v525 = vmul.f32 %v524, %v523
        %v526 = vmul.f32 %v525, %v524
        %v527 = vmul.f32 0.5, %v526
        %v528 = vsub.f32 1.5, %v527
        %v529 = vmul.f32 %v524, %v528
        %vm530 = vweird.f32 %v523
        %vm531 = vweird.f32 %v524
        %vm532 = vmor %vm530, %vm531
        %v533 = vsel %vm532, %v524, %v529
        %v534 = vmul.f32 %v517, %v533
        %v535 = vadd.f32 %v504, 1.0
        %v536 = vperm.slane %v535, 1
        %v537 = vmul.f32 %v534, %v536
        %v538 = vperm.slane %v504, 0
        %v539 = vadd.f32 %v537, %v538
        %v540 = vpack.c.bf16 %v539, %v539
        %541 = vst.msk [vmem:[#allocation2] sm:$0xff] %vm505, 0.0
        %v542 = vld [vmem:[%s2] sm:$0xf]
        %v543 = vld [vmem:[%s2 + $0x4] sm:$0xf]
        %v544 = vld [vmem:[%s2 + $0x8] sm:$0xf]
        %v545 = vld [vmem:[%s2 + $0xc] sm:$0xf]
        %v546 = vld [vmem:[%s5] sm:$0x1]
        %v548 = vperm.slane %v546, 0
        %v554 = vunpack.c.l.b16 %v542
        %v555 = vunpack.c.l.b16 %v543
        %v556 = vunpack.c.l.b16 %v544
        %v557 = vunpack.c.l.b16 %v545
        %v558 = vpack.c.b16 %v555, %v554
        %v559 = vpack.c.b16 %v557, %v556
        %v563 = vsel %vm505, %v540, 0
        %565 = vmatpush.bf16.msra.mxu0 0
        %566 = vmatpush.bf16.msra.mxu0 0
        %567 = vmatpush.bf16.msra.mxu0 0
        %568 = vmatpush.bf16.msra.mxu0 0
        %569 = vmatpush.bf16.msra.mxu0 0
        %570 = vmatpush.bf16.msra.mxu0 0
        %571 = vmatpush.bf16.msra.mxu0 %v559
        %572 = vmatpush.bf16.msra.mxu0 %v558
        %573 = vmatmul.bf16.gmra.mxu0 %v563
        %v574 = vpop.f32.mrf.mxu0
        %v575 = vadd.f32 %v548, %v574
        %v576 = vpop.f32.mrf.mxu0
        %577 = vdwg.mxu0
        %v578 = vld [vmem:[%s3] sm:$0xf]
        %v579 = vld [vmem:[%s3 + $0x4] sm:$0xf]
        %v580 = vld [vmem:[%s3 + $0x8] sm:$0xf]
        %v581 = vld [vmem:[%s3 + $0xc] sm:$0xf]
        %v582 = vld [vmem:[%s6] sm:$0x1]
        %v584 = vperm.slane %v582, 0
        %v590 = vunpack.c.l.b16 %v578
        %v591 = vunpack.c.l.b16 %v579
        %v592 = vunpack.c.l.b16 %v580
        %v593 = vunpack.c.l.b16 %v581
        %v594 = vpack.c.b16 %v591, %v590
        %v595 = vpack.c.b16 %v593, %v592
        %598 = vmatpush.bf16.msra.mxu0 0
        %599 = vmatpush.bf16.msra.mxu0 0
        %600 = vmatpush.bf16.msra.mxu0 0
        %601 = vmatpush.bf16.msra.mxu0 0
        %602 = vmatpush.bf16.msra.mxu0 0
        %603 = vmatpush.bf16.msra.mxu0 0
        %604 = vmatpush.bf16.msra.mxu0 %v595
        %605 = vmatpush.bf16.msra.mxu0 %v594
        %606 = vmatmul.bf16.gmra.mxu0 %v563
        %v607 = vpop.f32.mrf.mxu0
        %v608 = vadd.f32 %v584, %v607
        %v609 = vpop.f32.mrf.mxu0
        %610 = vdwg.mxu0
        %v611 = vld [vmem:[%s4] sm:$0xf]
        %v612 = vld [vmem:[%s4 + $0x4] sm:$0xf]
        %v613 = vld [vmem:[%s4 + $0x8] sm:$0xf]
        %v614 = vld [vmem:[%s4 + $0xc] sm:$0xf]
        %v615 = vld [vmem:[%s7] sm:$0x1]
        %v617 = vperm.slane %v615, 0
        %v623 = vunpack.c.l.b16 %v611
        %v624 = vunpack.c.l.b16 %v612
        %v625 = vunpack.c.l.b16 %v613
        %v626 = vunpack.c.l.b16 %v614
        %v627 = vpack.c.b16 %v624, %v623
        %v628 = vpack.c.b16 %v626, %v625
        %631 = vmatpush.bf16.msra.mxu0 0
        %632 = vmatpush.bf16.msra.mxu0 0
        %633 = vmatpush.bf16.msra.mxu0 0
        %634 = vmatpush.bf16.msra.mxu0 0
        %635 = vmatpush.bf16.msra.mxu0 0
        %636 = vmatpush.bf16.msra.mxu0 0
        %637 = vmatpush.bf16.msra.mxu0 %v628
        %638 = vmatpush.bf16.msra.mxu0 %v627
        %639 = vmatmul.bf16.gmra.mxu0 %v563
        %v640 = vpop.f32.mrf.mxu0
        %v641 = vadd.f32 %v617, %v640
        %v642 = vpop.f32.mrf.mxu0
        %643 = vdwg.mxu0
        %v644 = vpack.c.bf16 %v575, %v575
        %v645 = vpack.c.bf16 %v608, %v608
        %v646 = vpack.c.bf16 %v641, %v641
        %vm647 = vcmask 64512
        %v649 = vsel %vm647, %v644, 0
        %v652 = vsel %vm647, %v645, 0
        %654 = vmatpush.bf16.xpose.msra.mxu0 0
        %655 = vmatpush.bf16.xpose.msra.mxu0 0
        %656 = vmatpush.bf16.xpose.msra.mxu0 0
        %657 = vmatpush.bf16.xpose.msra.mxu0 0
        %658 = vmatpush.bf16.xpose.msra.mxu0 0
        %659 = vmatpush.bf16.xpose.msra.mxu0 0
        %660 = vmatpush.bf16.xpose.msra.mxu0 0
        %661 = vmatpush.bf16.xpose.msra.mxu0 %v652
        %662 = vmatmul.bf16.gmra.mxu0 %v649
        %v663 = vpop.f32.mrf.mxu0
        %v664 = vadd.f32 0.0, %v663
        %v665 = vpop.f32.mrf.mxu0
        %666 = vdwg.mxu0
        %v667 = vsel %vm647, %v664, -inf
        %668 = vmax.xlane.f32.xlu0 %v667
        %v669 = vpop.xlane.xlu0 %668
        %v670 = vsub.f32 %v664, %v669
        %v671 = vmul.f32 %v670, 1.442695
        %v672 = vpow.pop %v671
        %v673 = vsel %vm647, %v672, 0.0
        %674 = vadd.xlane.f32.xlu0 %v673
        %v675 = vpop.xlane.xlu0 %674
        %v676 = vrcp.pop %v675
        %v677 = vmul.f32 %v672, %v676
        %v678 = vpack.c.bf16 %v677, %v677
        %v680 = vsel %vm647, %v678, 0
        %vm682 = vcmask 1043456
        %v684 = vsel %vm682, %v646, 0
        %686 = vmatpush.bf16.msra.mxu0 0
        %687 = vmatpush.bf16.msra.mxu0 0
        %688 = vmatpush.bf16.msra.mxu0 0
        %689 = vmatpush.bf16.msra.mxu0 0
        %690 = vmatpush.bf16.msra.mxu0 0
        %691 = vmatpush.bf16.msra.mxu0 0
        %692 = vmatpush.bf16.msra.mxu0 0
        %693 = vmatpush.bf16.msra.mxu0 %v684
        %694 = vmatmul.bf16.gmra.mxu0 %v680
        %v695 = vpop.f32.mrf.mxu0
        %v696 = vadd.f32 0.0, %v695
        %v697 = vpop.f32.mrf.mxu0
        %698 = vdwg.mxu0
        %v699 = vpack.c.bf16 %v696, %v696
        %701 = vrot.lane.b32.xlu0 %v644, 120
        %v702 = vpop.permute.xlu0 %701
        %704 = vrot.lane.b32.xlu0 %v645, 120
        %v705 = vpop.permute.xlu0 %704
        %v707 = vsel %vm647, %v702, 0
        %v710 = vsel %vm647, %v705, 0
        %712 = vmatpush.bf16.xpose.msra.mxu0 0
        %713 = vmatpush.bf16.xpose.msra.mxu0 0
        %714 = vmatpush.bf16.xpose.msra.mxu0 0
        %715 = vmatpush.bf16.xpose.msra.mxu0 0
        %716 = vmatpush.bf16.xpose.msra.mxu0 0
        %717 = vmatpush.bf16.xpose.msra.mxu0 0
        %718 = vmatpush.bf16.xpose.msra.mxu0 0
        %719 = vmatpush.bf16.xpose.msra.mxu0 %v710
        %720 = vmatmul.bf16.gmra.mxu0 %v707
        %v721 = vpop.f32.mrf.mxu0
        %v722 = vadd.f32 0.0, %v721
        %v723 = vpop.f32.mrf.mxu0
        %724 = vdwg.mxu0
        %v725 = vsel %vm647, %v722, -inf
        %726 = vmax.xlane.f32.xlu0 %v725
        %v727 = vpop.xlane.xlu0 %726
        %v728 = vsub.f32 %v722, %v727
        %v729 = vmul.f32 %v728, 1.442695
        %v730 = vpow.pop %v729
        %v731 = vsel %vm647, %v730, 0.0
        %732 = vadd.xlane.f32.xlu0 %v731
        %v733 = vpop.xlane.xlu0 %732
        %v734 = vrcp.pop %v733
        %v735 = vmul.f32 %v730, %v734
        %v736 = vpack.c.bf16 %v735, %v735
        %738 = vrot.lane.b32.xlu0 %v646, 120
        %v739 = vpop.permute.xlu0 %738
        %v741 = vsel %vm647, %v736, 0
        %v744 = vsel %vm682, %v739, 0
        %746 = vmatpush.bf16.msra.mxu0 0
        %747 = vmatpush.bf16.msra.mxu0 0
        %748 = vmatpush.bf16.msra.mxu0 0
        %749 = vmatpush.bf16.msra.mxu0 0
        %750 = vmatpush.bf16.msra.mxu0 0
        %751 = vmatpush.bf16.msra.mxu0 0
        %752 = vmatpush.bf16.msra.mxu0 0
        %753 = vmatpush.bf16.msra.mxu0 %v744
        %754 = vmatmul.bf16.gmra.mxu0 %v741
        %v755 = vpop.f32.mrf.mxu0
        %v756 = vadd.f32 0.0, %v755
        %v757 = vpop.f32.mrf.mxu0
        %758 = vdwg.mxu0
        %v759 = vpack.c.bf16 %v756, %v756
        %760 = vrot.lane.b32.xlu0 %v644, 112
        %v761 = vpop.permute.xlu0 %760
        %762 = vrot.lane.b32.xlu0 %v645, 112
        %v763 = vpop.permute.xlu0 %762
        %v765 = vsel %vm647, %v761, 0
        %v768 = vsel %vm647, %v763, 0
        %770 = vmatpush.bf16.xpose.msra.mxu0 0
        %771 = vmatpush.bf16.xpose.msra.mxu0 0
        %772 = vmatpush.bf16.xpose.msra.mxu0 0
        %773 = vmatpush.bf16.xpose.msra.mxu0 0
        %774 = vmatpush.bf16.xpose.msra.mxu0 0
        %775 = vmatpush.bf16.xpose.msra.mxu0 0
        %776 = vmatpush.bf16.xpose.msra.mxu0 0
        %777 = vmatpush.bf16.xpose.msra.mxu0 %v768
        %778 = vmatmul.bf16.gmra.mxu0 %v765
        %v779 = vpop.f32.mrf.mxu0
        %v780 = vadd.f32 0.0, %v779
        %v781 = vpop.f32.mrf.mxu0
        %782 = vdwg.mxu0
        %v783 = vsel %vm647, %v780, -inf
        %784 = vmax.xlane.f32.xlu0 %v783
        %v785 = vpop.xlane.xlu0 %784
        %v786 = vsub.f32 %v780, %v785
        %v787 = vmul.f32 %v786, 1.442695
        %v788 = vpow.pop %v787
        %v789 = vsel %vm647, %v788, 0.0
        %790 = vadd.xlane.f32.xlu0 %v789
        %v791 = vpop.xlane.xlu0 %790
        %v792 = vrcp.pop %v791
        %v793 = vmul.f32 %v788, %v792
        %v794 = vpack.c.bf16 %v793, %v793
        %795 = vrot.lane.b32.xlu0 %v646, 112
        %v796 = vpop.permute.xlu0 %795
        %v798 = vsel %vm647, %v794, 0
        %v801 = vsel %vm682, %v796, 0
        %803 = vmatpush.bf16.msra.mxu0 0
        %804 = vmatpush.bf16.msra.mxu0 0
        %805 = vmatpush.bf16.msra.mxu0 0
        %806 = vmatpush.bf16.msra.mxu0 0
        %807 = vmatpush.bf16.msra.mxu0 0
        %808 = vmatpush.bf16.msra.mxu0 0
        %809 = vmatpush.bf16.msra.mxu0 0
        %810 = vmatpush.bf16.msra.mxu0 %v801
        %811 = vmatmul.bf16.gmra.mxu0 %v798
        %v812 = vpop.f32.mrf.mxu0
        %v813 = vadd.f32 0.0, %v812
        %v814 = vpop.f32.mrf.mxu0
        %815 = vdwg.mxu0
        %v816 = vpack.c.bf16 %v813, %v813
        %817 = vrot.lane.b32.xlu0 %v644, 104
        %v818 = vpop.permute.xlu0 %817
        %819 = vrot.lane.b32.xlu0 %v645, 104
        %v820 = vpop.permute.xlu0 %819
        %v822 = vsel %vm647, %v818, 0
        %v825 = vsel %vm647, %v820, 0
        %827 = vmatpush.bf16.xpose.msra.mxu0 0
        %828 = vmatpush.bf16.xpose.msra.mxu0 0
        %829 = vmatpush.bf16.xpose.msra.mxu0 0
        %830 = vmatpush.bf16.xpose.msra.mxu0 0
        %831 = vmatpush.bf16.xpose.msra.mxu0 0
        %832 = vmatpush.bf16.xpose.msra.mxu0 0
        %833 = vmatpush.bf16.xpose.msra.mxu0 0
        %834 = vmatpush.bf16.xpose.msra.mxu0 %v825
        %835 = vmatmul.bf16.gmra.mxu0 %v822
        %v836 = vpop.f32.mrf.mxu0
        %v837 = vadd.f32 0.0, %v836
        %v838 = vpop.f32.mrf.mxu0
        %839 = vdwg.mxu0
        %v840 = vsel %vm647, %v837, -inf
        %841 = vmax.xlane.f32.xlu0 %v840
        %v842 = vpop.xlane.xlu0 %841
        %v843 = vsub.f32 %v837, %v842
        %v844 = vmul.f32 %v843, 1.442695
        %v845 = vpow.pop %v844
        %v846 = vsel %vm647, %v845, 0.0
        %847 = vadd.xlane.f32.xlu0 %v846
        %v848 = vpop.xlane.xlu0 %847
        %v849 = vrcp.pop %v848
        %v850 = vmul.f32 %v845, %v849
        %v851 = vpack.c.bf16 %v850, %v850
        %852 = vrot.lane.b32.xlu0 %v646, 104
        %v853 = vpop.permute.xlu0 %852
        %v855 = vsel %vm647, %v851, 0
        %v858 = vsel %vm682, %v853, 0
        %860 = vmatpush.bf16.msra.mxu0 0
        %861 = vmatpush.bf16.msra.mxu0 0
        %862 = vmatpush.bf16.msra.mxu0 0
        %863 = vmatpush.bf16.msra.mxu0 0
        %864 = vmatpush.bf16.msra.mxu0 0
        %865 = vmatpush.bf16.msra.mxu0 0
        %866 = vmatpush.bf16.msra.mxu0 0
        %867 = vmatpush.bf16.msra.mxu0 %v858
        %868 = vmatmul.bf16.gmra.mxu0 %v855
        %v869 = vpop.f32.mrf.mxu0
        %v870 = vadd.f32 0.0, %v869
        %v871 = vpop.f32.mrf.mxu0
        %872 = vdwg.mxu0
        %v873 = vpack.c.bf16 %v870, %v870
        %v875 = vunpack.c.l.b16 %v759
        %v876 = vpack.c.b16 %v875, %v875
        %877 = vrot.lane.b32.xlu0 %v876, 8
        %v878 = vpop.permute.xlu0 %877
        %v880 = vunpack.c.l.b16 %v816
        %v881 = vpack.c.b16 %v880, %v880
        %882 = vrot.lane.b32.xlu0 %v881, 16
        %v883 = vpop.permute.xlu0 %882
        %v885 = vunpack.c.l.b16 %v873
        %v886 = vpack.c.b16 %v885, %v885
        %887 = vrot.lane.b32.xlu0 %v886, 24
        %v888 = vpop.permute.xlu0 %887
        %v891 = vsel %vm647, %v699, %v878
        %vm892 = vcmask 130048
        %v894 = vsel %vm892, %v891, %v883
        %vm895 = vcmask 195584
        %v897 = vsel %vm895, %v894, %v888
        %v898 = vld [vmem:[#allocation2] sm:$0xff]
        %v899 = vld [vmem:[%s8] sm:$0xf]
        %v900 = vld [vmem:[%s8 + $0x4] sm:$0xf]
        %v901 = vld [vmem:[%s8 + $0x8] sm:$0xf]
        %v902 = vld [vmem:[%s8 + $0xc] sm:$0xf]
        %v907 = vunpack.c.l.b16 %v899
        %v908 = vunpack.c.l.b16 %v900
        %v909 = vunpack.c.l.b16 %v901
        %v910 = vunpack.c.l.b16 %v902
        %v911 = vpack.c.b16 %v908, %v907
        %v912 = vpack.c.b16 %v910, %v909
        %v915 = vsel %vm505, %v897, 0
        %917 = vmatpush.bf16.msra.mxu0 0
        %918 = vmatpush.bf16.msra.mxu0 0
        %919 = vmatpush.bf16.msra.mxu0 0
        %920 = vmatpush.bf16.msra.mxu0 0
        %921 = vmatpush.bf16.msra.mxu0 0
        %922 = vmatpush.bf16.msra.mxu0 0
        %923 = vmatpush.bf16.msra.mxu0 %v912
        %924 = vmatpush.bf16.msra.mxu0 %v911
        %925 = vmatmul.bf16.gmra.mxu0 %v915
        %v926 = vpop.f32.mrf.mxu0
        %v927 = vadd.f32 0.0, %v926
        %v928 = vpop.f32.mrf.mxu0
        %929 = vdwg.mxu0
        %v930 = vadd.f32 %v898, %v927
        %931 = vst.msk [vmem:[#allocation2] sm:$0xff] %vm505, %v930
        %v932 = vld [vmem:[#allocation2] sm:$0xff]
        %v933 = vld [vmem:[%s9] sm:$0x1]
        %v935 = vperm.slane %v933, 0
        %v937 = vadd.f32 %v932, %v935
        %v938 = vperm.slane %v504, 2
        %v939 = vmul.f32 %v938, %v937
        %v940 = vadd.f32 %v503, %v939
        %v941 = vsel %vm505, %v940, 0.0
        %942 = vadd.xlane.f32.xlu0 %v941
        %v943 = vpop.xlane.xlu0 %942
        %v944 = vmul.f32 %v943, %v515
        %v945 = vsub.f32 %v940, %v944
        %v946 = vmul.f32 %v945, %v945
        %v947 = vsel %vm505, %v946, 0.0
        %948 = vadd.xlane.f32.xlu0 %v947
        %v949 = vpop.xlane.xlu0 %948
        %v950 = vmul.f32 %v949, %v515
        %v951 = vadd.f32 %v950, 1e-06
        %v952 = vrsqrt.pop %v951
        %v953 = vmul.f32 %v952, %v951
        %v954 = vmul.f32 %v953, %v952
        %v955 = vmul.f32 0.5, %v954
        %v956 = vsub.f32 1.5, %v955
        %v957 = vmul.f32 %v952, %v956
        %vm958 = vweird.f32 %v951
        %vm959 = vweird.f32 %v952
        %vm960 = vmor %vm958, %vm959
        %v961 = vsel %vm960, %v952, %v957
        %v962 = vmul.f32 %v945, %v961
        %v963 = vperm.slane %v535, 4
        %v964 = vmul.f32 %v962, %v963
        %v965 = vperm.slane %v504, 3
        %v966 = vadd.f32 %v964, %v965
        %v967 = vpack.c.bf16 %v966, %v966
        %968 = vst.msk [vmem:[#allocation2] sm:$0xff] %vm505, 0.0
        %v969 = vld [vmem:[%s10] sm:$0xf]
        %v970 = vld [vmem:[%s10 + $0x4] sm:$0xf]
        %v971 = vld [vmem:[%s10 + $0x8] sm:$0xf]
        %v972 = vld [vmem:[%s10 + $0xc] sm:$0xf]
        %v973 = vld [vmem:[%s11] sm:$0x1]
        %v975 = vperm.slane %v973, 0
        %v981 = vunpack.c.l.b16 %v969
        %v982 = vunpack.c.l.b16 %v970
        %v983 = vunpack.c.l.b16 %v971
        %v984 = vunpack.c.l.b16 %v972
        %v985 = vpack.c.b16 %v982, %v981
        %v986 = vpack.c.b16 %v984, %v983
        %v990 = vsel %vm505, %v967, 0
        %992 = vmatpush.bf16.msra.mxu0 0
        %993 = vmatpush.bf16.msra.mxu0 0
        %994 = vmatpush.bf16.msra.mxu0 0
        %995 = vmatpush.bf16.msra.mxu0 0
        %996 = vmatpush.bf16.msra.mxu0 0
        %997 = vmatpush.bf16.msra.mxu0 0
        %998 = vmatpush.bf16.msra.mxu0 %v986
        %999 = vmatpush.bf16.msra.mxu0 %v985
        %1000 = vmatmul.bf16.gmra.mxu0 %v990
        %v1001 = vpop.f32.mrf.mxu0
        %v1002 = vadd.f32 %v975, %v1001
        %v1003 = vpop.f32.mrf.mxu0
        %1004 = vdwg.mxu0
        %v1005 = vmul.f32 %v1002, %v1002
        %v1006 = vmul.f32 %v1002, %v1005
        %v1007 = vmul.f32 %v1006, 0.044715
        %v1008 = vadd.f32 %v1002, %v1007
        %v1009 = vmul.f32 %v1008, 0.7978846
        %v1010 = vtanh.pop %v1009
        %v1011 = vadd.f32 %v1010, 1.0
        %v1012 = vmul.f32 %v1011, 0.5
        %v1013 = vmul.f32 %v1002, %v1012
        %v1014 = vld [vmem:[#allocation2] sm:$0xff]
        %v1015 = vpack.c.bf16 %v1013, %v1013
        %v1016 = vld [vmem:[%s12] sm:$0xf]
        %v1017 = vld [vmem:[%s12 + $0x4] sm:$0xf]
        %v1018 = vld [vmem:[%s12 + $0x8] sm:$0xf]
        %v1019 = vld [vmem:[%s12 + $0xc] sm:$0xf]
        %v1020 = vld [vmem:[%s12 + $0x10] sm:$0xf]
        %v1021 = vld [vmem:[%s12 + $0x14] sm:$0xf]
        %v1022 = vld [vmem:[%s12 + $0x18] sm:$0xf]
        %v1023 = vld [vmem:[%s12 + $0x1c] sm:$0xf]
        %v1024 = vld [vmem:[%s12 + $0x20] sm:$0xf]
        %v1025 = vld [vmem:[%s12 + $0x24] sm:$0xf]
        %v1026 = vld [vmem:[%s12 + $0x28] sm:$0xf]
        %v1027 = vld [vmem:[%s12 + $0x2c] sm:$0xf]
        %v1028 = vld [vmem:[%s12 + $0x30] sm:$0xf]
        %v1029 = vld [vmem:[%s12 + $0x34] sm:$0xf]
        %v1030 = vld [vmem:[%s12 + $0x38] sm:$0xf]
        %v1031 = vld [vmem:[%s12 + $0x3c] sm:$0xf]
        %v1048 = vunpack.c.l.b16 %v1016
        %v1049 = vunpack.c.l.b16 %v1017
        %v1050 = vunpack.c.l.b16 %v1018
        %v1051 = vunpack.c.l.b16 %v1019
        %v1052 = vunpack.c.l.b16 %v1020
        %v1053 = vunpack.c.l.b16 %v1021
        %v1054 = vunpack.c.l.b16 %v1022
        %v1055 = vunpack.c.l.b16 %v1023
        %v1056 = vunpack.c.l.b16 %v1024
        %v1057 = vunpack.c.l.b16 %v1025
        %v1058 = vunpack.c.l.b16 %v1026
        %v1059 = vunpack.c.l.b16 %v1027
        %v1060 = vunpack.c.l.b16 %v1028
        %v1061 = vunpack.c.l.b16 %v1029
        %v1062 = vunpack.c.l.b16 %v1030
        %v1063 = vunpack.c.l.b16 %v1031
        %v1064 = vpack.c.b16 %v1049, %v1048
        %v1065 = vpack.c.b16 %v1051, %v1050
        %v1066 = vpack.c.b16 %v1053, %v1052
        %v1067 = vpack.c.b16 %v1055, %v1054
        %v1068 = vpack.c.b16 %v1057, %v1056
        %v1069 = vpack.c.b16 %v1059, %v1058
        %v1070 = vpack.c.b16 %v1061, %v1060
        %v1071 = vpack.c.b16 %v1063, %v1062
        %1080 = vmatpush.bf16.msra.mxu0 %v1071
        %1081 = vmatpush.bf16.msra.mxu0 %v1070
        %1082 = vmatpush.bf16.msra.mxu0 %v1069
        %1083 = vmatpush.bf16.msra.mxu0 %v1068
        %1084 = vmatpush.bf16.msra.mxu0 %v1067
        %1085 = vmatpush.bf16.msra.mxu0 %v1066
        %1086 = vmatpush.bf16.msra.mxu0 %v1065
        %1087 = vmatpush.bf16.msra.mxu0 %v1064
        %1088 = vmatmul.bf16.gmra.mxu0 %v1015
        %v1089 = vpop.f32.mrf.mxu0
        %v1090 = vadd.f32 0.0, %v1089
        %v1091 = vpop.f32.mrf.mxu0
        %1092 = vdwg.mxu0
        %v1093 = vadd.f32 %v1014, %v1090
        %1094 = vst.msk [vmem:[#allocation2] sm:$0xff] %vm505, %v1093
        %v1095 = vld [vmem:[#allocation2] sm:$0xff]
        %v1096 = vld [vmem:[%s13] sm:$0x1]
        %v1098 = vperm.slane %v1096, 0
        %v1100 = vadd.f32 %v1095, %v1098
        %v1101 = vperm.slane %v504, 5
        %v1102 = vmul.f32 %v1101, %v1100
        %v1103 = vadd.f32 %v940, %v1102
        %1104 = vst.msk [vmem:[%s497] sm:$0xff] %vm505, %v1103
        %s1105 = sand.u32 %s343, 1
        %s1106 = scalar_lea.sflag [#allocation5], %s1105
        %s1107 = sand.u32 %s343, 1
        %s1108 = smul.addr %s1107, 8
        %s1109 = scalar_lea.vmem [#allocation6], %s1108
        // Predicated region
        $region81: #{tpu_custom_call.1} parent=75 // pred_check
          %p1110 = pneg %p353
        $region82: #{tpu_custom_call.1} parent=75 // pred_check_branch
          %1112 = sbr.rel (%p1110) target = $region84
        $region83: #{tpu_custom_call.1} parent=75 // pred_region
          %1114 = vsyncadd %s1106, 0
          %s1115 = smul.addr %s31, 8
          %s1116 = scalar_lea.hbm %s14, %s1115
          %s1118 = sshll.u32 %s1109, 4
          %s1119 = int_to_ptr.vmem [resolvable:$true] %s1118
          %s1120 = sshll.u32 %s1116, 4
          %s1121 = int_to_ptr.hbm [resolvable:$true] %s1120
          %1123 = dma.vmem_to_hbm [thread:$0]  %s1119, 128, %s1121, %s1106
        $region84: #{tpu_custom_call.1} parent=75 // pred_fallthru
          _
      $region76: #{tpu_custom_call.1} parent=5 // pred_fallthru
        _
      %p1124 = scmp.le.s32.totalorder 2, %s26
      // Predicated region
      $region85: #{tpu_custom_call.1} parent=5 // pred_check
        %p1125 = pneg %p1124
      $region86: #{tpu_custom_call.1} parent=5 // pred_check_branch
        %1127 = sbr.rel (%p1125) target = $region88
      $region87: #{tpu_custom_call.1} parent=5 // pred_region
        %s1128 = ssub.s32 %s26, 2
        // Predicated region
        $region89: #{tpu_custom_call.1} parent=87 // pred_check
          %p1129 = pneg %p359
        $region90: #{tpu_custom_call.1} parent=87 // pred_check_branch
          %1131 = sbr.rel (%p1129) target = $region92
        $region91: #{tpu_custom_call.1} parent=87 // pred_region
          %s1132 = sand.u32 %s344, 1
          %s1133 = scalar_lea.sflag [#allocation5], %s1132
          %s1134 = sand.u32 %s344, 1
          %s1135 = smul.addr %s1134, 8
          %s1136 = scalar_lea.vmem [#allocation6], %s1135
          %1138 = dma.done %s1133, 128
        $region92: #{tpu_custom_call.1} parent=87 // pred_fallthru
          _
      $region88: #{tpu_custom_call.1} parent=5 // pred_fallthru
        _
    $region6: #{tpu_custom_call.1} parent=1 // loop_footer
      %s30 = sadd.s32 1, %s26
    $region7: #{tpu_custom_call.1} parent=1 // loop_footer_branch
      %25 = sbr.rel target = $region3
    $region8: #{tpu_custom_call.1} parent=1 // loop_exit
      _
    %1139 = vsyncpa [#allocation4], 1
    %s1140 = scalar_lea.sflag [#allocation4], 1
    %1141 = vsyncpa %s1140, 1
    %1142 = vsyncpa [#allocation5], 1
    %s1143 = scalar_lea.sflag [#allocation5], 1
    %1144 = vsyncpa %s1143, 1

// kernel: tpu_custom_call.1
$region0: #{tpu_custom_call.1}
  #allocation0 [shape = 'u32[]', space=smem, size = 0x4, offset = 0x4, fixed_abs, tag = 'smem constant byte address 0x4 - core index']
  #allocation1 [shape = 'u32[72,128]{1,0:T(1,128)}', space=vmem, size = 0x9000, scoped, tag = 'internal scratch']
  #allocation2 [shape = 'f32[8,32]{1,0:T(8,128)}', space=vmem, size = 0x1000, scoped, tag = 'scratch operand']
  %s0 = inlined_call_operand.hbm [shape: f32[2,8,32], index: 0, kind: input, shape index: {}, may-alias: {0,14}]
  %s1 = inlined_call_operand.vmem [shape: f32[2,6,32], index: 1, kind: input, shape index: {}]
  %s2 = inlined_call_operand.vmem [shape: bf16[1,32,32], index: 2, kind: input, shape index: {}]
  %s3 = inlined_call_operand.vmem [shape: bf16[1,32,32], index: 3, kind: input, shape index: {}]
  %s4 = inlined_call_operand.vmem [shape: bf16[1,32,32], index: 4, kind: input, shape index: {}]
  %s5 = inlined_call_operand.vmem [shape: f32[1,1,32], index: 5, kind: input, shape index: {}]
  %s6 = inlined_call_operand.vmem [shape: f32[1,1,32], index: 6, kind: input, shape index: {}]
  %s7 = inlined_call_operand.vmem [shape: f32[1,1,32], index: 7, kind: input, shape index: {}]
  %s8 = inlined_call_operand.vmem [shape: bf16[1,32,32], index: 8, kind: input, shape index: {}]
  %s9 = inlined_call_operand.vmem [shape: f32[1,32], index: 9, kind: input, shape index: {}]
  %s10 = inlined_call_operand.vmem [shape: bf16[1,32,128], index: 10, kind: input, shape index: {}]
  %s11 = inlined_call_operand.vmem [shape: f32[1,1,128], index: 11, kind: input, shape index: {}]
  %s12 = inlined_call_operand.vmem [shape: bf16[1,128,32], index: 12, kind: input, shape index: {}]
  %s13 = inlined_call_operand.vmem [shape: f32[1,32], index: 13, kind: input, shape index: {}]
  %s14 = inlined_call_operand.hbm [shape: f32[2,8,32], index: 14, kind: output, shape index: {}, may-alias: {0,14}]
  %s15 = sld [smem:[#allocation0]]
  $region93: #{tpu_custom_call.1} parent=0
    _
  %s17 = ssub.s32 1, %s15
  %s18 = scalar_select 0, %s17, %s15
  $region1: #{tpu_custom_call.1} parent=0
    #allocation3 [shape = 'u8[8192]{0}', space=vmem, size = 0x2000, scoped, tag = 'input window, operand 0']
    #allocation4 [shape = 's32[2]{0}', space=sflag, size = 0x8, scoped, tag = 'scoped memory for tpu_custom_call.1']
    #allocation5 [shape = 's32[2]{0}', space=sflag, size = 0x8, scoped, tag = 'scoped memory for tpu_custom_call.1']
    #allocation6 [shape = 'u8[8192]{0}', space=vmem, size = 0x2000, scoped, tag = 'output window, operand 0']
    %19 = vsyncpa [#allocation4], 0
    %s20 = scalar_lea.sflag [#allocation4], 1
    %21 = vsyncpa %s20, 0
    %22 = vsyncpa [#allocation5], 0
    %s23 = scalar_lea.sflag [#allocation5], 1
    %24 = vsyncpa %s23, 0
    loop: start=0, step=1, limit=4
    $region2: #{tpu_custom_call.1} parent=1 // loop_pre_header
      _
    $region3: #{tpu_custom_call.1} parent=1 // loop_header
      %s26 = sphi 0, %s30
      %p27 = scmp.ge.s32.totalorder %s26, 4
      %s36 = sphi 0, %s38
      %s39 = sphi 0, %s36
      %s40 = sphi 0, %s39
      %s56 = sphi 0, %s40
      %s62 = sphi 0, %s64
      %s65 = sphi 0, %s62
      %s66 = sphi 0, %s65
      %s82 = sphi 0, %s66
      %s86 = sphi 0, %s86
      %s88 = sphi 0, %s86
      %s89 = sphi 0, %s88
      %s103 = sphi 0, %s89
      %s107 = sphi 0, %s107
      %s109 = sphi 0, %s107
      %s110 = sphi 0, %s109
      %s124 = sphi 0, %s110
      %s128 = sphi 0, %s128
      %s130 = sphi 0, %s128
      %s131 = sphi 0, %s130
      %s145 = sphi 0, %s131
      %s149 = sphi 0, %s149
      %s151 = sphi 0, %s149
      %s152 = sphi 0, %s151
      %s166 = sphi 0, %s152
      %s170 = sphi 0, %s170
      %s172 = sphi 0, %s170
      %s173 = sphi 0, %s172
      %s187 = sphi 0, %s173
      %s191 = sphi 0, %s191
      %s193 = sphi 0, %s191
      %s194 = sphi 0, %s193
      %s208 = sphi 0, %s194
      %s212 = sphi 0, %s212
      %s214 = sphi 0, %s212
      %s215 = sphi 0, %s214
      %s229 = sphi 0, %s215
      %s233 = sphi 0, %s233
      %s235 = sphi 0, %s233
      %s236 = sphi 0, %s235
      %s250 = sphi 0, %s236
      %s254 = sphi 0, %s254
      %s256 = sphi 0, %s254
      %s257 = sphi 0, %s256
      %s271 = sphi 0, %s257
      %s275 = sphi 0, %s275
      %s277 = sphi 0, %s275
      %s278 = sphi 0, %s277
      %s292 = sphi 0, %s278
      %s296 = sphi 0, %s296
      %s298 = sphi 0, %s296
      %s299 = sphi 0, %s298
      %s313 = sphi 0, %s299
      %s317 = sphi 0, %s317
      %s319 = sphi 0, %s317
      %s320 = sphi 0, %s319
      %s334 = sphi 0, %s320
      %s340 = sphi 0, %s342
      %s343 = sphi 0, %s340
      %s344 = sphi 0, %s343
      %s360 = sphi 0, %s344
    $region4: #{tpu_custom_call.1} parent=1 // loop_header_branch
      %29 = sbr.rel (%p27) target = $region8
    $region5: #{tpu_custom_call.1} parent=1 // loop_body
      %s31 = ssub.s32 %s26, 1
      %s32 = ssub.s32 %s26, 2
      %s33 = sadd.s32 %s26, 1
      %s34 = ssub.s32 %s26, %s33
      %p35 = scmp.eq.s32.totalorder %s34, 0
      %s37 = sadd.s32 %s36, 1
      %s38 = scalar_select %p35, %s36, %s37
      %p41 = pneg %p35
      %p42 = scmp.eq.s32.totalorder %s26, 1
      %p43 = por %p41, %p42
      %p44 = scmp.ne.s32.totalorder %s36, %s39
      %p45 = scmp.eq.s32.totalorder %s26, 0
      %p46 = por %p44, %p45
      %p47 = scmp.ne.s32.totalorder %s36, %s39
      %p48 = scmp.eq.s32.totalorder %s31, 1
      %p49 = por %p47, %p48
      %p50 = scmp.ne.s32.totalorder %s39, %s40
      %p51 = scmp.eq.s32.totalorder %s31, 0
      %p52 = por %p50, %p51
      %p53 = scmp.ne.s32.totalorder %s39, %s40
      %p54 = scmp.eq.s32.totalorder %s32, 1
      %p55 = por %p53, %p54
      %p57 = scmp.ne.s32.totalorder %s40, %s56
      %p58 = scmp.eq.s32.totalorder %s32, 0
      %p59 = por %p57, %p58
      %s60 = ssub.s32 %s26, %s33
      %p61 = scmp.eq.s32.totalorder %s60, 0
      %s63 = sadd.s32 %s62, 1
      %s64 = scalar_select %p61, %s62, %s63
      %p67 = pneg %p61
      %p68 = scmp.eq.s32.totalorder %s26, 1
      %p69 = por %p67, %p68
      %p70 = scmp.ne.s32.totalorder %s62, %s65
      %p71 = scmp.eq.s32.totalorder %s26, 0
      %p72 = por %p70, %p71
      %p73 = scmp.ne.s32.totalorder %s62, %s65
      %p74 = scmp.eq.s32.totalorder %s31, 1
      %p75 = por %p73, %p74
      %p76 = scmp.ne.s32.totalorder %s65, %s66
      %p77 = scmp.eq.s32.totalorder %s31, 0
      %p78 = por %p76, %p77
      %p79 = scmp.ne.s32.totalorder %s65, %s66
      %p80 = scmp.eq.s32.totalorder %s32, 1
      %p81 = por %p79, %p80
      %p83 = scmp.ne.s32.totalorder %s66, %s82
      %p84 = scmp.eq.s32.totalorder %s32, 0
      %p85 = por %p83, %p84
      %s87 = sadd.s32 %s86, 1
      %p90 = scmp.eq.s32.totalorder %s26, 1
      %p91 = scmp.ne.s32.totalorder %s86, %s88
      %p92 = scmp.eq.s32.totalorder %s26, 0
      %p93 = por %p91, %p92
      %p94 = scmp.ne.s32.totalorder %s86, %s88
      %p95 = scmp.eq.s32.totalorder %s31, 1
      %p96 = por %p94, %p95
      %p97 = scmp.ne.s32.totalorder %s88, %s89
      %p98 = scmp.eq.s32.totalorder %s31, 0
      %p99 = por %p97, %p98
      %p100 = scmp.ne.s32.totalorder %s88, %s89
      %p101 = scmp.eq.s32.totalorder %s32, 1
      %p102 = por %p100, %p101
      %p104 = scmp.ne.s32.totalorder %s89, %s103
      %p105 = scmp.eq.s32.totalorder %s32, 0
      %p106 = por %p104, %p105
      %s108 = sadd.s32 %s107, 1
      %p111 = scmp.eq.s32.totalorder %s26, 1
      %p112 = scmp.ne.s32.totalorder %s107, %s109
      %p113 = scmp.eq.s32.totalorder %s26, 0
      %p114 = por %p112, %p113
      %p115 = scmp.ne.s32.totalorder %s107, %s109
      %p116 = scmp.eq.s32.totalorder %s31, 1
      %p117 = por %p115, %p116
      %p118 = scmp.ne.s32.totalorder %s109, %s110
      %p119 = scmp.eq.s32.totalorder %s31, 0
      %p120 = por %p118, %p119
      %p121 = scmp.ne.s32.totalorder %s109, %s110
      %p122 = scmp.eq.s32.totalorder %s32, 1
      %p123 = por %p121, %p122
      %p125 = scmp.ne.s32.totalorder %s110, %s124
      %p126 = scmp.eq.s32.totalorder %s32, 0
      %p127 = por %p125, %p126
      %s129 = sadd.s32 %s128, 1
      %p132 = scmp.eq.s32.totalorder %s26, 1
      %p133 = scmp.ne.s32.totalorder %s128, %s130
      %p134 = scmp.eq.s32.totalorder %s26, 0
      %p135 = por %p133, %p134
      %p136 = scmp.ne.s32.totalorder %s128, %s130
      %p137 = scmp.eq.s32.totalorder %s31, 1
      %p138 = por %p136, %p137
      %p139 = scmp.ne.s32.totalorder %s130, %s131
      %p140 = scmp.eq.s32.totalorder %s31, 0
      %p141 = por %p139, %p140
      %p142 = scmp.ne.s32.totalorder %s130, %s131
      %p143 = scmp.eq.s32.totalorder %s32, 1
      %p144 = por %p142, %p143
      %p146 = scmp.ne.s32.totalorder %s131, %s145
      %p147 = scmp.eq.s32.totalorder %s32, 0
      %p148 = por %p146, %p147
      %s150 = sadd.s32 %s149, 1
      %p153 = scmp.eq.s32.totalorder %s26, 1
      %p154 = scmp.ne.s32.totalorder %s149, %s151
      %p155 = scmp.eq.s32.totalorder %s26, 0
      %p156 = por %p154, %p155
      %p157 = scmp.ne.s32.totalorder %s149, %s151
      %p158 = scmp.eq.s32.totalorder %s31, 1
      %p159 = por %p157, %p158
      %p160 = scmp.ne.s32.totalorder %s151, %s152
      %p161 = scmp.eq.s32.totalorder %s31, 0
      %p162 = por %p160, %p161
      %p163 = scmp.ne.s32.totalorder %s151, %s152
      %p164 = scmp.eq.s32.totalorder %s32, 1
      %p165 = por %p163, %p164
      %p167 = scmp.ne.s32.totalorder %s152, %s166
      %p168 = scmp.eq.s32.totalorder %s32, 0
      %p169 = por %p167, %p168
      %s171 = sadd.s32 %s170, 1
      %p174 = scmp.eq.s32.totalorder %s26, 1
      %p175 = scmp.ne.s32.totalorder %s170, %s172
      %p176 = scmp.eq.s32.totalorder %s26, 0
      %p177 = por %p175, %p176
      %p178 = scmp.ne.s32.totalorder %s170, %s172
      %p179 = scmp.eq.s32.totalorder %s31, 1
      %p180 = por %p178, %p179
      %p181 = scmp.ne.s32.totalorder %s172, %s173
      %p182 = scmp.eq.s32.totalorder %s31, 0
      %p183 = por %p181, %p182
      %p184 = scmp.ne.s32.totalorder %s172, %s173
      %p185 = scmp.eq.s32.totalorder %s32, 1
      %p186 = por %p184, %p185
      %p188 = scmp.ne.s32.totalorder %s173, %s187
      %p189 = scmp.eq.s32.totalorder %s32, 0
      %p190 = por %p188, %p189
      %s192 = sadd.s32 %s191, 1
      %p195 = scmp.eq.s32.totalorder %s26, 1
      %p196 = scmp.ne.s32.totalorder %s191, %s193
      %p197 = scmp.eq.s32.totalorder %s26, 0
      %p198 = por %p196, %p197
      %p199 = scmp.ne.s32.totalorder %s191, %s193
      %p200 = scmp.eq.s32.totalorder %s31, 1
      %p201 = por %p199, %p200
      %p202 = scmp.ne.s32.totalorder %s193, %s194
      %p203 = scmp.eq.s32.totalorder %s31, 0
      %p204 = por %p202, %p203
      %p205 = scmp.ne.s32.totalorder %s193, %s194
      %p206 = scmp.eq.s32.totalorder %s32, 1
      %p207 = por %p205, %p206
      %p209 = scmp.ne.s32.totalorder %s194, %s208
      %p210 = scmp.eq.s32.totalorder %s32, 0
      %p211 = por %p209, %p210
      %s213 = sadd.s32 %s212, 1
      %p216 = scmp.eq.s32.totalorder %s26, 1
      %p217 = scmp.ne.s32.totalorder %s212, %s214
      %p218 = scmp.eq.s32.totalorder %s26, 0
      %p219 = por %p217, %p218
      %p220 = scmp.ne.s32.totalorder %s212, %s214
      %p221 = scmp.eq.s32.totalorder %s31, 1
      %p222 = por %p220, %p221
      %p223 = scmp.ne.s32.totalorder %s214, %s215
      %p224 = scmp.eq.s32.totalorder %s31, 0
      %p225 = por %p223, %p224
      %p226 = scmp.ne.s32.totalorder %s214, %s215
      %p227 = scmp.eq.s32.totalorder %s32, 1
      %p228 = por %p226, %p227
      %p230 = scmp.ne.s32.totalorder %s215, %s229
      %p231 = scmp.eq.s32.totalorder %s32, 0
      %p232 = por %p230, %p231
      %s234 = sadd.s32 %s233, 1
      %p237 = scmp.eq.s32.totalorder %s26, 1
      %p238 = scmp.ne.s32.totalorder %s233, %s235
      %p239 = scmp.eq.s32.totalorder %s26, 0
      %p240 = por %p238, %p239
      %p241 = scmp.ne.s32.totalorder %s233, %s235
      %p242 = scmp.eq.s32.totalorder %s31, 1
      %p243 = por %p241, %p242
      %p244 = scmp.ne.s32.totalorder %s235, %s236
      %p245 = scmp.eq.s32.totalorder %s31, 0
      %p246 = por %p244, %p245
      %p247 = scmp.ne.s32.totalorder %s235, %s236
      %p248 = scmp.eq.s32.totalorder %s32, 1
      %p249 = por %p247, %p248
      %p251 = scmp.ne.s32.totalorder %s236, %s250
      %p252 = scmp.eq.s32.totalorder %s32, 0
      %p253 = por %p251, %p252
      %s255 = sadd.s32 %s254, 1
      %p258 = scmp.eq.s32.totalorder %s26, 1
      %p259 = scmp.ne.s32.totalorder %s254, %s256
      %p260 = scmp.eq.s32.totalorder %s26, 0
      %p261 = por %p259, %p260
      %p262 = scmp.ne.s32.totalorder %s254, %s256
      %p263 = scmp.eq.s32.totalorder %s31, 1
      %p264 = por %p262, %p263
      %p265 = scmp.ne.s32.totalorder %s256, %s257
      %p266 = scmp.eq.s32.totalorder %s31, 0
      %p267 = por %p265, %p266
      %p268 = scmp.ne.s32.totalorder %s256, %s257
      %p269 = scmp.eq.s32.totalorder %s32, 1
      %p270 = por %p268, %p269
      %p272 = scmp.ne.s32.totalorder %s257, %s271
      %p273 = scmp.eq.s32.totalorder %s32, 0
      %p274 = por %p272, %p273
      %s276 = sadd.s32 %s275, 1
      %p279 = scmp.eq.s32.totalorder %s26, 1
      %p280 = scmp.ne.s32.totalorder %s275, %s277
      %p281 = scmp.eq.s32.totalorder %s26, 0
      %p282 = por %p280, %p281
      %p283 = scmp.ne.s32.totalorder %s275, %s277
      %p284 = scmp.eq.s32.totalorder %s31, 1
      %p285 = por %p283, %p284
      %p286 = scmp.ne.s32.totalorder %s277, %s278
      %p287 = scmp.eq.s32.totalorder %s31, 0
      %p288 = por %p286, %p287
      %p289 = scmp.ne.s32.totalorder %s277, %s278
      %p290 = scmp.eq.s32.totalorder %s32, 1
      %p291 = por %p289, %p290
      %p293 = scmp.ne.s32.totalorder %s278, %s292
      %p294 = scmp.eq.s32.totalorder %s32, 0
      %p295 = por %p293, %p294
      %s297 = sadd.s32 %s296, 1
      %p300 = scmp.eq.s32.totalorder %s26, 1
      %p301 = scmp.ne.s32.totalorder %s296, %s298
      %p302 = scmp.eq.s32.totalorder %s26, 0
      %p303 = por %p301, %p302
      %p304 = scmp.ne.s32.totalorder %s296, %s298
      %p305 = scmp.eq.s32.totalorder %s31, 1
      %p306 = por %p304, %p305
      %p307 = scmp.ne.s32.totalorder %s298, %s299
      %p308 = scmp.eq.s32.totalorder %s31, 0
      %p309 = por %p307, %p308
      %p310 = scmp.ne.s32.totalorder %s298, %s299
      %p311 = scmp.eq.s32.totalorder %s32, 1
      %p312 = por %p310, %p311
      %p314 = scmp.ne.s32.totalorder %s299, %s313
      %p315 = scmp.eq.s32.totalorder %s32, 0
      %p316 = por %p314, %p315
      %s318 = sadd.s32 %s317, 1
      %p321 = scmp.eq.s32.totalorder %s26, 1
      %p322 = scmp.ne.s32.totalorder %s317, %s319
      %p323 = scmp.eq.s32.totalorder %s26, 0
      %p324 = por %p322, %p323
      %p325 = scmp.ne.s32.totalorder %s317, %s319
      %p326 = scmp.eq.s32.totalorder %s31, 1
      %p327 = por %p325, %p326
      %p328 = scmp.ne.s32.totalorder %s319, %s320
      %p329 = scmp.eq.s32.totalorder %s31, 0
      %p330 = por %p328, %p329
      %p331 = scmp.ne.s32.totalorder %s319, %s320
      %p332 = scmp.eq.s32.totalorder %s32, 1
      %p333 = por %p331, %p332
      %p335 = scmp.ne.s32.totalorder %s320, %s334
      %p336 = scmp.eq.s32.totalorder %s32, 0
      %p337 = por %p335, %p336
      %s338 = ssub.s32 %s26, %s33
      %p339 = scmp.eq.s32.totalorder %s338, 0
      %s341 = sadd.s32 %s340, 1
      %s342 = scalar_select %p339, %s340, %s341
      %p345 = pneg %p339
      %p346 = scmp.eq.s32.totalorder %s26, 1
      %p347 = por %p345, %p346
      %p348 = scmp.ne.s32.totalorder %s340, %s343
      %p349 = scmp.eq.s32.totalorder %s26, 0
      %p350 = por %p348, %p349
      %p351 = scmp.ne.s32.totalorder %s340, %s343
      %p352 = scmp.eq.s32.totalorder %s31, 1
      %p353 = por %p351, %p352
      %p354 = scmp.ne.s32.totalorder %s343, %s344
      %p355 = scmp.eq.s32.totalorder %s31, 0
      %p356 = por %p354, %p355
      %p357 = scmp.ne.s32.totalorder %s343, %s344
      %p358 = scmp.eq.s32.totalorder %s32, 1
      %p359 = por %p357, %p358
      %p361 = scmp.ne.s32.totalorder %s344, %s360
      %p362 = scmp.eq.s32.totalorder %s32, 0
      %p363 = por %p361, %p362
      %p364 = scmp.le.s32.totalorder 1, %s26
      %p365 = scmp.lt.s32.totalorder %s26, 3
      %p366 = pnand %p364, %p365
      %p367 = pneg %p366
      // Predicated region
      $region9: #{tpu_custom_call.1} parent=5 // pred_check
        _
      $region10: #{tpu_custom_call.1} parent=5 // pred_check_branch
        %369 = sbr.rel (%p366) target = $region12
      $region11: #{tpu_custom_call.1} parent=5 // pred_region
        %s370 = ssub.s32 %s26, 1
        // Predicated region
        $region13: #{tpu_custom_call.1} parent=11 // pred_check
          %p371 = pneg %p99
        $region14: #{tpu_custom_call.1} parent=11 // pred_check_branch
          %373 = sbr.rel (%p371) target = $region16
        $region15: #{tpu_custom_call.1} parent=11 // pred_region
          _
        $region16: #{tpu_custom_call.1} parent=11 // pred_fallthru
          _
        // Predicated region
        $region17: #{tpu_custom_call.1} parent=11 // pred_check
          %p374 = pneg %p120
        $region18: #{tpu_custom_call.1} parent=11 // pred_check_branch
          %376 = sbr.rel (%p374) target = $region20
        $region19: #{tpu_custom_call.1} parent=11 // pred_region
          _
        $region20: #{tpu_custom_call.1} parent=11 // pred_fallthru
          _
        // Predicated region
        $region21: #{tpu_custom_call.1} parent=11 // pred_check
          %p377 = pneg %p141
        $region22: #{tpu_custom_call.1} parent=11 // pred_check_branch
          %379 = sbr.rel (%p377) target = $region24
        $region23: #{tpu_custom_call.1} parent=11 // pred_region
          _
        $region24: #{tpu_custom_call.1} parent=11 // pred_fallthru
          _
        // Predicated region
        $region25: #{tpu_custom_call.1} parent=11 // pred_check
          %p380 = pneg %p162
        $region26: #{tpu_custom_call.1} parent=11 // pred_check_branch
          %382 = sbr.rel (%p380) target = $region28
        $region27: #{tpu_custom_call.1} parent=11 // pred_region
          _
        $region28: #{tpu_custom_call.1} parent=11 // pred_fallthru
          _
        // Predicated region
        $region29: #{tpu_custom_call.1} parent=11 // pred_check
          %p383 = pneg %p183
        $region30: #{tpu_custom_call.1} parent=11 // pred_check_branch
          %385 = sbr.rel (%p383) target = $region32
        $region31: #{tpu_custom_call.1} parent=11 // pred_region
          _
        $region32: #{tpu_custom_call.1} parent=11 // pred_fallthru
          _
        // Predicated region
        $region33: #{tpu_custom_call.1} parent=11 // pred_check
          %p386 = pneg %p204
        $region34: #{tpu_custom_call.1} parent=11 // pred_check_branch
          %388 = sbr.rel (%p386) target = $region36
        $region35: #{tpu_custom_call.1} parent=11 // pred_region
          _
        $region36: #{tpu_custom_call.1} parent=11 // pred_fallthru
          _
        // Predicated region
        $region37: #{tpu_custom_call.1} parent=11 // pred_check
          %p389 = pneg %p225
        $region38: #{tpu_custom_call.1} parent=11 // pred_check_branch
          %391 = sbr.rel (%p389) target = $region40
        $region39: #{tpu_custom_call.1} parent=11 // pred_region
          _
        $region40: #{tpu_custom_call.1} parent=11 // pred_fallthru
          _
        // Predicated region
        $region41: #{tpu_custom_call.1} parent=11 // pred_check
          %p392 = pneg %p246
        $region42: #{tpu_custom_call.1} parent=11 // pred_check_branch
          %394 = sbr.rel (%p392) target = $region44
        $region43: #{tpu_custom_call.1} parent=11 // pred_region
          _
        $region44: #{tpu_custom_call.1} parent=11 // pred_fallthru
          _
        // Predicated region
        $region45: #{tpu_custom_call.1} parent=11 // pred_check
          %p395 = pneg %p267
        $region46: #{tpu_custom_call.1} parent=11 // pred_check_branch
          %397 = sbr.rel (%p395) target = $region48
        $region47: #{tpu_custom_call.1} parent=11 // pred_region
          _
        $region48: #{tpu_custom_call.1} parent=11 // pred_fallthru
          _
        // Predicated region
        $region49: #{tpu_custom_call.1} parent=11 // pred_check
          %p398 = pneg %p288
        $region50: #{tpu_custom_call.1} parent=11 // pred_check_branch
          %400 = sbr.rel (%p398) target = $region52
        $region51: #{tpu_custom_call.1} parent=11 // pred_region
          _
        $region52: #{tpu_custom_call.1} parent=11 // pred_fallthru
          _
        // Predicated region
        $region53: #{tpu_custom_call.1} parent=11 // pred_check
          %p401 = pneg %p309
        $region54: #{tpu_custom_call.1} parent=11 // pred_check_branch
          %403 = sbr.rel (%p401) target = $region56
        $region55: #{tpu_custom_call.1} parent=11 // pred_region
          _
        $region56: #{tpu_custom_call.1} parent=11 // pred_fallthru
          _
        // Predicated region
        $region57: #{tpu_custom_call.1} parent=11 // pred_check
          %p404 = pneg %p330
        $region58: #{tpu_custom_call.1} parent=11 // pred_check_branch
          %406 = sbr.rel (%p404) target = $region60
        $region59: #{tpu_custom_call.1} parent=11 // pred_region
          _
        $region60: #{tpu_custom_call.1} parent=11 // pred_fallthru
          _
      $region12: #{tpu_custom_call.1} parent=5 // pred_fallthru
        _
      %p407 = scmp.lt.s32.totalorder %s26, 2
      // Predicated region
      $region61: #{tpu_custom_call.1} parent=5 // pred_check
        %p408 = pneg %p407
      $region62: #{tpu_custom_call.1} parent=5 // pred_check_branch
        %410 = sbr.rel (%p408) target = $region64
      $region63: #{tpu_custom_call.1} parent=5 // pred_region
        // Predicated region
        $region65: #{tpu_custom_call.1} parent=63 // pred_check
          %p411 = pneg %p46
        $region66: #{tpu_custom_call.1} parent=63 // pred_check_branch
          %413 = sbr.rel (%p411) target = $region68
        $region67: #{tpu_custom_call.1} parent=63 // pred_region
          %s414 = sand.u32 %s36, 1
          %s415 = scalar_lea.sflag [#allocation4], %s414
          %s416 = sand.u32 %s36, 1
          %s417 = smul.addr %s416, 8
          %s418 = scalar_lea.vmem [#allocation3], %s417
          %420 = vsyncadd %s415, 0
          %s421 = smul.addr %s26, 8
          %s422 = scalar_lea.hbm %s0, %s421
          %s424 = sshll.u32 %s422, 4
          %s425 = int_to_ptr.hbm [resolvable:$true] %s424
          %s426 = sshll.u32 %s418, 4
          %s427 = int_to_ptr.vmem [resolvable:$true] %s426
          %429 = dma.hbm_to_vmem [thread:$0]  %s425, 128, %s427, %s415
        $region68: #{tpu_custom_call.1} parent=63 // pred_fallthru
          _
        // Predicated region
        $region69: #{tpu_custom_call.1} parent=63 // pred_check
          %p430 = pneg %p72
        $region70: #{tpu_custom_call.1} parent=63 // pred_check_branch
          %432 = sbr.rel (%p430) target = $region72
        $region71: #{tpu_custom_call.1} parent=63 // pred_region
          %p433 = scmp.lt.s32.totalorder %s26, 1
          %s434 = scalar_select %p433, %s26, 1
          %s435 = smul.addr %s434, 8
          %s436 = scalar_lea.vmem %s1, %s435
        $region72: #{tpu_custom_call.1} parent=63 // pred_fallthru
          _
      $region64: #{tpu_custom_call.1} parent=5 // pred_fallthru
        _
      %p437 = scmp.le.s32.totalorder 1, %s26
      %p438 = scmp.lt.s32.totalorder %s26, 3
      %p439 = pnand %p437, %p438
      %p440 = pneg %p439
      // Predicated region
      $region73: #{tpu_custom_call.1} parent=5 // pred_check
        _
      $region74: #{tpu_custom_call.1} parent=5 // pred_check_branch
        %442 = sbr.rel (%p439) target = $region76
      $region75: #{tpu_custom_call.1} parent=5 // pred_region
        %s443 = ssub.s32 %s26, 1
        %s444 = sand.u32 %s39, 1
        %s445 = scalar_lea.sflag [#allocation4], %s444
        %s446 = sand.u32 %s39, 1
        %s447 = smul.addr %s446, 8
        %s448 = scalar_lea.vmem [#allocation3], %s447
        // Predicated region
        $region77: #{tpu_custom_call.1} parent=75 // pred_check
          %p449 = pneg %p52
        $region78: #{tpu_custom_call.1} parent=75 // pred_check_branch
          %451 = sbr.rel (%p449) target = $region80
        $region79: #{tpu_custom_call.1} parent=75 // pred_region
          %453 = dma.done %s445, 128
        $region80: #{tpu_custom_call.1} parent=75 // pred_fallthru
          _
        %s454 = sand.u32 %s39, 1
        %s455 = scalar_lea.sflag [#allocation4], %s454
        %s456 = sand.u32 %s39, 1
        %s457 = smul.addr %s456, 8
        %s458 = scalar_lea.vmem [#allocation3], %s457
        %p459 = pneg %p52
        %p460 = pneg %p49
        %p461 = scmp.lt.s32.totalorder %s31, 1
        %s462 = scalar_select %p461, %s31, 1
        %s463 = smul.addr %s462, 8
        %s464 = scalar_lea.vmem %s1, %s463
        %p465 = pneg %p78
        %p466 = pneg %p75
        %p467 = pneg %p99
        %p468 = pneg %p96
        %p469 = pneg %p120
        %p470 = pneg %p117
        %p471 = pneg %p141
        %p472 = pneg %p138
        %p473 = pneg %p162
        %p474 = pneg %p159
        %p475 = pneg %p183
        %p476 = pneg %p180
        %p477 = pneg %p204
        %p478 = pneg %p201
        %p479 = pneg %p225
        %p480 = pneg %p222
        %p481 = pneg %p246
        %p482 = pneg %p243
        %p483 = pneg %p267
        %p484 = pneg %p264
        %p485 = pneg %p288
        %p486 = pneg %p285
        %p487 = pneg %p309
        %p488 = pneg %p306
        %p489 = pneg %p330
        %p490 = pneg %p327
        %p491 = pneg %p356
        %p492 = pneg %p353
        %s493 = sand.u32 %s343, 1
        %s494 = scalar_lea.sflag [#allocation5], %s493
        %s495 = sand.u32 %s343, 1
        %s496 = smul.addr %s495, 8
        %s497 = scalar_lea.vmem [#allocation6], %s496
        %p498 = scmp.lt.s32.totalorder %s31, 1
        %s499 = scalar_select %p498, %s31, 1
        %s500 = smul.addr %s499, 8
        %s501 = scalar_lea.vmem %s1, %s500
        %v503 = vld [vmem:[%s448] sm:$0xff]
        %v504 = vld [vmem:[%s501] sm:$0x3f]
        %vm505 = vcmask 261120
        %v506 = vsel %vm505, %v503, 0.0
        %507 = vadd.xlane.f32.xlu0 %v506
        %v508 = vpop.xlane.xlu0 %507
        %v509 = vrcp.pop 32.0
        %v510 = vmul.f32 32.0, %v509
        %v511 = vsub.f32 1.0, %v510
        %v512 = vmul.f32 %v509, %v511
        %v513 = vadd.f32 %v509, %v512
        %vm514 = vweird.f32 %v509
        %v515 = vsel %vm514, %v509, %v513
        %v516 = vmul.f32 %v508, %v515
        %v517 = vsub.f32 %v503, %v516
        %v518 = vmul.f32 %v517, %v517
        %v519 = vsel %vm505, %v518, 0.0
        %520 = vadd.xlane.f32.xlu0 %v519
        %v521 = vpop.xlane.xlu0 %520
        %v522 = vmul.f32 %v521, %v515
        %v523 = vadd.f32 %v522, 1e-06
        %v524 = vrsqrt.pop %v523
        %v525 = vmul.f32 %v524, %v523
        %v526 = vmul.f32 %v525, %v524
        %v527 = vmul.f32 0.5, %v526
        %v528 = vsub.f32 1.5, %v527
        %v529 = vmul.f32 %v524, %v528
        %vm530 = vweird.f32 %v523
        %vm531 = vweird.f32 %v524
        %vm532 = vmor %vm530, %vm531
        %v533 = vsel %vm532, %v524, %v529
        %v534 = vmul.f32 %v517, %v533
        %v535 = vadd.f32 %v504, 1.0
        %v536 = vperm.slane %v535, 1
        %v537 = vmul.f32 %v534, %v536
        %v538 = vperm.slane %v504, 0
        %v539 = vadd.f32 %v537, %v538
        %v540 = vpack.c.bf16 %v539, %v539
        %541 = vst.msk [vmem:[#allocation2] sm:$0xff] %vm505, 0.0
        %v542 = vld [vmem:[%s2] sm:$0xf]
        %v543 = vld [vmem:[%s2 + $0x4] sm:$0xf]
        %v544 = vld [vmem:[%s2 + $0x8] sm:$0xf]
        %v545 = vld [vmem:[%s2 + $0xc] sm:$0xf]
        %v546 = vld [vmem:[%s5] sm:$0x1]
        %v548 = vperm.slane %v546, 0
        %v554 = vunpack.c.l.b16 %v542
        %v555 = vunpack.c.l.b16 %v543
        %v556 = vunpack.c.l.b16 %v544
        %v557 = vunpack.c.l.b16 %v545
        %v558 = vpack.c.b16 %v555, %v554
        %v559 = vpack.c.b16 %v557, %v556
        %v563 = vsel %vm505, %v540, 0
        %565 = vmatpush.bf16.msra.mxu0 0
        %566 = vmatpush.bf16.msra.mxu0 0
        %567 = vmatpush.bf16.msra.mxu0 0
        %568 = vmatpush.bf16.msra.mxu0 0
        %569 = vmatpush.bf16.msra.mxu0 0
        %570 = vmatpush.bf16.msra.mxu0 0
        %571 = vmatpush.bf16.msra.mxu0 %v559
        %572 = vmatpush.bf16.msra.mxu0 %v558
        %573 = vmatmul.bf16.gmra.mxu0 %v563
        %v574 = vpop.f32.mrf.mxu0
        %v575 = vadd.f32 %v548, %v574
        %v576 = vpop.f32.mrf.mxu0
        %577 = vdwg.mxu0
        %v578 = vld [vmem:[%s3] sm:$0xf]
        %v579 = vld [vmem:[%s3 + $0x4] sm:$0xf]
        %v580 = vld [vmem:[%s3 + $0x8] sm:$0xf]
        %v581 = vld [vmem:[%s3 + $0xc] sm:$0xf]
        %v582 = vld [vmem:[%s6] sm:$0x1]
        %v584 = vperm.slane %v582, 0
        %v590 = vunpack.c.l.b16 %v578
        %v591 = vunpack.c.l.b16 %v579
        %v592 = vunpack.c.l.b16 %v580
        %v593 = vunpack.c.l.b16 %v581
        %v594 = vpack.c.b16 %v591, %v590
        %v595 = vpack.c.b16 %v593, %v592
        %598 = vmatpush.bf16.msra.mxu0 0
        %599 = vmatpush.bf16.msra.mxu0 0
        %600 = vmatpush.bf16.msra.mxu0 0
        %601 = vmatpush.bf16.msra.mxu0 0
        %602 = vmatpush.bf16.msra.mxu0 0
        %603 = vmatpush.bf16.msra.mxu0 0
        %604 = vmatpush.bf16.msra.mxu0 %v595
        %605 = vmatpush.bf16.msra.mxu0 %v594
        %606 = vmatmul.bf16.gmra.mxu0 %v563
        %v607 = vpop.f32.mrf.mxu0
        %v608 = vadd.f32 %v584, %v607
        %v609 = vpop.f32.mrf.mxu0
        %610 = vdwg.mxu0
        %v611 = vld [vmem:[%s4] sm:$0xf]
        %v612 = vld [vmem:[%s4 + $0x4] sm:$0xf]
        %v613 = vld [vmem:[%s4 + $0x8] sm:$0xf]
        %v614 = vld [vmem:[%s4 + $0xc] sm:$0xf]
        %v615 = vld [vmem:[%s7] sm:$0x1]
        %v617 = vperm.slane %v615, 0
        %v623 = vunpack.c.l.b16 %v611
        %v624 = vunpack.c.l.b16 %v612
        %v625 = vunpack.c.l.b16 %v613
        %v626 = vunpack.c.l.b16 %v614
        %v627 = vpack.c.b16 %v624, %v623
        %v628 = vpack.c.b16 %v626, %v625
        %631 = vmatpush.bf16.msra.mxu0 0
        %632 = vmatpush.bf16.msra.mxu0 0
        %633 = vmatpush.bf16.msra.mxu0 0
        %634 = vmatpush.bf16.msra.mxu0 0
        %635 = vmatpush.bf16.msra.mxu0 0
        %636 = vmatpush.bf16.msra.mxu0 0
        %637 = vmatpush.bf16.msra.mxu0 %v628
        %638 = vmatpush.bf16.msra.mxu0 %v627
        %639 = vmatmul.bf16.gmra.mxu0 %v563
        %v640 = vpop.f32.mrf.mxu0
        %v641 = vadd.f32 %v617, %v640
        %v642 = vpop.f32.mrf.mxu0
        %643 = vdwg.mxu0
        %v644 = vpack.c.bf16 %v575, %v575
        %v645 = vpack.c.bf16 %v608, %v608
        %v646 = vpack.c.bf16 %v641, %v641
        %vm647 = vcmask 64512
        %v649 = vsel %vm647, %v644, 0
        %v652 = vsel %vm647, %v645, 0
        %654 = vmatpush.bf16.xpose.msra.mxu0 0
        %655 = vmatpush.bf16.xpose.msra.mxu0 0
        %656 = vmatpush.bf16.xpose.msra.mxu0 0
        %657 = vmatpush.bf16.xpose.msra.mxu0 0
        %658 = vmatpush.bf16.xpose.msra.mxu0 0
        %659 = vmatpush.bf16.xpose.msra.mxu0 0
        %660 = vmatpush.bf16.xpose.msra.mxu0 0
        %661 = vmatpush.bf16.xpose.msra.mxu0 %v652
        %662 = vmatmul.bf16.gmra.mxu0 %v649
        %v663 = vpop.f32.mrf.mxu0
        %v664 = vadd.f32 0.0, %v663
        %v665 = vpop.f32.mrf.mxu0
        %666 = vdwg.mxu0
        %v667 = vsel %vm647, %v664, -inf
        %668 = vmax.xlane.f32.xlu0 %v667
        %v669 = vpop.xlane.xlu0 %668
        %v670 = vsub.f32 %v664, %v669
        %v671 = vmul.f32 %v670, 1.442695
        %v672 = vpow.pop %v671
        %v673 = vsel %vm647, %v672, 0.0
        %674 = vadd.xlane.f32.xlu0 %v673
        %v675 = vpop.xlane.xlu0 %674
        %v676 = vrcp.pop %v675
        %v677 = vmul.f32 %v672, %v676
        %v678 = vpack.c.bf16 %v677, %v677
        %v680 = vsel %vm647, %v678, 0
        %vm682 = vcmask 1043456
        %v684 = vsel %vm682, %v646, 0
        %686 = vmatpush.bf16.msra.mxu0 0
        %687 = vmatpush.bf16.msra.mxu0 0
        %688 = vmatpush.bf16.msra.mxu0 0
        %689 = vmatpush.bf16.msra.mxu0 0
        %690 = vmatpush.bf16.msra.mxu0 0
        %691 = vmatpush.bf16.msra.mxu0 0
        %692 = vmatpush.bf16.msra.mxu0 0
        %693 = vmatpush.bf16.msra.mxu0 %v684
        %694 = vmatmul.bf16.gmra.mxu0 %v680
        %v695 = vpop.f32.mrf.mxu0
        %v696 = vadd.f32 0.0, %v695
        %v697 = vpop.f32.mrf.mxu0
        %698 = vdwg.mxu0
        %v699 = vpack.c.bf16 %v696, %v696
        %701 = vrot.lane.b32.xlu0 %v644, 120
        %v702 = vpop.permute.xlu0 %701
        %704 = vrot.lane.b32.xlu0 %v645, 120
        %v705 = vpop.permute.xlu0 %704
        %v707 = vsel %vm647, %v702, 0
        %v710 = vsel %vm647, %v705, 0
        %712 = vmatpush.bf16.xpose.msra.mxu0 0
        %713 = vmatpush.bf16.xpose.msra.mxu0 0
        %714 = vmatpush.bf16.xpose.msra.mxu0 0
        %715 = vmatpush.bf16.xpose.msra.mxu0 0
        %716 = vmatpush.bf16.xpose.msra.mxu0 0
        %717 = vmatpush.bf16.xpose.msra.mxu0 0
        %718 = vmatpush.bf16.xpose.msra.mxu0 0
        %719 = vmatpush.bf16.xpose.msra.mxu0 %v710
        %720 = vmatmul.bf16.gmra.mxu0 %v707
        %v721 = vpop.f32.mrf.mxu0
        %v722 = vadd.f32 0.0, %v721
        %v723 = vpop.f32.mrf.mxu0
        %724 = vdwg.mxu0
        %v725 = vsel %vm647, %v722, -inf
        %726 = vmax.xlane.f32.xlu0 %v725
        %v727 = vpop.xlane.xlu0 %726
        %v728 = vsub.f32 %v722, %v727
        %v729 = vmul.f32 %v728, 1.442695
        %v730 = vpow.pop %v729
        %v731 = vsel %vm647, %v730, 0.0
        %732 = vadd.xlane.f32.xlu0 %v731
        %v733 = vpop.xlane.xlu0 %732
        %v734 = vrcp.pop %v733
        %v735 = vmul.f32 %v730, %v734
        %v736 = vpack.c.bf16 %v735, %v735
        %738 = vrot.lane.b32.xlu0 %v646, 120
        %v739 = vpop.permute.xlu0 %738
        %v741 = vsel %vm647, %v736, 0
        %v744 = vsel %vm682, %v739, 0
        %746 = vmatpush.bf16.msra.mxu0 0
        %747 = vmatpush.bf16.msra.mxu0 0
        %748 = vmatpush.bf16.msra.mxu0 0
        %749 = vmatpush.bf16.msra.mxu0 0
        %750 = vmatpush.bf16.msra.mxu0 0
        %751 = vmatpush.bf16.msra.mxu0 0
        %752 = vmatpush.bf16.msra.mxu0 0
        %753 = vmatpush.bf16.msra.mxu0 %v744
        %754 = vmatmul.bf16.gmra.mxu0 %v741
        %v755 = vpop.f32.mrf.mxu0
        %v756 = vadd.f32 0.0, %v755
        %v757 = vpop.f32.mrf.mxu0
        %758 = vdwg.mxu0
        %v759 = vpack.c.bf16 %v756, %v756
        %760 = vrot.lane.b32.xlu0 %v644, 112
        %v761 = vpop.permute.xlu0 %760
        %762 = vrot.lane.b32.xlu0 %v645, 112
        %v763 = vpop.permute.xlu0 %762
        %v765 = vsel %vm647, %v761, 0
        %v768 = vsel %vm647, %v763, 0
        %770 = vmatpush.bf16.xpose.msra.mxu0 0
        %771 = vmatpush.bf16.xpose.msra.mxu0 0
        %772 = vmatpush.bf16.xpose.msra.mxu0 0
        %773 = vmatpush.bf16.xpose.msra.mxu0 0
        %774 = vmatpush.bf16.xpose.msra.mxu0 0
        %775 = vmatpush.bf16.xpose.msra.mxu0 0
        %776 = vmatpush.bf16.xpose.msra.mxu0 0
        %777 = vmatpush.bf16.xpose.msra.mxu0 %v768
        %778 = vmatmul.bf16.gmra.mxu0 %v765
        %v779 = vpop.f32.mrf.mxu0
        %v780 = vadd.f32 0.0, %v779
        %v781 = vpop.f32.mrf.mxu0
        %782 = vdwg.mxu0
        %v783 = vsel %vm647, %v780, -inf
        %784 = vmax.xlane.f32.xlu0 %v783
        %v785 = vpop.xlane.xlu0 %784
        %v786 = vsub.f32 %v780, %v785
        %v787 = vmul.f32 %v786, 1.442695
        %v788 = vpow.pop %v787
        %v789 = vsel %vm647, %v788, 0.0
        %790 = vadd.xlane.f32.xlu0 %v789
        %v791 = vpop.xlane.xlu0 %790
        %v792 = vrcp.pop %v791
        %v793 = vmul.f32 %v788, %v792
        %v794 = vpack.c.bf16 %v793, %v793
        %795 = vrot.lane.b32.xlu0 %v646, 112
        %v796 = vpop.permute.xlu0 %795
        %v798 = vsel %vm647, %v794, 0
        %v801 = vsel %vm682, %v796, 0
        %803 = vmatpush.bf16.msra.mxu0 0
        %804 = vmatpush.bf16.msra.mxu0 0
        %805 = vmatpush.bf16.msra.mxu0 0
        %806 = vmatpush.bf16.msra.mxu0 0
        %807 = vmatpush.bf16.msra.mxu0 0
        %808 = vmatpush.bf16.msra.mxu0 0
        %809 = vmatpush.bf16.msra.mxu0 0
        %810 = vmatpush.bf16.msra.mxu0 %v801
        %811 = vmatmul.bf16.gmra.mxu0 %v798
        %v812 = vpop.f32.mrf.mxu0
        %v813 = vadd.f32 0.0, %v812
        %v814 = vpop.f32.mrf.mxu0
        %815 = vdwg.mxu0
        %v816 = vpack.c.bf16 %v813, %v813
        %817 = vrot.lane.b32.xlu0 %v644, 104
        %v818 = vpop.permute.xlu0 %817
        %819 = vrot.lane.b32.xlu0 %v645, 104
        %v820 = vpop.permute.xlu0 %819
        %v822 = vsel %vm647, %v818, 0
        %v825 = vsel %vm647, %v820, 0
        %827 = vmatpush.bf16.xpose.msra.mxu0 0
        %828 = vmatpush.bf16.xpose.msra.mxu0 0
        %829 = vmatpush.bf16.xpose.msra.mxu0 0
        %830 = vmatpush.bf16.xpose.msra.mxu0 0
        %831 = vmatpush.bf16.xpose.msra.mxu0 0
        %832 = vmatpush.bf16.xpose.msra.mxu0 0
        %833 = vmatpush.bf16.xpose.msra.mxu0 0
        %834 = vmatpush.bf16.xpose.msra.mxu0 %v825
        %835 = vmatmul.bf16.gmra.mxu0 %v822
        %v836 = vpop.f32.mrf.mxu0
        %v837 = vadd.f32 0.0, %v836
        %v838 = vpop.f32.mrf.mxu0
        %839 = vdwg.mxu0
        %v840 = vsel %vm647, %v837, -inf
        %841 = vmax.xlane.f32.xlu0 %v840
        %v842 = vpop.xlane.xlu0 %841
        %v843 = vsub.f32 %v837, %v842
        %v844 = vmul.f32 %v843, 1.442695
        %v845 = vpow.pop %v844
        %v846 = vsel %vm647, %v845, 0.0
        %847 = vadd.xlane.f32.xlu0 %v846
        %v848 = vpop.xlane.xlu0 %847
        %v849 = vrcp.pop %v848
        %v850 = vmul.f32 %v845, %v849
        %v851 = vpack.c.bf16 %v850, %v850
        %852 = vrot.lane.b32.xlu0 %v646, 104
        %v853 = vpop.permute.xlu0 %852
        %v855 = vsel %vm647, %v851, 0
        %v858 = vsel %vm682, %v853, 0
        %860 = vmatpush.bf16.msra.mxu0 0
        %861 = vmatpush.bf16.msra.mxu0 0
        %862 = vmatpush.bf16.msra.mxu0 0
        %863 = vmatpush.bf16.msra.mxu0 0
        %864 = vmatpush.bf16.msra.mxu0 0
        %865 = vmatpush.bf16.msra.mxu0 0
        %866 = vmatpush.bf16.msra.mxu0 0
        %867 = vmatpush.bf16.msra.mxu0 %v858
        %868 = vmatmul.bf16.gmra.mxu0 %v855
        %v869 = vpop.f32.mrf.mxu0
        %v870 = vadd.f32 0.0, %v869
        %v871 = vpop.f32.mrf.mxu0
        %872 = vdwg.mxu0
        %v873 = vpack.c.bf16 %v870, %v870
        %v875 = vunpack.c.l.b16 %v759
        %v876 = vpack.c.b16 %v875, %v875
        %877 = vrot.lane.b32.xlu0 %v876, 8
        %v878 = vpop.permute.xlu0 %877
        %v880 = vunpack.c.l.b16 %v816
        %v881 = vpack.c.b16 %v880, %v880
        %882 = vrot.lane.b32.xlu0 %v881, 16
        %v883 = vpop.permute.xlu0 %882
        %v885 = vunpack.c.l.b16 %v873
        %v886 = vpack.c.b16 %v885, %v885
        %887 = vrot.lane.b32.xlu0 %v886, 24
        %v888 = vpop.permute.xlu0 %887
        %v891 = vsel %vm647, %v699, %v878
        %vm892 = vcmask 130048
        %v894 = vsel %vm892, %v891, %v883
        %vm895 = vcmask 195584
        %v897 = vsel %vm895, %v894, %v888
        %v898 = vld [vmem:[#allocation2] sm:$0xff]
        %v899 = vld [vmem:[%s8] sm:$0xf]
        %v900 = vld [vmem:[%s8 + $0x4] sm:$0xf]
        %v901 = vld [vmem:[%s8 + $0x8] sm:$0xf]
        %v902 = vld [vmem:[%s8 + $0xc] sm:$0xf]
        %v907 = vunpack.c.l.b16 %v899
        %v908 = vunpack.c.l.b16 %v900
        %v909 = vunpack.c.l.b16 %v901
        %v910 = vunpack.c.l.b16 %v902
        %v911 = vpack.c.b16 %v908, %v907
        %v912 = vpack.c.b16 %v910, %v909
        %v915 = vsel %vm505, %v897, 0
        %917 = vmatpush.bf16.msra.mxu0 0
        %918 = vmatpush.bf16.msra.mxu0 0
        %919 = vmatpush.bf16.msra.mxu0 0
        %920 = vmatpush.bf16.msra.mxu0 0
        %921 = vmatpush.bf16.msra.mxu0 0
        %922 = vmatpush.bf16.msra.mxu0 0
        %923 = vmatpush.bf16.msra.mxu0 %v912
        %924 = vmatpush.bf16.msra.mxu0 %v911
        %925 = vmatmul.bf16.gmra.mxu0 %v915
        %v926 = vpop.f32.mrf.mxu0
        %v927 = vadd.f32 0.0, %v926
        %v928 = vpop.f32.mrf.mxu0
        %929 = vdwg.mxu0
        %v930 = vadd.f32 %v898, %v927
        %931 = vst.msk [vmem:[#allocation2] sm:$0xff] %vm505, %v930
        %v932 = vld [vmem:[#allocation2] sm:$0xff]
        %v933 = vld [vmem:[%s9] sm:$0x1]
        %v935 = vperm.slane %v933, 0
        %v937 = vadd.f32 %v932, %v935
        %v938 = vperm.slane %v504, 2
        %v939 = vmul.f32 %v938, %v937
        %v940 = vadd.f32 %v503, %v939
        %v941 = vsel %vm505, %v940, 0.0
        %942 = vadd.xlane.f32.xlu0 %v941
        %v943 = vpop.xlane.xlu0 %942
        %v944 = vmul.f32 %v943, %v515
        %v945 = vsub.f32 %v940, %v944
        %v946 = vmul.f32 %v945, %v945
        %v947 = vsel %vm505, %v946, 0.0
        %948 = vadd.xlane.f32.xlu0 %v947
        %v949 = vpop.xlane.xlu0 %948
        %v950 = vmul.f32 %v949, %v515
        %v951 = vadd.f32 %v950, 1e-06
        %v952 = vrsqrt.pop %v951
        %v953 = vmul.f32 %v952, %v951
        %v954 = vmul.f32 %v953, %v952
        %v955 = vmul.f32 0.5, %v954
        %v956 = vsub.f32 1.5, %v955
        %v957 = vmul.f32 %v952, %v956
        %vm958 = vweird.f32 %v951
        %vm959 = vweird.f32 %v952
        %vm960 = vmor %vm958, %vm959
        %v961 = vsel %vm960, %v952, %v957
        %v962 = vmul.f32 %v945, %v961
        %v963 = vperm.slane %v535, 4
        %v964 = vmul.f32 %v962, %v963
        %v965 = vperm.slane %v504, 3
        %v966 = vadd.f32 %v964, %v965
        %v967 = vpack.c.bf16 %v966, %v966
        %968 = vst.msk [vmem:[#allocation2] sm:$0xff] %vm505, 0.0
        %v969 = vld [vmem:[%s10] sm:$0xf]
        %v970 = vld [vmem:[%s10 + $0x4] sm:$0xf]
        %v971 = vld [vmem:[%s10 + $0x8] sm:$0xf]
        %v972 = vld [vmem:[%s10 + $0xc] sm:$0xf]
        %v973 = vld [vmem:[%s11] sm:$0x1]
        %v975 = vperm.slane %v973, 0
        %v981 = vunpack.c.l.b16 %v969
        %v982 = vunpack.c.l.b16 %v970
        %v983 = vunpack.c.l.b16 %v971
        %v984 = vunpack.c.l.b16 %v972
        %v985 = vpack.c.b16 %v982, %v981
        %v986 = vpack.c.b16 %v984, %v983
        %v990 = vsel %vm505, %v967, 0
        %992 = vmatpush.bf16.msra.mxu0 0
        %993 = vmatpush.bf16.msra.mxu0 0
        %994 = vmatpush.bf16.msra.mxu0 0
        %995 = vmatpush.bf16.msra.mxu0 0
        %996 = vmatpush.bf16.msra.mxu0 0
        %997 = vmatpush.bf16.msra.mxu0 0
        %998 = vmatpush.bf16.msra.mxu0 %v986
        %999 = vmatpush.bf16.msra.mxu0 %v985
        %1000 = vmatmul.bf16.gmra.mxu0 %v990
        %v1001 = vpop.f32.mrf.mxu0
        %v1002 = vadd.f32 %v975, %v1001
        %v1003 = vpop.f32.mrf.mxu0
        %1004 = vdwg.mxu0
        %v1005 = vmul.f32 %v1002, %v1002
        %v1006 = vmul.f32 %v1002, %v1005
        %v1007 = vmul.f32 %v1006, 0.044715
        %v1008 = vadd.f32 %v1002, %v1007
        %v1009 = vmul.f32 %v1008, 0.7978846
        %v1010 = vtanh.pop %v1009
        %v1011 = vadd.f32 %v1010, 1.0
        %v1012 = vmul.f32 %v1011, 0.5
        %v1013 = vmul.f32 %v1002, %v1012
        %v1014 = vld [vmem:[#allocation2] sm:$0xff]
        %v1015 = vpack.c.bf16 %v1013, %v1013
        %v1016 = vld [vmem:[%s12] sm:$0xf]
        %v1017 = vld [vmem:[%s12 + $0x4] sm:$0xf]
        %v1018 = vld [vmem:[%s12 + $0x8] sm:$0xf]
        %v1019 = vld [vmem:[%s12 + $0xc] sm:$0xf]
        %v1020 = vld [vmem:[%s12 + $0x10] sm:$0xf]
        %v1021 = vld [vmem:[%s12 + $0x14] sm:$0xf]
        %v1022 = vld [vmem:[%s12 + $0x18] sm:$0xf]
        %v1023 = vld [vmem:[%s12 + $0x1c] sm:$0xf]
        %v1024 = vld [vmem:[%s12 + $0x20] sm:$0xf]
        %v1025 = vld [vmem:[%s12 + $0x24] sm:$0xf]
        %v1026 = vld [vmem:[%s12 + $0x28] sm:$0xf]
        %v1027 = vld [vmem:[%s12 + $0x2c] sm:$0xf]
        %v1028 = vld [vmem:[%s12 + $0x30] sm:$0xf]
        %v1029 = vld [vmem:[%s12 + $0x34] sm:$0xf]
        %v1030 = vld [vmem:[%s12 + $0x38] sm:$0xf]
        %v1031 = vld [vmem:[%s12 + $0x3c] sm:$0xf]
        %v1048 = vunpack.c.l.b16 %v1016
        %v1049 = vunpack.c.l.b16 %v1017
        %v1050 = vunpack.c.l.b16 %v1018
        %v1051 = vunpack.c.l.b16 %v1019
        %v1052 = vunpack.c.l.b16 %v1020
        %v1053 = vunpack.c.l.b16 %v1021
        %v1054 = vunpack.c.l.b16 %v1022
        %v1055 = vunpack.c.l.b16 %v1023
        %v1056 = vunpack.c.l.b16 %v1024
        %v1057 = vunpack.c.l.b16 %v1025
        %v1058 = vunpack.c.l.b16 %v1026
        %v1059 = vunpack.c.l.b16 %v1027
        %v1060 = vunpack.c.l.b16 %v1028
        %v1061 = vunpack.c.l.b16 %v1029
        %v1062 = vunpack.c.l.b16 %v1030
        %v1063 = vunpack.c.l.b16 %v1031
        %v1064 = vpack.c.b16 %v1049, %v1048
        %v1065 = vpack.c.b16 %v1051, %v1050
        %v1066 = vpack.c.b16 %v1053, %v1052
        %v1067 = vpack.c.b16 %v1055, %v1054
        %v1068 = vpack.c.b16 %v1057, %v1056
        %v1069 = vpack.c.b16 %v1059, %v1058
        %v1070 = vpack.c.b16 %v1061, %v1060
        %v1071 = vpack.c.b16 %v1063, %v1062
        %1080 = vmatpush.bf16.msra.mxu0 %v1071
        %1081 = vmatpush.bf16.msra.mxu0 %v1070
        %1082 = vmatpush.bf16.msra.mxu0 %v1069
        %1083 = vmatpush.bf16.msra.mxu0 %v1068
        %1084 = vmatpush.bf16.msra.mxu0 %v1067
        %1085 = vmatpush.bf16.msra.mxu0 %v1066
        %1086 = vmatpush.bf16.msra.mxu0 %v1065
        %1087 = vmatpush.bf16.msra.mxu0 %v1064
        %1088 = vmatmul.bf16.gmra.mxu0 %v1015
        %v1089 = vpop.f32.mrf.mxu0
        %v1090 = vadd.f32 0.0, %v1089
        %v1091 = vpop.f32.mrf.mxu0
        %1092 = vdwg.mxu0
        %v1093 = vadd.f32 %v1014, %v1090
        %1094 = vst.msk [vmem:[#allocation2] sm:$0xff] %vm505, %v1093
        %v1095 = vld [vmem:[#allocation2] sm:$0xff]
        %v1096 = vld [vmem:[%s13] sm:$0x1]
        %v1098 = vperm.slane %v1096, 0
        %v1100 = vadd.f32 %v1095, %v1098
        %v1101 = vperm.slane %v504, 5
        %v1102 = vmul.f32 %v1101, %v1100
        %v1103 = vadd.f32 %v940, %v1102
        %1104 = vst.msk [vmem:[%s497] sm:$0xff] %vm505, %v1103
        %s1105 = sand.u32 %s343, 1
        %s1106 = scalar_lea.sflag [#allocation5], %s1105
        %s1107 = sand.u32 %s343, 1
        %s1108 = smul.addr %s1107, 8
        %s1109 = scalar_lea.vmem [#allocation6], %s1108
        // Predicated region
        $region81: #{tpu_custom_call.1} parent=75 // pred_check
          %p1110 = pneg %p353
        $region82: #{tpu_custom_call.1} parent=75 // pred_check_branch
          %1112 = sbr.rel (%p1110) target = $region84
        $region83: #{tpu_custom_call.1} parent=75 // pred_region
          %1114 = vsyncadd %s1106, 0
          %s1115 = smul.addr %s31, 8
          %s1116 = scalar_lea.hbm %s14, %s1115
          %s1118 = sshll.u32 %s1109, 4
          %s1119 = int_to_ptr.vmem [resolvable:$true] %s1118
          %s1120 = sshll.u32 %s1116, 4
          %s1121 = int_to_ptr.hbm [resolvable:$true] %s1120
          %1123 = dma.vmem_to_hbm [thread:$0]  %s1119, 128, %s1121, %s1106
        $region84: #{tpu_custom_call.1} parent=75 // pred_fallthru
          _
      $region76: #{tpu_custom_call.1} parent=5 // pred_fallthru
        _
      %p1124 = scmp.le.s32.totalorder 2, %s26
      // Predicated region
      $region85: #{tpu_custom_call.1} parent=5 // pred_check
        %p1125 = pneg %p1124
      $region86: #{tpu_custom_call.1} parent=5 // pred_check_branch
        %1127 = sbr.rel (%p1125) target = $region88
      $region87: #{tpu_custom_call.1} parent=5 // pred_region
        %s1128 = ssub.s32 %s26, 2
        // Predicated region
        $region89: #{tpu_custom_call.1} parent=87 // pred_check
          %p1129 = pneg %p359
        $region90: #{tpu_custom_call.1} parent=87 // pred_check_branch
          %1131 = sbr.rel (%p1129) target = $region92
        $region91: #{tpu_custom_call.1} parent=87 // pred_region
          %s1132 = sand.u32 %s344, 1
          %s1133 = scalar_lea.sflag [#allocation5], %s1132
          %s1134 = sand.u32 %s344, 1
          %s1135 = smul.addr %s1134, 8
          %s1136 = scalar_lea.vmem [#allocation6], %s1135
          %1138 = dma.done %s1133, 128
        $region92: #{tpu_custom_call.1} parent=87 // pred_fallthru
          _
      $region88: #{tpu_custom_call.1} parent=5 // pred_fallthru
        _
    $region6: #{tpu_custom_call.1} parent=1 // loop_footer
      %s30 = sadd.s32 1, %s26
    $region7: #{tpu_custom_call.1} parent=1 // loop_footer_branch
      %25 = sbr.rel target = $region3
    $region8: #{tpu_custom_call.1} parent=1 // loop_exit
      _
    %1139 = vsyncpa [#allocation4], 1
    %s1140 = scalar_lea.sflag [#allocation4], 1
    %1141 = vsyncpa %s1140, 1
    %1142 = vsyncpa [#allocation5], 1
    %s1143 = scalar_lea.sflag [#allocation5], 1
    %1144 = vsyncpa %s1143, 1

</llo_original>
